<compile_context>
chip_gen: v5e
topology: v5e:2x2
jax: 0.10.0
libtpu: 0.0.40
codegen_flags: <defaults>
</compile_context>

<pallas_src>
import functools

import jax
import jax.numpy as jnp
from jax.experimental import pallas as pl
from jax.experimental.pallas import tpu as pltpu


# ----------------------------------------------------------------------------
# Fused Pallas kernel
# ----------------------------------------------------------------------------
def _fused_forward_kernel(xs_ref, w1_ref, cb1_ref, w2_ref, cb2_ref,
                          w3_ref, cb3_ref, fc1_ref, fc2_ref,
                          l1u_ref, l1d_ref, l2u_ref, l2d_ref,
                          b1h_ref, b2h_ref, z_ref, o_ref,
                          *, Bp, G, o1, o2, o3, n_head, rank):
    """Whole Mnih2015_mh_lora forward on one VMEM-resident working set.

    Activation layout: 2-D (spatial*batch, channels) matrices whose row index
    is (h, w, b) row-major, with b padded to a multiple of 8.  Every conv tap
    is then a dense matmul over contiguous, 8-aligned row blocks.
    """
    f32 = jnp.float32

    # ---- conv1: 8x8 / stride-4 conv == 2x2 / stride-1 conv on the
    #      space-to-depth(4) input (xs rows ordered (R, C, b), 16*Cin lanes).
    acc1 = jnp.zeros((o1 * o1 * Bp, cb1_ref.shape[1]), f32)
    for p in range(2):
        for q in range(2):
            blocks = [xs_ref[pl.ds(((h + p) * G + q) * Bp, o1 * Bp), :]
                      for h in range(o1)]
            patch = jnp.concatenate(blocks, axis=0) if len(blocks) > 1 else blocks[0]
            acc1 = acc1 + jnp.dot(patch, w1_ref[2 * p + q],
                                  preferred_element_type=f32)
    y1 = jnp.maximum(acc1 + cb1_ref[...], 0.0)          # rows (h, w, b); 32 lanes

    # ---- conv2: 4x4 / stride 2.
    acc2 = jnp.zeros((o2 * o2 * Bp, cb2_ref.shape[1]), f32)
    for i in range(4):
        for j in range(4):
            blocks = [y1[((2 * r + i) * o1 + (2 * c + j)) * Bp:
                         ((2 * r + i) * o1 + (2 * c + j) + 1) * Bp, :]
                      for r in range(o2) for c in range(o2)]
            patch = jnp.concatenate(blocks, axis=0) if len(blocks) > 1 else blocks[0]
            acc2 = acc2 + jnp.dot(patch, w2_ref[4 * i + j],
                                  preferred_element_type=f32)
    y2 = jnp.maximum(acc2 + cb2_ref[...], 0.0)           # rows (r, c, b); 64 lanes

    # ---- conv3: 3x3 / stride 1.
    acc3 = jnp.zeros((o3 * o3 * Bp, cb3_ref.shape[1]), f32)
    for i in range(3):
        for j in range(3):
            blocks = [y2[((r + i) * o2 + (c + j)) * Bp:
                         ((r + i) * o2 + (c + j) + 1) * Bp, :]
                      for r in range(o3) for c in range(o3)]
            patch = jnp.concatenate(blocks, axis=0) if len(blocks) > 1 else blocks[0]
            acc3 = acc3 + jnp.dot(patch, w3_ref[3 * i + j],
                                  preferred_element_type=f32)
    y3 = jnp.maximum(acc3 + cb3_ref[...], 0.0)           # rows (r, c, b); 64 lanes

    # ---- flatten.  For a 1x1 conv3 output this is already (Bp, 64).
    if o3 * o3 == 1:
        yc = y3
    else:
        # TODO(synk): for conv3 outputs larger than 1x1, fc1_w / l1u rows must
        # be permuted at init from PyTorch's (C,H,W) flatten to this (H,W,C)
        # row order when porting real PyTorch weights.
        yc = jnp.concatenate([y3[s * Bp:(s + 1) * Bp, :]
                              for s in range(o3 * o3)], axis=1)

    # ---- fc1/fc2 with multi-head LoRA.  Layer-1 up-projections are batched
    #      across heads; fc + LoRA biases are pre-folded into b1h/b2h.
    base1 = jnp.dot(yc, fc1_ref[...], preferred_element_type=f32)     # (Bp, 512)
    u1 = jnp.dot(yc, l1u_ref[...], preferred_element_type=f32)        # (Bp, H*r)
    out = jnp.zeros(o_ref.shape, f32)
    for i in range(n_head):
        d1 = jnp.dot(u1[:, i * rank:(i + 1) * rank], l1d_ref[i],
                     preferred_element_type=f32)
        h = jnp.maximum(base1 + d1 + b1h_ref[i], 0.0)                 # (Bp, 512)
        base2 = jnp.dot(h, fc2_ref[...], preferred_element_type=f32)
        u2 = jnp.dot(h, l2u_ref[i], preferred_element_type=f32)
        d2 = jnp.dot(u2, l2d_ref[i], preferred_element_type=f32)
        out = out + (base2 + d2 + b2h_ref[i]) * z_ref[i]              # z[i]: SMEM scalar
    o_ref[...] = out.astype(o_ref.dtype)


# ----------------------------------------------------------------------------
# Host-side layout plumbing (init-time weight packing + per-call input prep)
# ----------------------------------------------------------------------------
def _prep_input(x_nhwc):
    """NHWC image -> 2-D space-to-depth(4) matrix (H/4 * W/4 * Bpad, 16*C)."""
    B, H, W, C = x_nhwc.shape
    Bp = max(8, ((B + 7) // 8) * 8)
    if Bp != B:
        x_nhwc = jnp.pad(x_nhwc, ((0, Bp - B), (0, 0), (0, 0), (0, 0)))
    gh, gw = H // 4, W // 4
    xr = x_nhwc.reshape(Bp, gh, 4, gw, 4, C).transpose(1, 3, 0, 2, 4, 5)
    return xr.reshape(gh * gw * Bp, 16 * C), Bp


def prepare_kernel_params(params, n_head, rank):
    """One-time repacking of PyTorch-layout params into kernel layout."""
    cin = params['conv1_w'].shape[2]
    # conv1 weight rearranged for the space-to-depth(4) formulation:
    # W1p[2p+q, dh*4*Cin + dw*Cin + ci, co] = w1[4p+dh, 4q+dw, ci, co]
    w1p = (params['conv1_w'].reshape(2, 4, 2, 4, cin, 32)
           .transpose(0, 2, 1, 3, 4, 5).reshape(4, 16 * cin, 32))
    conv3_size = params['fc1_w'].shape[0]
    # LoRA layer-1 up-projections packed: columns ordered (head, rank).
    l1u = params['l1u_w'].transpose(1, 0, 2).reshape(conv3_size, n_head * rank)
    # Fold fc bias + LoRA-up bias (pushed through the down proj) + LoRA-down
    # bias into one effective per-head bias per layer (exact, linear algebra).
    b1h = (params['fc1_b'][None]
           + jnp.einsum('hr,hrd->hd', params['l1u_b'], params['l1d_w'])
           + params['l1d_b'])[:, None, :]                    # (n_head, 1, 512)
    b2h = (params['fc2_b'][None]
           + jnp.einsum('hr,hrd->hd', params['l2u_b'], params['l2d_w'])
           + params['l2d_b'])[:, None, :]                    # (n_head, 1, A)
    return dict(
        w1p=w1p, cb1=params['conv1_b'].reshape(1, -1),
        w2p=params['conv2_w'].reshape(16, 32, 64),
        cb2=params['conv2_b'].reshape(1, -1),
        w3p=params['conv3_w'].reshape(9, 64, 64),
        cb3=params['conv3_b'].reshape(1, -1),
        fc1_w=params['fc1_w'], fc2_w=params['fc2_w'],
        l1u=l1u, l1d=params['l1d_w'], l2u=params['l2u_w'], l2d=params['l2d_w'],
        b1h=b1h, b2h=b2h)


def make_forward(num_actions, n_head, rank):
    @jax.jit
    def forward(kp, x_nhwc, z):
        B, H, W, C = x_nhwc.shape
        assert H == W and H % 4 == 0, "square images with H % 4 == 0 only"
        xs2d, Bp = _prep_input(x_nhwc)
        G = H // 4
        o1 = G - 1                       # conv1 output side  ((H-8)//4 + 1)
        o2 = (o1 - 4) // 2 + 1           # conv2 output side
        o3 = o2 - 2                      # conv3 output side
        A = num_actions

        kernel = functools.partial(
            _fused_forward_kernel, Bp=Bp, G=G, o1=o1, o2=o2, o3=o3,
            n_head=n_head, rank=rank)

        args = (xs2d, kp['w1p'], kp['cb1'], kp['w2p'], kp['cb2'],
                kp['w3p'], kp['cb3'], kp['fc1_w'], kp['fc2_w'],
                kp['l1u'], kp['l1d'], kp['l2u'], kp['l2d'],
                kp['b1h'], kp['b2h'], z)

        feat = o3 * o3 * 64
        flops = 2 * (
            4 * (o1 * o1 * Bp) * (16 * C) * 32            # conv1
            + 16 * (o2 * o2 * Bp) * 32 * 64               # conv2
            + 9 * (o3 * o3 * Bp) * 64 * 64                # conv3
            + Bp * feat * 512 + Bp * feat * (n_head * rank)
            + n_head * (Bp * rank * 512 + Bp * 512 * A
                        + Bp * 512 * rank + Bp * rank * A))
        bytes_accessed = sum(int(a.size) * 4 for a in args) + Bp * A * 4

        vmem = pl.BlockSpec(memory_space=pltpu.MemorySpace.VMEM)
        smem = pl.BlockSpec(memory_space=pltpu.MemorySpace.SMEM)
        out = pl.pallas_call(
            kernel,
            out_shape=jax.ShapeDtypeStruct((Bp, A), jnp.float32),
            in_specs=[vmem] * 15 + [smem],
            out_specs=vmem,
            cost_estimate=pl.CostEstimate(flops=flops, transcendentals=0,
                                          bytes_accessed=bytes_accessed),
        )(*args)
        return out[:B]
    return forward


# ----------------------------------------------------------------------------
# Deterministic parameter init + pure-JAX reference (mirrors the PyTorch math)
# ----------------------------------------------------------------------------
def init_params(key, num_channels, image_shape, num_actions, n_head, rank):
    H, W = image_shape
    h1, w1_ = (H - 8) // 4 + 1, (W - 8) // 4 + 1
    h2, w2_ = (h1 - 4) // 2 + 1, (w1_ - 4) // 2 + 1
    h3, w3_ = h2 - 2, w2_ - 2
    conv3_size = 64 * h3 * w3_

    keys = jax.random.split(key, 18)

    def w(k, shape, scale=0.05):
        return (scale * jax.random.normal(k, shape)).astype(jnp.float32)

    params = dict(
        conv1_w=w(keys[0], (8, 8, num_channels, 32)),  conv1_b=w(keys[1], (32,)),
        conv2_w=w(keys[2], (4, 4, 32, 64)),            conv2_b=w(keys[3], (64,)),
        conv3_w=w(keys[4], (3, 3, 64, 64)),            conv3_b=w(keys[5], (64,)),
        fc1_w=w(keys[6], (conv3_size, 512)),           fc1_b=w(keys[7], (512,)),
        fc2_w=w(keys[8], (512, num_actions)),          fc2_b=w(keys[9], (num_actions,)),
        l1u_w=w(keys[10], (n_head, conv3_size, rank)), l1u_b=w(keys[11], (n_head, rank)),
        l1d_w=w(keys[12], (n_head, rank, 512)),        l1d_b=w(keys[13], (n_head, 512)),
        l2u_w=w(keys[14], (n_head, 512, rank)),        l2u_b=w(keys[15], (n_head, rank)),
        l2d_w=w(keys[16], (n_head, rank, num_actions)), l2d_b=w(keys[17], (n_head, num_actions)),
    )
    return params, conv3_size


def ref_forward(params, x_nhwc, z, n_head):
    def conv(x, w, b, s):
        y = jax.lax.conv_general_dilated(
            x, w, (s, s), 'VALID', dimension_numbers=('NHWC', 'HWIO', 'NHWC'))
        return jax.nn.relu(y + b)

    y = conv(x_nhwc, params['conv1_w'], params['conv1_b'], 4)
    y = conv(y, params['conv2_w'], params['conv2_b'], 2)
    y = conv(y, params['conv3_w'], params['conv3_b'], 1)
    B = y.shape[0]
    y_conv = jnp.transpose(y, (0, 3, 1, 2)).reshape(B, -1)
    out = 0.0
    for i in range(n_head):
        h = jax.nn.relu(
            y_conv @ params['fc1_w'] + params['fc1_b']
            + (y_conv @ params['l1u_w'][i] + params['l1u_b'][i]) @ params['l1d_w'][i]
            + params['l1d_b'][i])
        yy = (h @ params['fc2_w'] + params['fc2_b']
              + (h @ params['l2u_w'][i] + params['l2u_b'][i]) @ params['l2d_w'][i]
              + params['l2d_b'][i])
        out = out + yy * z[i]
    return out


# ----------------------------------------------------------------------------
if __name__ == "__main__":
    image_shape = (36, 36)     # conv stack -> 1x1x64 features (conv3_size = 64)
    num_channels = 4
    num_actions = 6
    n_head = 3
    rank = 9
    batch = 8                  # fills all 8 sublanes of a vreg

    key = jax.random.PRNGKey(0)
    k_param, k_x, k_z = jax.random.split(key, 3)

    params, conv3_size = init_params(k_param, num_channels, image_shape,
                                     num_actions, n_head, rank)
    kparams = prepare_kernel_params(params, n_head, rank)
    forward = make_forward(num_actions, n_head, rank)

    # Example input built NCHW (PyTorch convention), then moved to NHWC.
    x_nchw = jax.random.normal(k_x, (batch, num_channels) + image_shape, jnp.float32)
    z = jax.random.normal(k_z, (n_head,), jnp.float32)
    x_nhwc = jnp.transpose(x_nchw, (0, 2, 3, 1))

    out = jax.block_until_ready(forward(kparams, x_nhwc, z))
    ref = jax.block_until_ready(ref_forward(params, x_nhwc, z, n_head))

    assert out.shape == (batch, num_actions)
    assert jnp.allclose(out, ref, rtol=2e-3, atol=2e-3), (out, ref)

    print("KERNEL_OK")
</pallas_src>

<mosaic_0001>
module attributes {stable_mosaic.version = 11 : i64} {
  func.func @_fused_forward_kernel(%arg0: memref<648x64xf32, #tpu.memory_space<vmem>>, %arg1: memref<4x64x32xf32, #tpu.memory_space<vmem>>, %arg2: memref<1x32xf32, #tpu.memory_space<vmem>>, %arg3: memref<16x32x64xf32, #tpu.memory_space<vmem>>, %arg4: memref<1x64xf32, #tpu.memory_space<vmem>>, %arg5: memref<9x64x64xf32, #tpu.memory_space<vmem>>, %arg6: memref<1x64xf32, #tpu.memory_space<vmem>>, %arg7: memref<64x512xf32, #tpu.memory_space<vmem>>, %arg8: memref<512x6xf32, #tpu.memory_space<vmem>>, %arg9: memref<64x27xf32, #tpu.memory_space<vmem>>, %arg10: memref<3x9x512xf32, #tpu.memory_space<vmem>>, %arg11: memref<3x512x9xf32, #tpu.memory_space<vmem>>, %arg12: memref<3x9x6xf32, #tpu.memory_space<vmem>>, %arg13: memref<3x1x512xf32, #tpu.memory_space<vmem>>, %arg14: memref<3x1x6xf32, #tpu.memory_space<vmem>>, %arg15: memref<3xf32, #tpu.memory_space<smem>>, %arg16: memref<8x6xf32, #tpu.memory_space<vmem>>) attributes {dimension_semantics = [], scalar_prefetch = 0 : i64, scratch_operands = 0 : i64, tpu.core_type = #tpu.core_type<tc>} {
    %cst = arith.constant 0.000000e+00 : f32
    %0 = vector.broadcast %cst : f32 to vector<512x32xf32>
    %c0 = arith.constant 0 : index
    %c0_0 = arith.constant 0 : index
    %1 = vector.load %arg0[%c0, %c0_0] : memref<648x64xf32, #tpu.memory_space<vmem>>, vector<64x64xf32>
    %c72 = arith.constant 72 : index
    %c0_1 = arith.constant 0 : index
    %2 = vector.load %arg0[%c72, %c0_1] : memref<648x64xf32, #tpu.memory_space<vmem>>, vector<64x64xf32>
    %c144 = arith.constant 144 : index
    %c0_2 = arith.constant 0 : index
    %3 = vector.load %arg0[%c144, %c0_2] : memref<648x64xf32, #tpu.memory_space<vmem>>, vector<64x64xf32>
    %c216 = arith.constant 216 : index
    %c0_3 = arith.constant 0 : index
    %4 = vector.load %arg0[%c216, %c0_3] : memref<648x64xf32, #tpu.memory_space<vmem>>, vector<64x64xf32>
    %c288 = arith.constant 288 : index
    %c0_4 = arith.constant 0 : index
    %5 = vector.load %arg0[%c288, %c0_4] : memref<648x64xf32, #tpu.memory_space<vmem>>, vector<64x64xf32>
    %c360 = arith.constant 360 : index
    %c0_5 = arith.constant 0 : index
    %6 = vector.load %arg0[%c360, %c0_5] : memref<648x64xf32, #tpu.memory_space<vmem>>, vector<64x64xf32>
    %c432 = arith.constant 432 : index
    %c0_6 = arith.constant 0 : index
    %7 = vector.load %arg0[%c432, %c0_6] : memref<648x64xf32, #tpu.memory_space<vmem>>, vector<64x64xf32>
    %c504 = arith.constant 504 : index
    %c0_7 = arith.constant 0 : index
    %8 = vector.load %arg0[%c504, %c0_7] : memref<648x64xf32, #tpu.memory_space<vmem>>, vector<64x64xf32>
    %9 = tpu.concatenate %1, %2, %3, %4, %5, %6, %7, %8 in 0 : vector<64x64xf32>, vector<64x64xf32>, vector<64x64xf32>, vector<64x64xf32>, vector<64x64xf32>, vector<64x64xf32>, vector<64x64xf32>, vector<64x64xf32> -> vector<512x64xf32>
    %c0_8 = arith.constant 0 : index
    %c0_9 = arith.constant 0 : index
    %c0_10 = arith.constant 0 : index
    %10 = vector.load %arg1[%c0_8, %c0_9, %c0_10] : memref<4x64x32xf32, #tpu.memory_space<vmem>>, vector<1x64x32xf32>
    %11 = vector.shape_cast %10 : vector<1x64x32xf32> to vector<64x32xf32>
    %cst_11 = arith.constant dense<0.000000e+00> : vector<512x32xf32>
    %12 = tpu.matmul %9, %11, %cst_11 {dimension_numbers = #tpu.dot_dimension_numbers<[1], [0], [0], [1], [0, 0, 1, 1], [], []>} : vector<512x64xf32>, vector<64x32xf32>, vector<512x32xf32> -> vector<512x32xf32>
    %13 = arith.addf %0, %12 : vector<512x32xf32>
    %c8 = arith.constant 8 : index
    %c0_12 = arith.constant 0 : index
    %14 = vector.load %arg0[%c8, %c0_12] : memref<648x64xf32, #tpu.memory_space<vmem>>, vector<64x64xf32>
    %c80 = arith.constant 80 : index
    %c0_13 = arith.constant 0 : index
    %15 = vector.load %arg0[%c80, %c0_13] : memref<648x64xf32, #tpu.memory_space<vmem>>, vector<64x64xf32>
    %c152 = arith.constant 152 : index
    %c0_14 = arith.constant 0 : index
    %16 = vector.load %arg0[%c152, %c0_14] : memref<648x64xf32, #tpu.memory_space<vmem>>, vector<64x64xf32>
    %c224 = arith.constant 224 : index
    %c0_15 = arith.constant 0 : index
    %17 = vector.load %arg0[%c224, %c0_15] : memref<648x64xf32, #tpu.memory_space<vmem>>, vector<64x64xf32>
    %c296 = arith.constant 296 : index
    %c0_16 = arith.constant 0 : index
    %18 = vector.load %arg0[%c296, %c0_16] : memref<648x64xf32, #tpu.memory_space<vmem>>, vector<64x64xf32>
    %c368 = arith.constant 368 : index
    %c0_17 = arith.constant 0 : index
    %19 = vector.load %arg0[%c368, %c0_17] : memref<648x64xf32, #tpu.memory_space<vmem>>, vector<64x64xf32>
    %c440 = arith.constant 440 : index
    %c0_18 = arith.constant 0 : index
    %20 = vector.load %arg0[%c440, %c0_18] : memref<648x64xf32, #tpu.memory_space<vmem>>, vector<64x64xf32>
    %c512 = arith.constant 512 : index
    %c0_19 = arith.constant 0 : index
    %21 = vector.load %arg0[%c512, %c0_19] : memref<648x64xf32, #tpu.memory_space<vmem>>, vector<64x64xf32>
    %22 = tpu.concatenate %14, %15, %16, %17, %18, %19, %20, %21 in 0 : vector<64x64xf32>, vector<64x64xf32>, vector<64x64xf32>, vector<64x64xf32>, vector<64x64xf32>, vector<64x64xf32>, vector<64x64xf32>, vector<64x64xf32> -> vector<512x64xf32>
    %c1 = arith.constant 1 : index
    %c0_20 = arith.constant 0 : index
    %c0_21 = arith.constant 0 : index
    %23 = vector.load %arg1[%c1, %c0_20, %c0_21] : memref<4x64x32xf32, #tpu.memory_space<vmem>>, vector<1x64x32xf32>
    %24 = vector.shape_cast %23 : vector<1x64x32xf32> to vector<64x32xf32>
    %cst_22 = arith.constant dense<0.000000e+00> : vector<512x32xf32>
    %25 = tpu.matmul %22, %24, %cst_22 {dimension_numbers = #tpu.dot_dimension_numbers<[1], [0], [0], [1], [0, 0, 1, 1], [], []>} : vector<512x64xf32>, vector<64x32xf32>, vector<512x32xf32> -> vector<512x32xf32>
    %26 = arith.addf %13, %25 : vector<512x32xf32>
    %c72_23 = arith.constant 72 : index
    %c0_24 = arith.constant 0 : index
    %27 = vector.load %arg0[%c72_23, %c0_24] : memref<648x64xf32, #tpu.memory_space<vmem>>, vector<64x64xf32>
    %c144_25 = arith.constant 144 : index
    %c0_26 = arith.constant 0 : index
    %28 = vector.load %arg0[%c144_25, %c0_26] : memref<648x64xf32, #tpu.memory_space<vmem>>, vector<64x64xf32>
    %c216_27 = arith.constant 216 : index
    %c0_28 = arith.constant 0 : index
    %29 = vector.load %arg0[%c216_27, %c0_28] : memref<648x64xf32, #tpu.memory_space<vmem>>, vector<64x64xf32>
    %c288_29 = arith.constant 288 : index
    %c0_30 = arith.constant 0 : index
    %30 = vector.load %arg0[%c288_29, %c0_30] : memref<648x64xf32, #tpu.memory_space<vmem>>, vector<64x64xf32>
    %c360_31 = arith.constant 360 : index
    %c0_32 = arith.constant 0 : index
    %31 = vector.load %arg0[%c360_31, %c0_32] : memref<648x64xf32, #tpu.memory_space<vmem>>, vector<64x64xf32>
    %c432_33 = arith.constant 432 : index
    %c0_34 = arith.constant 0 : index
    %32 = vector.load %arg0[%c432_33, %c0_34] : memref<648x64xf32, #tpu.memory_space<vmem>>, vector<64x64xf32>
    %c504_35 = arith.constant 504 : index
    %c0_36 = arith.constant 0 : index
    %33 = vector.load %arg0[%c504_35, %c0_36] : memref<648x64xf32, #tpu.memory_space<vmem>>, vector<64x64xf32>
    %c576 = arith.constant 576 : index
    %c0_37 = arith.constant 0 : index
    %34 = vector.load %arg0[%c576, %c0_37] : memref<648x64xf32, #tpu.memory_space<vmem>>, vector<64x64xf32>
    %35 = tpu.concatenate %27, %28, %29, %30, %31, %32, %33, %34 in 0 : vector<64x64xf32>, vector<64x64xf32>, vector<64x64xf32>, vector<64x64xf32>, vector<64x64xf32>, vector<64x64xf32>, vector<64x64xf32>, vector<64x64xf32> -> vector<512x64xf32>
    %c2 = arith.constant 2 : index
    %c0_38 = arith.constant 0 : index
    %c0_39 = arith.constant 0 : index
    %36 = vector.load %arg1[%c2, %c0_38, %c0_39] : memref<4x64x32xf32, #tpu.memory_space<vmem>>, vector<1x64x32xf32>
    %37 = vector.shape_cast %36 : vector<1x64x32xf32> to vector<64x32xf32>
    %cst_40 = arith.constant dense<0.000000e+00> : vector<512x32xf32>
    %38 = tpu.matmul %35, %37, %cst_40 {dimension_numbers = #tpu.dot_dimension_numbers<[1], [0], [0], [1], [0, 0, 1, 1], [], []>} : vector<512x64xf32>, vector<64x32xf32>, vector<512x32xf32> -> vector<512x32xf32>
    %39 = arith.addf %26, %38 : vector<512x32xf32>
    %c80_41 = arith.constant 80 : index
    %c0_42 = arith.constant 0 : index
    %40 = vector.load %arg0[%c80_41, %c0_42] : memref<648x64xf32, #tpu.memory_space<vmem>>, vector<64x64xf32>
    %c152_43 = arith.constant 152 : index
    %c0_44 = arith.constant 0 : index
    %41 = vector.load %arg0[%c152_43, %c0_44] : memref<648x64xf32, #tpu.memory_space<vmem>>, vector<64x64xf32>
    %c224_45 = arith.constant 224 : index
    %c0_46 = arith.constant 0 : index
    %42 = vector.load %arg0[%c224_45, %c0_46] : memref<648x64xf32, #tpu.memory_space<vmem>>, vector<64x64xf32>
    %c296_47 = arith.constant 296 : index
    %c0_48 = arith.constant 0 : index
    %43 = vector.load %arg0[%c296_47, %c0_48] : memref<648x64xf32, #tpu.memory_space<vmem>>, vector<64x64xf32>
    %c368_49 = arith.constant 368 : index
    %c0_50 = arith.constant 0 : index
    %44 = vector.load %arg0[%c368_49, %c0_50] : memref<648x64xf32, #tpu.memory_space<vmem>>, vector<64x64xf32>
    %c440_51 = arith.constant 440 : index
    %c0_52 = arith.constant 0 : index
    %45 = vector.load %arg0[%c440_51, %c0_52] : memref<648x64xf32, #tpu.memory_space<vmem>>, vector<64x64xf32>
    %c512_53 = arith.constant 512 : index
    %c0_54 = arith.constant 0 : index
    %46 = vector.load %arg0[%c512_53, %c0_54] : memref<648x64xf32, #tpu.memory_space<vmem>>, vector<64x64xf32>
    %c584 = arith.constant 584 : index
    %c0_55 = arith.constant 0 : index
    %47 = vector.load %arg0[%c584, %c0_55] : memref<648x64xf32, #tpu.memory_space<vmem>>, vector<64x64xf32>
    %48 = tpu.concatenate %40, %41, %42, %43, %44, %45, %46, %47 in 0 : vector<64x64xf32>, vector<64x64xf32>, vector<64x64xf32>, vector<64x64xf32>, vector<64x64xf32>, vector<64x64xf32>, vector<64x64xf32>, vector<64x64xf32> -> vector<512x64xf32>
    %c3 = arith.constant 3 : index
    %c0_56 = arith.constant 0 : index
    %c0_57 = arith.constant 0 : index
    %49 = vector.load %arg1[%c3, %c0_56, %c0_57] : memref<4x64x32xf32, #tpu.memory_space<vmem>>, vector<1x64x32xf32>
    %50 = vector.shape_cast %49 : vector<1x64x32xf32> to vector<64x32xf32>
    %cst_58 = arith.constant dense<0.000000e+00> : vector<512x32xf32>
    %51 = tpu.matmul %48, %50, %cst_58 {dimension_numbers = #tpu.dot_dimension_numbers<[1], [0], [0], [1], [0, 0, 1, 1], [], []>} : vector<512x64xf32>, vector<64x32xf32>, vector<512x32xf32> -> vector<512x32xf32>
    %52 = arith.addf %39, %51 : vector<512x32xf32>
    %c0_59 = arith.constant 0 : index
    %c0_60 = arith.constant 0 : index
    %53 = vector.load %arg2[%c0_59, %c0_60] : memref<1x32xf32, #tpu.memory_space<vmem>>, vector<1x32xf32>
    %54 = vector.broadcast %53 : vector<1x32xf32> to vector<512x32xf32>
    %55 = arith.addf %52, %54 : vector<512x32xf32>
    %cst_61 = arith.constant 0.000000e+00 : f32
    %56 = vector.broadcast %cst_61 : f32 to vector<512x32xf32>
    %57 = arith.maximumf %55, %56 : vector<512x32xf32>
    %cst_62 = arith.constant 0.000000e+00 : f32
    %58 = vector.broadcast %cst_62 : f32 to vector<72x64xf32>
    %59 = vector.extract_strided_slice %57 {offsets = [0, 0], sizes = [8, 32], strides = [1, 1]} : vector<512x32xf32> to vector<8x32xf32>
    %60 = vector.extract_strided_slice %57 {offsets = [16, 0], sizes = [8, 32], strides = [1, 1]} : vector<512x32xf32> to vector<8x32xf32>
    %61 = vector.extract_strided_slice %57 {offsets = [32, 0], sizes = [8, 32], strides = [1, 1]} : vector<512x32xf32> to vector<8x32xf32>
    %62 = vector.extract_strided_slice %57 {offsets = [128, 0], sizes = [8, 32], strides = [1, 1]} : vector<512x32xf32> to vector<8x32xf32>
    %63 = vector.extract_strided_slice %57 {offsets = [144, 0], sizes = [8, 32], strides = [1, 1]} : vector<512x32xf32> to vector<8x32xf32>
    %64 = vector.extract_strided_slice %57 {offsets = [160, 0], sizes = [8, 32], strides = [1, 1]} : vector<512x32xf32> to vector<8x32xf32>
    %65 = vector.extract_strided_slice %57 {offsets = [256, 0], sizes = [8, 32], strides = [1, 1]} : vector<512x32xf32> to vector<8x32xf32>
    %66 = vector.extract_strided_slice %57 {offsets = [272, 0], sizes = [8, 32], strides = [1, 1]} : vector<512x32xf32> to vector<8x32xf32>
    %67 = vector.extract_strided_slice %57 {offsets = [288, 0], sizes = [8, 32], strides = [1, 1]} : vector<512x32xf32> to vector<8x32xf32>
    %68 = tpu.concatenate %59, %60, %61, %62, %63, %64, %65, %66, %67 in 0 : vector<8x32xf32>, vector<8x32xf32>, vector<8x32xf32>, vector<8x32xf32>, vector<8x32xf32>, vector<8x32xf32>, vector<8x32xf32>, vector<8x32xf32>, vector<8x32xf32> -> vector<72x32xf32>
    %c0_63 = arith.constant 0 : index
    %c0_64 = arith.constant 0 : index
    %c0_65 = arith.constant 0 : index
    %69 = vector.load %arg3[%c0_63, %c0_64, %c0_65] : memref<16x32x64xf32, #tpu.memory_space<vmem>>, vector<1x32x64xf32>
    %70 = vector.shape_cast %69 : vector<1x32x64xf32> to vector<32x64xf32>
    %cst_66 = arith.constant dense<0.000000e+00> : vector<72x64xf32>
    %71 = tpu.matmul %68, %70, %cst_66 {dimension_numbers = #tpu.dot_dimension_numbers<[1], [0], [0], [1], [0, 0, 1, 1], [], []>} : vector<72x32xf32>, vector<32x64xf32>, vector<72x64xf32> -> vector<72x64xf32>
    %72 = arith.addf %58, %71 : vector<72x64xf32>
    %73 = vector.extract_strided_slice %57 {offsets = [8, 0], sizes = [8, 32], strides = [1, 1]} : vector<512x32xf32> to vector<8x32xf32>
    %74 = vector.extract_strided_slice %57 {offsets = [24, 0], sizes = [8, 32], strides = [1, 1]} : vector<512x32xf32> to vector<8x32xf32>
    %75 = vector.extract_strided_slice %57 {offsets = [40, 0], sizes = [8, 32], strides = [1, 1]} : vector<512x32xf32> to vector<8x32xf32>
    %76 = vector.extract_strided_slice %57 {offsets = [136, 0], sizes = [8, 32], strides = [1, 1]} : vector<512x32xf32> to vector<8x32xf32>
    %77 = vector.extract_strided_slice %57 {offsets = [152, 0], sizes = [8, 32], strides = [1, 1]} : vector<512x32xf32> to vector<8x32xf32>
    %78 = vector.extract_strided_slice %57 {offsets = [168, 0], sizes = [8, 32], strides = [1, 1]} : vector<512x32xf32> to vector<8x32xf32>
    %79 = vector.extract_strided_slice %57 {offsets = [264, 0], sizes = [8, 32], strides = [1, 1]} : vector<512x32xf32> to vector<8x32xf32>
    %80 = vector.extract_strided_slice %57 {offsets = [280, 0], sizes = [8, 32], strides = [1, 1]} : vector<512x32xf32> to vector<8x32xf32>
    %81 = vector.extract_strided_slice %57 {offsets = [296, 0], sizes = [8, 32], strides = [1, 1]} : vector<512x32xf32> to vector<8x32xf32>
    %82 = tpu.concatenate %73, %74, %75, %76, %77, %78, %79, %80, %81 in 0 : vector<8x32xf32>, vector<8x32xf32>, vector<8x32xf32>, vector<8x32xf32>, vector<8x32xf32>, vector<8x32xf32>, vector<8x32xf32>, vector<8x32xf32>, vector<8x32xf32> -> vector<72x32xf32>
    %c1_67 = arith.constant 1 : index
    %c0_68 = arith.constant 0 : index
    %c0_69 = arith.constant 0 : index
    %83 = vector.load %arg3[%c1_67, %c0_68, %c0_69] : memref<16x32x64xf32, #tpu.memory_space<vmem>>, vector<1x32x64xf32>
    %84 = vector.shape_cast %83 : vector<1x32x64xf32> to vector<32x64xf32>
    %cst_70 = arith.constant dense<0.000000e+00> : vector<72x64xf32>
    %85 = tpu.matmul %82, %84, %cst_70 {dimension_numbers = #tpu.dot_dimension_numbers<[1], [0], [0], [1], [0, 0, 1, 1], [], []>} : vector<72x32xf32>, vector<32x64xf32>, vector<72x64xf32> -> vector<72x64xf32>
    %86 = arith.addf %72, %85 : vector<72x64xf32>
    %87 = vector.extract_strided_slice %57 {offsets = [16, 0], sizes = [8, 32], strides = [1, 1]} : vector<512x32xf32> to vector<8x32xf32>
    %88 = vector.extract_strided_slice %57 {offsets = [32, 0], sizes = [8, 32], strides = [1, 1]} : vector<512x32xf32> to vector<8x32xf32>
    %89 = vector.extract_strided_slice %57 {offsets = [48, 0], sizes = [8, 32], strides = [1, 1]} : vector<512x32xf32> to vector<8x32xf32>
    %90 = vector.extract_strided_slice %57 {offsets = [144, 0], sizes = [8, 32], strides = [1, 1]} : vector<512x32xf32> to vector<8x32xf32>
    %91 = vector.extract_strided_slice %57 {offsets = [160, 0], sizes = [8, 32], strides = [1, 1]} : vector<512x32xf32> to vector<8x32xf32>
    %92 = vector.extract_strided_slice %57 {offsets = [176, 0], sizes = [8, 32], strides = [1, 1]} : vector<512x32xf32> to vector<8x32xf32>
    %93 = vector.extract_strided_slice %57 {offsets = [272, 0], sizes = [8, 32], strides = [1, 1]} : vector<512x32xf32> to vector<8x32xf32>
    %94 = vector.extract_strided_slice %57 {offsets = [288, 0], sizes = [8, 32], strides = [1, 1]} : vector<512x32xf32> to vector<8x32xf32>
    %95 = vector.extract_strided_slice %57 {offsets = [304, 0], sizes = [8, 32], strides = [1, 1]} : vector<512x32xf32> to vector<8x32xf32>
    %96 = tpu.concatenate %87, %88, %89, %90, %91, %92, %93, %94, %95 in 0 : vector<8x32xf32>, vector<8x32xf32>, vector<8x32xf32>, vector<8x32xf32>, vector<8x32xf32>, vector<8x32xf32>, vector<8x32xf32>, vector<8x32xf32>, vector<8x32xf32> -> vector<72x32xf32>
    %c2_71 = arith.constant 2 : index
    %c0_72 = arith.constant 0 : index
    %c0_73 = arith.constant 0 : index
    %97 = vector.load %arg3[%c2_71, %c0_72, %c0_73] : memref<16x32x64xf32, #tpu.memory_space<vmem>>, vector<1x32x64xf32>
    %98 = vector.shape_cast %97 : vector<1x32x64xf32> to vector<32x64xf32>
    %cst_74 = arith.constant dense<0.000000e+00> : vector<72x64xf32>
    %99 = tpu.matmul %96, %98, %cst_74 {dimension_numbers = #tpu.dot_dimension_numbers<[1], [0], [0], [1], [0, 0, 1, 1], [], []>} : vector<72x32xf32>, vector<32x64xf32>, vector<72x64xf32> -> vector<72x64xf32>
    %100 = arith.addf %86, %99 : vector<72x64xf32>
    %101 = vector.extract_strided_slice %57 {offsets = [24, 0], sizes = [8, 32], strides = [1, 1]} : vector<512x32xf32> to vector<8x32xf32>
    %102 = vector.extract_strided_slice %57 {offsets = [40, 0], sizes = [8, 32], strides = [1, 1]} : vector<512x32xf32> to vector<8x32xf32>
    %103 = vector.extract_strided_slice %57 {offsets = [56, 0], sizes = [8, 32], strides = [1, 1]} : vector<512x32xf32> to vector<8x32xf32>
    %104 = vector.extract_strided_slice %57 {offsets = [152, 0], sizes = [8, 32], strides = [1, 1]} : vector<512x32xf32> to vector<8x32xf32>
    %105 = vector.extract_strided_slice %57 {offsets = [168, 0], sizes = [8, 32], strides = [1, 1]} : vector<512x32xf32> to vector<8x32xf32>
    %106 = vector.extract_strided_slice %57 {offsets = [184, 0], sizes = [8, 32], strides = [1, 1]} : vector<512x32xf32> to vector<8x32xf32>
    %107 = vector.extract_strided_slice %57 {offsets = [280, 0], sizes = [8, 32], strides = [1, 1]} : vector<512x32xf32> to vector<8x32xf32>
    %108 = vector.extract_strided_slice %57 {offsets = [296, 0], sizes = [8, 32], strides = [1, 1]} : vector<512x32xf32> to vector<8x32xf32>
    %109 = vector.extract_strided_slice %57 {offsets = [312, 0], sizes = [8, 32], strides = [1, 1]} : vector<512x32xf32> to vector<8x32xf32>
    %110 = tpu.concatenate %101, %102, %103, %104, %105, %106, %107, %108, %109 in 0 : vector<8x32xf32>, vector<8x32xf32>, vector<8x32xf32>, vector<8x32xf32>, vector<8x32xf32>, vector<8x32xf32>, vector<8x32xf32>, vector<8x32xf32>, vector<8x32xf32> -> vector<72x32xf32>
    %c3_75 = arith.constant 3 : index
    %c0_76 = arith.constant 0 : index
    %c0_77 = arith.constant 0 : index
    %111 = vector.load %arg3[%c3_75, %c0_76, %c0_77] : memref<16x32x64xf32, #tpu.memory_space<vmem>>, vector<1x32x64xf32>
    %112 = vector.shape_cast %111 : vector<1x32x64xf32> to vector<32x64xf32>
    %cst_78 = arith.constant dense<0.000000e+00> : vector<72x64xf32>
    %113 = tpu.matmul %110, %112, %cst_78 {dimension_numbers = #tpu.dot_dimension_numbers<[1], [0], [0], [1], [0, 0, 1, 1], [], []>} : vector<72x32xf32>, vector<32x64xf32>, vector<72x64xf32> -> vector<72x64xf32>
    %114 = arith.addf %100, %113 : vector<72x64xf32>
    %115 = vector.extract_strided_slice %57 {offsets = [64, 0], sizes = [8, 32], strides = [1, 1]} : vector<512x32xf32> to vector<8x32xf32>
    %116 = vector.extract_strided_slice %57 {offsets = [80, 0], sizes = [8, 32], strides = [1, 1]} : vector<512x32xf32> to vector<8x32xf32>
    %117 = vector.extract_strided_slice %57 {offsets = [96, 0], sizes = [8, 32], strides = [1, 1]} : vector<512x32xf32> to vector<8x32xf32>
    %118 = vector.extract_strided_slice %57 {offsets = [192, 0], sizes = [8, 32], strides = [1, 1]} : vector<512x32xf32> to vector<8x32xf32>
    %119 = vector.extract_strided_slice %57 {offsets = [208, 0], sizes = [8, 32], strides = [1, 1]} : vector<512x32xf32> to vector<8x32xf32>
    %120 = vector.extract_strided_slice %57 {offsets = [224, 0], sizes = [8, 32], strides = [1, 1]} : vector<512x32xf32> to vector<8x32xf32>
    %121 = vector.extract_strided_slice %57 {offsets = [320, 0], sizes = [8, 32], strides = [1, 1]} : vector<512x32xf32> to vector<8x32xf32>
    %122 = vector.extract_strided_slice %57 {offsets = [336, 0], sizes = [8, 32], strides = [1, 1]} : vector<512x32xf32> to vector<8x32xf32>
    %123 = vector.extract_strided_slice %57 {offsets = [352, 0], sizes = [8, 32], strides = [1, 1]} : vector<512x32xf32> to vector<8x32xf32>
    %124 = tpu.concatenate %115, %116, %117, %118, %119, %120, %121, %122, %123 in 0 : vector<8x32xf32>, vector<8x32xf32>, vector<8x32xf32>, vector<8x32xf32>, vector<8x32xf32>, vector<8x32xf32>, vector<8x32xf32>, vector<8x32xf32>, vector<8x32xf32> -> vector<72x32xf32>
    %c4 = arith.constant 4 : index
    %c0_79 = arith.constant 0 : index
    %c0_80 = arith.constant 0 : index
    %125 = vector.load %arg3[%c4, %c0_79, %c0_80] : memref<16x32x64xf32, #tpu.memory_space<vmem>>, vector<1x32x64xf32>
    %126 = vector.shape_cast %125 : vector<1x32x64xf32> to vector<32x64xf32>
    %cst_81 = arith.constant dense<0.000000e+00> : vector<72x64xf32>
    %127 = tpu.matmul %124, %126, %cst_81 {dimension_numbers = #tpu.dot_dimension_numbers<[1], [0], [0], [1], [0, 0, 1, 1], [], []>} : vector<72x32xf32>, vector<32x64xf32>, vector<72x64xf32> -> vector<72x64xf32>
    %128 = arith.addf %114, %127 : vector<72x64xf32>
    %129 = vector.extract_strided_slice %57 {offsets = [72, 0], sizes = [8, 32], strides = [1, 1]} : vector<512x32xf32> to vector<8x32xf32>
    %130 = vector.extract_strided_slice %57 {offsets = [88, 0], sizes = [8, 32], strides = [1, 1]} : vector<512x32xf32> to vector<8x32xf32>
    %131 = vector.extract_strided_slice %57 {offsets = [104, 0], sizes = [8, 32], strides = [1, 1]} : vector<512x32xf32> to vector<8x32xf32>
    %132 = vector.extract_strided_slice %57 {offsets = [200, 0], sizes = [8, 32], strides = [1, 1]} : vector<512x32xf32> to vector<8x32xf32>
    %133 = vector.extract_strided_slice %57 {offsets = [216, 0], sizes = [8, 32], strides = [1, 1]} : vector<512x32xf32> to vector<8x32xf32>
    %134 = vector.extract_strided_slice %57 {offsets = [232, 0], sizes = [8, 32], strides = [1, 1]} : vector<512x32xf32> to vector<8x32xf32>
    %135 = vector.extract_strided_slice %57 {offsets = [328, 0], sizes = [8, 32], strides = [1, 1]} : vector<512x32xf32> to vector<8x32xf32>
    %136 = vector.extract_strided_slice %57 {offsets = [344, 0], sizes = [8, 32], strides = [1, 1]} : vector<512x32xf32> to vector<8x32xf32>
    %137 = vector.extract_strided_slice %57 {offsets = [360, 0], sizes = [8, 32], strides = [1, 1]} : vector<512x32xf32> to vector<8x32xf32>
    %138 = tpu.concatenate %129, %130, %131, %132, %133, %134, %135, %136, %137 in 0 : vector<8x32xf32>, vector<8x32xf32>, vector<8x32xf32>, vector<8x32xf32>, vector<8x32xf32>, vector<8x32xf32>, vector<8x32xf32>, vector<8x32xf32>, vector<8x32xf32> -> vector<72x32xf32>
    %c5 = arith.constant 5 : index
    %c0_82 = arith.constant 0 : index
    %c0_83 = arith.constant 0 : index
    %139 = vector.load %arg3[%c5, %c0_82, %c0_83] : memref<16x32x64xf32, #tpu.memory_space<vmem>>, vector<1x32x64xf32>
    %140 = vector.shape_cast %139 : vector<1x32x64xf32> to vector<32x64xf32>
    %cst_84 = arith.constant dense<0.000000e+00> : vector<72x64xf32>
    %141 = tpu.matmul %138, %140, %cst_84 {dimension_numbers = #tpu.dot_dimension_numbers<[1], [0], [0], [1], [0, 0, 1, 1], [], []>} : vector<72x32xf32>, vector<32x64xf32>, vector<72x64xf32> -> vector<72x64xf32>
    %142 = arith.addf %128, %141 : vector<72x64xf32>
    %143 = vector.extract_strided_slice %57 {offsets = [80, 0], sizes = [8, 32], strides = [1, 1]} : vector<512x32xf32> to vector<8x32xf32>
    %144 = vector.extract_strided_slice %57 {offsets = [96, 0], sizes = [8, 32], strides = [1, 1]} : vector<512x32xf32> to vector<8x32xf32>
    %145 = vector.extract_strided_slice %57 {offsets = [112, 0], sizes = [8, 32], strides = [1, 1]} : vector<512x32xf32> to vector<8x32xf32>
    %146 = vector.extract_strided_slice %57 {offsets = [208, 0], sizes = [8, 32], strides = [1, 1]} : vector<512x32xf32> to vector<8x32xf32>
    %147 = vector.extract_strided_slice %57 {offsets = [224, 0], sizes = [8, 32], strides = [1, 1]} : vector<512x32xf32> to vector<8x32xf32>
    %148 = vector.extract_strided_slice %57 {offsets = [240, 0], sizes = [8, 32], strides = [1, 1]} : vector<512x32xf32> to vector<8x32xf32>
    %149 = vector.extract_strided_slice %57 {offsets = [336, 0], sizes = [8, 32], strides = [1, 1]} : vector<512x32xf32> to vector<8x32xf32>
    %150 = vector.extract_strided_slice %57 {offsets = [352, 0], sizes = [8, 32], strides = [1, 1]} : vector<512x32xf32> to vector<8x32xf32>
    %151 = vector.extract_strided_slice %57 {offsets = [368, 0], sizes = [8, 32], strides = [1, 1]} : vector<512x32xf32> to vector<8x32xf32>
    %152 = tpu.concatenate %143, %144, %145, %146, %147, %148, %149, %150, %151 in 0 : vector<8x32xf32>, vector<8x32xf32>, vector<8x32xf32>, vector<8x32xf32>, vector<8x32xf32>, vector<8x32xf32>, vector<8x32xf32>, vector<8x32xf32>, vector<8x32xf32> -> vector<72x32xf32>
    %c6 = arith.constant 6 : index
    %c0_85 = arith.constant 0 : index
    %c0_86 = arith.constant 0 : index
    %153 = vector.load %arg3[%c6, %c0_85, %c0_86] : memref<16x32x64xf32, #tpu.memory_space<vmem>>, vector<1x32x64xf32>
    %154 = vector.shape_cast %153 : vector<1x32x64xf32> to vector<32x64xf32>
    %cst_87 = arith.constant dense<0.000000e+00> : vector<72x64xf32>
    %155 = tpu.matmul %152, %154, %cst_87 {dimension_numbers = #tpu.dot_dimension_numbers<[1], [0], [0], [1], [0, 0, 1, 1], [], []>} : vector<72x32xf32>, vector<32x64xf32>, vector<72x64xf32> -> vector<72x64xf32>
    %156 = arith.addf %142, %155 : vector<72x64xf32>
    %157 = vector.extract_strided_slice %57 {offsets = [88, 0], sizes = [8, 32], strides = [1, 1]} : vector<512x32xf32> to vector<8x32xf32>
    %158 = vector.extract_strided_slice %57 {offsets = [104, 0], sizes = [8, 32], strides = [1, 1]} : vector<512x32xf32> to vector<8x32xf32>
    %159 = vector.extract_strided_slice %57 {offsets = [120, 0], sizes = [8, 32], strides = [1, 1]} : vector<512x32xf32> to vector<8x32xf32>
    %160 = vector.extract_strided_slice %57 {offsets = [216, 0], sizes = [8, 32], strides = [1, 1]} : vector<512x32xf32> to vector<8x32xf32>
    %161 = vector.extract_strided_slice %57 {offsets = [232, 0], sizes = [8, 32], strides = [1, 1]} : vector<512x32xf32> to vector<8x32xf32>
    %162 = vector.extract_strided_slice %57 {offsets = [248, 0], sizes = [8, 32], strides = [1, 1]} : vector<512x32xf32> to vector<8x32xf32>
    %163 = vector.extract_strided_slice %57 {offsets = [344, 0], sizes = [8, 32], strides = [1, 1]} : vector<512x32xf32> to vector<8x32xf32>
    %164 = vector.extract_strided_slice %57 {offsets = [360, 0], sizes = [8, 32], strides = [1, 1]} : vector<512x32xf32> to vector<8x32xf32>
    %165 = vector.extract_strided_slice %57 {offsets = [376, 0], sizes = [8, 32], strides = [1, 1]} : vector<512x32xf32> to vector<8x32xf32>
    %166 = tpu.concatenate %157, %158, %159, %160, %161, %162, %163, %164, %165 in 0 : vector<8x32xf32>, vector<8x32xf32>, vector<8x32xf32>, vector<8x32xf32>, vector<8x32xf32>, vector<8x32xf32>, vector<8x32xf32>, vector<8x32xf32>, vector<8x32xf32> -> vector<72x32xf32>
    %c7 = arith.constant 7 : index
    %c0_88 = arith.constant 0 : index
    %c0_89 = arith.constant 0 : index
    %167 = vector.load %arg3[%c7, %c0_88, %c0_89] : memref<16x32x64xf32, #tpu.memory_space<vmem>>, vector<1x32x64xf32>
    %168 = vector.shape_cast %167 : vector<1x32x64xf32> to vector<32x64xf32>
    %cst_90 = arith.constant dense<0.000000e+00> : vector<72x64xf32>
    %169 = tpu.matmul %166, %168, %cst_90 {dimension_numbers = #tpu.dot_dimension_numbers<[1], [0], [0], [1], [0, 0, 1, 1], [], []>} : vector<72x32xf32>, vector<32x64xf32>, vector<72x64xf32> -> vector<72x64xf32>
    %170 = arith.addf %156, %169 : vector<72x64xf32>
    %171 = vector.extract_strided_slice %57 {offsets = [128, 0], sizes = [8, 32], strides = [1, 1]} : vector<512x32xf32> to vector<8x32xf32>
    %172 = vector.extract_strided_slice %57 {offsets = [144, 0], sizes = [8, 32], strides = [1, 1]} : vector<512x32xf32> to vector<8x32xf32>
    %173 = vector.extract_strided_slice %57 {offsets = [160, 0], sizes = [8, 32], strides = [1, 1]} : vector<512x32xf32> to vector<8x32xf32>
    %174 = vector.extract_strided_slice %57 {offsets = [256, 0], sizes = [8, 32], strides = [1, 1]} : vector<512x32xf32> to vector<8x32xf32>
    %175 = vector.extract_strided_slice %57 {offsets = [272, 0], sizes = [8, 32], strides = [1, 1]} : vector<512x32xf32> to vector<8x32xf32>
    %176 = vector.extract_strided_slice %57 {offsets = [288, 0], sizes = [8, 32], strides = [1, 1]} : vector<512x32xf32> to vector<8x32xf32>
    %177 = vector.extract_strided_slice %57 {offsets = [384, 0], sizes = [8, 32], strides = [1, 1]} : vector<512x32xf32> to vector<8x32xf32>
    %178 = vector.extract_strided_slice %57 {offsets = [400, 0], sizes = [8, 32], strides = [1, 1]} : vector<512x32xf32> to vector<8x32xf32>
    %179 = vector.extract_strided_slice %57 {offsets = [416, 0], sizes = [8, 32], strides = [1, 1]} : vector<512x32xf32> to vector<8x32xf32>
    %180 = tpu.concatenate %171, %172, %173, %174, %175, %176, %177, %178, %179 in 0 : vector<8x32xf32>, vector<8x32xf32>, vector<8x32xf32>, vector<8x32xf32>, vector<8x32xf32>, vector<8x32xf32>, vector<8x32xf32>, vector<8x32xf32>, vector<8x32xf32> -> vector<72x32xf32>
    %c8_91 = arith.constant 8 : index
    %c0_92 = arith.constant 0 : index
    %c0_93 = arith.constant 0 : index
    %181 = vector.load %arg3[%c8_91, %c0_92, %c0_93] : memref<16x32x64xf32, #tpu.memory_space<vmem>>, vector<1x32x64xf32>
    %182 = vector.shape_cast %181 : vector<1x32x64xf32> to vector<32x64xf32>
    %cst_94 = arith.constant dense<0.000000e+00> : vector<72x64xf32>
    %183 = tpu.matmul %180, %182, %cst_94 {dimension_numbers = #tpu.dot_dimension_numbers<[1], [0], [0], [1], [0, 0, 1, 1], [], []>} : vector<72x32xf32>, vector<32x64xf32>, vector<72x64xf32> -> vector<72x64xf32>
    %184 = arith.addf %170, %183 : vector<72x64xf32>
    %185 = vector.extract_strided_slice %57 {offsets = [136, 0], sizes = [8, 32], strides = [1, 1]} : vector<512x32xf32> to vector<8x32xf32>
    %186 = vector.extract_strided_slice %57 {offsets = [152, 0], sizes = [8, 32], strides = [1, 1]} : vector<512x32xf32> to vector<8x32xf32>
    %187 = vector.extract_strided_slice %57 {offsets = [168, 0], sizes = [8, 32], strides = [1, 1]} : vector<512x32xf32> to vector<8x32xf32>
    %188 = vector.extract_strided_slice %57 {offsets = [264, 0], sizes = [8, 32], strides = [1, 1]} : vector<512x32xf32> to vector<8x32xf32>
    %189 = vector.extract_strided_slice %57 {offsets = [280, 0], sizes = [8, 32], strides = [1, 1]} : vector<512x32xf32> to vector<8x32xf32>
    %190 = vector.extract_strided_slice %57 {offsets = [296, 0], sizes = [8, 32], strides = [1, 1]} : vector<512x32xf32> to vector<8x32xf32>
    %191 = vector.extract_strided_slice %57 {offsets = [392, 0], sizes = [8, 32], strides = [1, 1]} : vector<512x32xf32> to vector<8x32xf32>
    %192 = vector.extract_strided_slice %57 {offsets = [408, 0], sizes = [8, 32], strides = [1, 1]} : vector<512x32xf32> to vector<8x32xf32>
    %193 = vector.extract_strided_slice %57 {offsets = [424, 0], sizes = [8, 32], strides = [1, 1]} : vector<512x32xf32> to vector<8x32xf32>
    %194 = tpu.concatenate %185, %186, %187, %188, %189, %190, %191, %192, %193 in 0 : vector<8x32xf32>, vector<8x32xf32>, vector<8x32xf32>, vector<8x32xf32>, vector<8x32xf32>, vector<8x32xf32>, vector<8x32xf32>, vector<8x32xf32>, vector<8x32xf32> -> vector<72x32xf32>
    %c9 = arith.constant 9 : index
    %c0_95 = arith.constant 0 : index
    %c0_96 = arith.constant 0 : index
    %195 = vector.load %arg3[%c9, %c0_95, %c0_96] : memref<16x32x64xf32, #tpu.memory_space<vmem>>, vector<1x32x64xf32>
    %196 = vector.shape_cast %195 : vector<1x32x64xf32> to vector<32x64xf32>
    %cst_97 = arith.constant dense<0.000000e+00> : vector<72x64xf32>
    %197 = tpu.matmul %194, %196, %cst_97 {dimension_numbers = #tpu.dot_dimension_numbers<[1], [0], [0], [1], [0, 0, 1, 1], [], []>} : vector<72x32xf32>, vector<32x64xf32>, vector<72x64xf32> -> vector<72x64xf32>
    %198 = arith.addf %184, %197 : vector<72x64xf32>
    %199 = vector.extract_strided_slice %57 {offsets = [144, 0], sizes = [8, 32], strides = [1, 1]} : vector<512x32xf32> to vector<8x32xf32>
    %200 = vector.extract_strided_slice %57 {offsets = [160, 0], sizes = [8, 32], strides = [1, 1]} : vector<512x32xf32> to vector<8x32xf32>
    %201 = vector.extract_strided_slice %57 {offsets = [176, 0], sizes = [8, 32], strides = [1, 1]} : vector<512x32xf32> to vector<8x32xf32>
    %202 = vector.extract_strided_slice %57 {offsets = [272, 0], sizes = [8, 32], strides = [1, 1]} : vector<512x32xf32> to vector<8x32xf32>
    %203 = vector.extract_strided_slice %57 {offsets = [288, 0], sizes = [8, 32], strides = [1, 1]} : vector<512x32xf32> to vector<8x32xf32>
    %204 = vector.extract_strided_slice %57 {offsets = [304, 0], sizes = [8, 32], strides = [1, 1]} : vector<512x32xf32> to vector<8x32xf32>
    %205 = vector.extract_strided_slice %57 {offsets = [400, 0], sizes = [8, 32], strides = [1, 1]} : vector<512x32xf32> to vector<8x32xf32>
    %206 = vector.extract_strided_slice %57 {offsets = [416, 0], sizes = [8, 32], strides = [1, 1]} : vector<512x32xf32> to vector<8x32xf32>
    %207 = vector.extract_strided_slice %57 {offsets = [432, 0], sizes = [8, 32], strides = [1, 1]} : vector<512x32xf32> to vector<8x32xf32>
    %208 = tpu.concatenate %199, %200, %201, %202, %203, %204, %205, %206, %207 in 0 : vector<8x32xf32>, vector<8x32xf32>, vector<8x32xf32>, vector<8x32xf32>, vector<8x32xf32>, vector<8x32xf32>, vector<8x32xf32>, vector<8x32xf32>, vector<8x32xf32> -> vector<72x32xf32>
    %c10 = arith.constant 10 : index
    %c0_98 = arith.constant 0 : index
    %c0_99 = arith.constant 0 : index
    %209 = vector.load %arg3[%c10, %c0_98, %c0_99] : memref<16x32x64xf32, #tpu.memory_space<vmem>>, vector<1x32x64xf32>
    %210 = vector.shape_cast %209 : vector<1x32x64xf32> to vector<32x64xf32>
    %cst_100 = arith.constant dense<0.000000e+00> : vector<72x64xf32>
    %211 = tpu.matmul %208, %210, %cst_100 {dimension_numbers = #tpu.dot_dimension_numbers<[1], [0], [0], [1], [0, 0, 1, 1], [], []>} : vector<72x32xf32>, vector<32x64xf32>, vector<72x64xf32> -> vector<72x64xf32>
    %212 = arith.addf %198, %211 : vector<72x64xf32>
    %213 = vector.extract_strided_slice %57 {offsets = [152, 0], sizes = [8, 32], strides = [1, 1]} : vector<512x32xf32> to vector<8x32xf32>
    %214 = vector.extract_strided_slice %57 {offsets = [168, 0], sizes = [8, 32], strides = [1, 1]} : vector<512x32xf32> to vector<8x32xf32>
    %215 = vector.extract_strided_slice %57 {offsets = [184, 0], sizes = [8, 32], strides = [1, 1]} : vector<512x32xf32> to vector<8x32xf32>
    %216 = vector.extract_strided_slice %57 {offsets = [280, 0], sizes = [8, 32], strides = [1, 1]} : vector<512x32xf32> to vector<8x32xf32>
    %217 = vector.extract_strided_slice %57 {offsets = [296, 0], sizes = [8, 32], strides = [1, 1]} : vector<512x32xf32> to vector<8x32xf32>
    %218 = vector.extract_strided_slice %57 {offsets = [312, 0], sizes = [8, 32], strides = [1, 1]} : vector<512x32xf32> to vector<8x32xf32>
    %219 = vector.extract_strided_slice %57 {offsets = [408, 0], sizes = [8, 32], strides = [1, 1]} : vector<512x32xf32> to vector<8x32xf32>
    %220 = vector.extract_strided_slice %57 {offsets = [424, 0], sizes = [8, 32], strides = [1, 1]} : vector<512x32xf32> to vector<8x32xf32>
    %221 = vector.extract_strided_slice %57 {offsets = [440, 0], sizes = [8, 32], strides = [1, 1]} : vector<512x32xf32> to vector<8x32xf32>
    %222 = tpu.concatenate %213, %214, %215, %216, %217, %218, %219, %220, %221 in 0 : vector<8x32xf32>, vector<8x32xf32>, vector<8x32xf32>, vector<8x32xf32>, vector<8x32xf32>, vector<8x32xf32>, vector<8x32xf32>, vector<8x32xf32>, vector<8x32xf32> -> vector<72x32xf32>
    %c11 = arith.constant 11 : index
    %c0_101 = arith.constant 0 : index
    %c0_102 = arith.constant 0 : index
    %223 = vector.load %arg3[%c11, %c0_101, %c0_102] : memref<16x32x64xf32, #tpu.memory_space<vmem>>, vector<1x32x64xf32>
    %224 = vector.shape_cast %223 : vector<1x32x64xf32> to vector<32x64xf32>
    %cst_103 = arith.constant dense<0.000000e+00> : vector<72x64xf32>
    %225 = tpu.matmul %222, %224, %cst_103 {dimension_numbers = #tpu.dot_dimension_numbers<[1], [0], [0], [1], [0, 0, 1, 1], [], []>} : vector<72x32xf32>, vector<32x64xf32>, vector<72x64xf32> -> vector<72x64xf32>
    %226 = arith.addf %212, %225 : vector<72x64xf32>
    %227 = vector.extract_strided_slice %57 {offsets = [192, 0], sizes = [8, 32], strides = [1, 1]} : vector<512x32xf32> to vector<8x32xf32>
    %228 = vector.extract_strided_slice %57 {offsets = [208, 0], sizes = [8, 32], strides = [1, 1]} : vector<512x32xf32> to vector<8x32xf32>
    %229 = vector.extract_strided_slice %57 {offsets = [224, 0], sizes = [8, 32], strides = [1, 1]} : vector<512x32xf32> to vector<8x32xf32>
    %230 = vector.extract_strided_slice %57 {offsets = [320, 0], sizes = [8, 32], strides = [1, 1]} : vector<512x32xf32> to vector<8x32xf32>
    %231 = vector.extract_strided_slice %57 {offsets = [336, 0], sizes = [8, 32], strides = [1, 1]} : vector<512x32xf32> to vector<8x32xf32>
    %232 = vector.extract_strided_slice %57 {offsets = [352, 0], sizes = [8, 32], strides = [1, 1]} : vector<512x32xf32> to vector<8x32xf32>
    %233 = vector.extract_strided_slice %57 {offsets = [448, 0], sizes = [8, 32], strides = [1, 1]} : vector<512x32xf32> to vector<8x32xf32>
    %234 = vector.extract_strided_slice %57 {offsets = [464, 0], sizes = [8, 32], strides = [1, 1]} : vector<512x32xf32> to vector<8x32xf32>
    %235 = vector.extract_strided_slice %57 {offsets = [480, 0], sizes = [8, 32], strides = [1, 1]} : vector<512x32xf32> to vector<8x32xf32>
    %236 = tpu.concatenate %227, %228, %229, %230, %231, %232, %233, %234, %235 in 0 : vector<8x32xf32>, vector<8x32xf32>, vector<8x32xf32>, vector<8x32xf32>, vector<8x32xf32>, vector<8x32xf32>, vector<8x32xf32>, vector<8x32xf32>, vector<8x32xf32> -> vector<72x32xf32>
    %c12 = arith.constant 12 : index
    %c0_104 = arith.constant 0 : index
    %c0_105 = arith.constant 0 : index
    %237 = vector.load %arg3[%c12, %c0_104, %c0_105] : memref<16x32x64xf32, #tpu.memory_space<vmem>>, vector<1x32x64xf32>
    %238 = vector.shape_cast %237 : vector<1x32x64xf32> to vector<32x64xf32>
    %cst_106 = arith.constant dense<0.000000e+00> : vector<72x64xf32>
    %239 = tpu.matmul %236, %238, %cst_106 {dimension_numbers = #tpu.dot_dimension_numbers<[1], [0], [0], [1], [0, 0, 1, 1], [], []>} : vector<72x32xf32>, vector<32x64xf32>, vector<72x64xf32> -> vector<72x64xf32>
    %240 = arith.addf %226, %239 : vector<72x64xf32>
    %241 = vector.extract_strided_slice %57 {offsets = [200, 0], sizes = [8, 32], strides = [1, 1]} : vector<512x32xf32> to vector<8x32xf32>
    %242 = vector.extract_strided_slice %57 {offsets = [216, 0], sizes = [8, 32], strides = [1, 1]} : vector<512x32xf32> to vector<8x32xf32>
    %243 = vector.extract_strided_slice %57 {offsets = [232, 0], sizes = [8, 32], strides = [1, 1]} : vector<512x32xf32> to vector<8x32xf32>
    %244 = vector.extract_strided_slice %57 {offsets = [328, 0], sizes = [8, 32], strides = [1, 1]} : vector<512x32xf32> to vector<8x32xf32>
    %245 = vector.extract_strided_slice %57 {offsets = [344, 0], sizes = [8, 32], strides = [1, 1]} : vector<512x32xf32> to vector<8x32xf32>
    %246 = vector.extract_strided_slice %57 {offsets = [360, 0], sizes = [8, 32], strides = [1, 1]} : vector<512x32xf32> to vector<8x32xf32>
    %247 = vector.extract_strided_slice %57 {offsets = [456, 0], sizes = [8, 32], strides = [1, 1]} : vector<512x32xf32> to vector<8x32xf32>
    %248 = vector.extract_strided_slice %57 {offsets = [472, 0], sizes = [8, 32], strides = [1, 1]} : vector<512x32xf32> to vector<8x32xf32>
    %249 = vector.extract_strided_slice %57 {offsets = [488, 0], sizes = [8, 32], strides = [1, 1]} : vector<512x32xf32> to vector<8x32xf32>
    %250 = tpu.concatenate %241, %242, %243, %244, %245, %246, %247, %248, %249 in 0 : vector<8x32xf32>, vector<8x32xf32>, vector<8x32xf32>, vector<8x32xf32>, vector<8x32xf32>, vector<8x32xf32>, vector<8x32xf32>, vector<8x32xf32>, vector<8x32xf32> -> vector<72x32xf32>
    %c13 = arith.constant 13 : index
    %c0_107 = arith.constant 0 : index
    %c0_108 = arith.constant 0 : index
    %251 = vector.load %arg3[%c13, %c0_107, %c0_108] : memref<16x32x64xf32, #tpu.memory_space<vmem>>, vector<1x32x64xf32>
    %252 = vector.shape_cast %251 : vector<1x32x64xf32> to vector<32x64xf32>
    %cst_109 = arith.constant dense<0.000000e+00> : vector<72x64xf32>
    %253 = tpu.matmul %250, %252, %cst_109 {dimension_numbers = #tpu.dot_dimension_numbers<[1], [0], [0], [1], [0, 0, 1, 1], [], []>} : vector<72x32xf32>, vector<32x64xf32>, vector<72x64xf32> -> vector<72x64xf32>
    %254 = arith.addf %240, %253 : vector<72x64xf32>
    %255 = vector.extract_strided_slice %57 {offsets = [208, 0], sizes = [8, 32], strides = [1, 1]} : vector<512x32xf32> to vector<8x32xf32>
    %256 = vector.extract_strided_slice %57 {offsets = [224, 0], sizes = [8, 32], strides = [1, 1]} : vector<512x32xf32> to vector<8x32xf32>
    %257 = vector.extract_strided_slice %57 {offsets = [240, 0], sizes = [8, 32], strides = [1, 1]} : vector<512x32xf32> to vector<8x32xf32>
    %258 = vector.extract_strided_slice %57 {offsets = [336, 0], sizes = [8, 32], strides = [1, 1]} : vector<512x32xf32> to vector<8x32xf32>
    %259 = vector.extract_strided_slice %57 {offsets = [352, 0], sizes = [8, 32], strides = [1, 1]} : vector<512x32xf32> to vector<8x32xf32>
    %260 = vector.extract_strided_slice %57 {offsets = [368, 0], sizes = [8, 32], strides = [1, 1]} : vector<512x32xf32> to vector<8x32xf32>
    %261 = vector.extract_strided_slice %57 {offsets = [464, 0], sizes = [8, 32], strides = [1, 1]} : vector<512x32xf32> to vector<8x32xf32>
    %262 = vector.extract_strided_slice %57 {offsets = [480, 0], sizes = [8, 32], strides = [1, 1]} : vector<512x32xf32> to vector<8x32xf32>
    %263 = vector.extract_strided_slice %57 {offsets = [496, 0], sizes = [8, 32], strides = [1, 1]} : vector<512x32xf32> to vector<8x32xf32>
    %264 = tpu.concatenate %255, %256, %257, %258, %259, %260, %261, %262, %263 in 0 : vector<8x32xf32>, vector<8x32xf32>, vector<8x32xf32>, vector<8x32xf32>, vector<8x32xf32>, vector<8x32xf32>, vector<8x32xf32>, vector<8x32xf32>, vector<8x32xf32> -> vector<72x32xf32>
    %c14 = arith.constant 14 : index
    %c0_110 = arith.constant 0 : index
    %c0_111 = arith.constant 0 : index
    %265 = vector.load %arg3[%c14, %c0_110, %c0_111] : memref<16x32x64xf32, #tpu.memory_space<vmem>>, vector<1x32x64xf32>
    %266 = vector.shape_cast %265 : vector<1x32x64xf32> to vector<32x64xf32>
    %cst_112 = arith.constant dense<0.000000e+00> : vector<72x64xf32>
    %267 = tpu.matmul %264, %266, %cst_112 {dimension_numbers = #tpu.dot_dimension_numbers<[1], [0], [0], [1], [0, 0, 1, 1], [], []>} : vector<72x32xf32>, vector<32x64xf32>, vector<72x64xf32> -> vector<72x64xf32>
    %268 = arith.addf %254, %267 : vector<72x64xf32>
    %269 = vector.extract_strided_slice %57 {offsets = [216, 0], sizes = [8, 32], strides = [1, 1]} : vector<512x32xf32> to vector<8x32xf32>
    %270 = vector.extract_strided_slice %57 {offsets = [232, 0], sizes = [8, 32], strides = [1, 1]} : vector<512x32xf32> to vector<8x32xf32>
    %271 = vector.extract_strided_slice %57 {offsets = [248, 0], sizes = [8, 32], strides = [1, 1]} : vector<512x32xf32> to vector<8x32xf32>
    %272 = vector.extract_strided_slice %57 {offsets = [344, 0], sizes = [8, 32], strides = [1, 1]} : vector<512x32xf32> to vector<8x32xf32>
    %273 = vector.extract_strided_slice %57 {offsets = [360, 0], sizes = [8, 32], strides = [1, 1]} : vector<512x32xf32> to vector<8x32xf32>
    %274 = vector.extract_strided_slice %57 {offsets = [376, 0], sizes = [8, 32], strides = [1, 1]} : vector<512x32xf32> to vector<8x32xf32>
    %275 = vector.extract_strided_slice %57 {offsets = [472, 0], sizes = [8, 32], strides = [1, 1]} : vector<512x32xf32> to vector<8x32xf32>
    %276 = vector.extract_strided_slice %57 {offsets = [488, 0], sizes = [8, 32], strides = [1, 1]} : vector<512x32xf32> to vector<8x32xf32>
    %277 = vector.extract_strided_slice %57 {offsets = [504, 0], sizes = [8, 32], strides = [1, 1]} : vector<512x32xf32> to vector<8x32xf32>
    %278 = tpu.concatenate %269, %270, %271, %272, %273, %274, %275, %276, %277 in 0 : vector<8x32xf32>, vector<8x32xf32>, vector<8x32xf32>, vector<8x32xf32>, vector<8x32xf32>, vector<8x32xf32>, vector<8x32xf32>, vector<8x32xf32>, vector<8x32xf32> -> vector<72x32xf32>
    %c15 = arith.constant 15 : index
    %c0_113 = arith.constant 0 : index
    %c0_114 = arith.constant 0 : index
    %279 = vector.load %arg3[%c15, %c0_113, %c0_114] : memref<16x32x64xf32, #tpu.memory_space<vmem>>, vector<1x32x64xf32>
    %280 = vector.shape_cast %279 : vector<1x32x64xf32> to vector<32x64xf32>
    %cst_115 = arith.constant dense<0.000000e+00> : vector<72x64xf32>
    %281 = tpu.matmul %278, %280, %cst_115 {dimension_numbers = #tpu.dot_dimension_numbers<[1], [0], [0], [1], [0, 0, 1, 1], [], []>} : vector<72x32xf32>, vector<32x64xf32>, vector<72x64xf32> -> vector<72x64xf32>
    %282 = arith.addf %268, %281 : vector<72x64xf32>
    %c0_116 = arith.constant 0 : index
    %c0_117 = arith.constant 0 : index
    %283 = vector.load %arg4[%c0_116, %c0_117] : memref<1x64xf32, #tpu.memory_space<vmem>>, vector<1x64xf32>
    %284 = vector.broadcast %283 : vector<1x64xf32> to vector<72x64xf32>
    %285 = arith.addf %282, %284 : vector<72x64xf32>
    %cst_118 = arith.constant 0.000000e+00 : f32
    %286 = vector.broadcast %cst_118 : f32 to vector<72x64xf32>
    %287 = arith.maximumf %285, %286 : vector<72x64xf32>
    %cst_119 = arith.constant 0.000000e+00 : f32
    %288 = vector.broadcast %cst_119 : f32 to vector<8x64xf32>
    %289 = vector.extract_strided_slice %287 {offsets = [0, 0], sizes = [8, 64], strides = [1, 1]} : vector<72x64xf32> to vector<8x64xf32>
    %c0_120 = arith.constant 0 : index
    %c0_121 = arith.constant 0 : index
    %c0_122 = arith.constant 0 : index
    %290 = vector.load %arg5[%c0_120, %c0_121, %c0_122] : memref<9x64x64xf32, #tpu.memory_space<vmem>>, vector<1x64x64xf32>
    %291 = vector.shape_cast %290 : vector<1x64x64xf32> to vector<64x64xf32>
    %cst_123 = arith.constant dense<0.000000e+00> : vector<8x64xf32>
    %292 = tpu.matmul %289, %291, %cst_123 {dimension_numbers = #tpu.dot_dimension_numbers<[1], [0], [0], [1], [0, 0, 1, 1], [], []>} : vector<8x64xf32>, vector<64x64xf32>, vector<8x64xf32> -> vector<8x64xf32>
    %293 = arith.addf %288, %292 : vector<8x64xf32>
    %294 = vector.extract_strided_slice %287 {offsets = [8, 0], sizes = [8, 64], strides = [1, 1]} : vector<72x64xf32> to vector<8x64xf32>
    %c1_124 = arith.constant 1 : index
    %c0_125 = arith.constant 0 : index
    %c0_126 = arith.constant 0 : index
    %295 = vector.load %arg5[%c1_124, %c0_125, %c0_126] : memref<9x64x64xf32, #tpu.memory_space<vmem>>, vector<1x64x64xf32>
    %296 = vector.shape_cast %295 : vector<1x64x64xf32> to vector<64x64xf32>
    %cst_127 = arith.constant dense<0.000000e+00> : vector<8x64xf32>
    %297 = tpu.matmul %294, %296, %cst_127 {dimension_numbers = #tpu.dot_dimension_numbers<[1], [0], [0], [1], [0, 0, 1, 1], [], []>} : vector<8x64xf32>, vector<64x64xf32>, vector<8x64xf32> -> vector<8x64xf32>
    %298 = arith.addf %293, %297 : vector<8x64xf32>
    %299 = vector.extract_strided_slice %287 {offsets = [16, 0], sizes = [8, 64], strides = [1, 1]} : vector<72x64xf32> to vector<8x64xf32>
    %c2_128 = arith.constant 2 : index
    %c0_129 = arith.constant 0 : index
    %c0_130 = arith.constant 0 : index
    %300 = vector.load %arg5[%c2_128, %c0_129, %c0_130] : memref<9x64x64xf32, #tpu.memory_space<vmem>>, vector<1x64x64xf32>
    %301 = vector.shape_cast %300 : vector<1x64x64xf32> to vector<64x64xf32>
    %cst_131 = arith.constant dense<0.000000e+00> : vector<8x64xf32>
    %302 = tpu.matmul %299, %301, %cst_131 {dimension_numbers = #tpu.dot_dimension_numbers<[1], [0], [0], [1], [0, 0, 1, 1], [], []>} : vector<8x64xf32>, vector<64x64xf32>, vector<8x64xf32> -> vector<8x64xf32>
    %303 = arith.addf %298, %302 : vector<8x64xf32>
    %304 = vector.extract_strided_slice %287 {offsets = [24, 0], sizes = [8, 64], strides = [1, 1]} : vector<72x64xf32> to vector<8x64xf32>
    %c3_132 = arith.constant 3 : index
    %c0_133 = arith.constant 0 : index
    %c0_134 = arith.constant 0 : index
    %305 = vector.load %arg5[%c3_132, %c0_133, %c0_134] : memref<9x64x64xf32, #tpu.memory_space<vmem>>, vector<1x64x64xf32>
    %306 = vector.shape_cast %305 : vector<1x64x64xf32> to vector<64x64xf32>
    %cst_135 = arith.constant dense<0.000000e+00> : vector<8x64xf32>
    %307 = tpu.matmul %304, %306, %cst_135 {dimension_numbers = #tpu.dot_dimension_numbers<[1], [0], [0], [1], [0, 0, 1, 1], [], []>} : vector<8x64xf32>, vector<64x64xf32>, vector<8x64xf32> -> vector<8x64xf32>
    %308 = arith.addf %303, %307 : vector<8x64xf32>
    %309 = vector.extract_strided_slice %287 {offsets = [32, 0], sizes = [8, 64], strides = [1, 1]} : vector<72x64xf32> to vector<8x64xf32>
    %c4_136 = arith.constant 4 : index
    %c0_137 = arith.constant 0 : index
    %c0_138 = arith.constant 0 : index
    %310 = vector.load %arg5[%c4_136, %c0_137, %c0_138] : memref<9x64x64xf32, #tpu.memory_space<vmem>>, vector<1x64x64xf32>
    %311 = vector.shape_cast %310 : vector<1x64x64xf32> to vector<64x64xf32>
    %cst_139 = arith.constant dense<0.000000e+00> : vector<8x64xf32>
    %312 = tpu.matmul %309, %311, %cst_139 {dimension_numbers = #tpu.dot_dimension_numbers<[1], [0], [0], [1], [0, 0, 1, 1], [], []>} : vector<8x64xf32>, vector<64x64xf32>, vector<8x64xf32> -> vector<8x64xf32>
    %313 = arith.addf %308, %312 : vector<8x64xf32>
    %314 = vector.extract_strided_slice %287 {offsets = [40, 0], sizes = [8, 64], strides = [1, 1]} : vector<72x64xf32> to vector<8x64xf32>
    %c5_140 = arith.constant 5 : index
    %c0_141 = arith.constant 0 : index
    %c0_142 = arith.constant 0 : index
    %315 = vector.load %arg5[%c5_140, %c0_141, %c0_142] : memref<9x64x64xf32, #tpu.memory_space<vmem>>, vector<1x64x64xf32>
    %316 = vector.shape_cast %315 : vector<1x64x64xf32> to vector<64x64xf32>
    %cst_143 = arith.constant dense<0.000000e+00> : vector<8x64xf32>
    %317 = tpu.matmul %314, %316, %cst_143 {dimension_numbers = #tpu.dot_dimension_numbers<[1], [0], [0], [1], [0, 0, 1, 1], [], []>} : vector<8x64xf32>, vector<64x64xf32>, vector<8x64xf32> -> vector<8x64xf32>
    %318 = arith.addf %313, %317 : vector<8x64xf32>
    %319 = vector.extract_strided_slice %287 {offsets = [48, 0], sizes = [8, 64], strides = [1, 1]} : vector<72x64xf32> to vector<8x64xf32>
    %c6_144 = arith.constant 6 : index
    %c0_145 = arith.constant 0 : index
    %c0_146 = arith.constant 0 : index
    %320 = vector.load %arg5[%c6_144, %c0_145, %c0_146] : memref<9x64x64xf32, #tpu.memory_space<vmem>>, vector<1x64x64xf32>
    %321 = vector.shape_cast %320 : vector<1x64x64xf32> to vector<64x64xf32>
    %cst_147 = arith.constant dense<0.000000e+00> : vector<8x64xf32>
    %322 = tpu.matmul %319, %321, %cst_147 {dimension_numbers = #tpu.dot_dimension_numbers<[1], [0], [0], [1], [0, 0, 1, 1], [], []>} : vector<8x64xf32>, vector<64x64xf32>, vector<8x64xf32> -> vector<8x64xf32>
    %323 = arith.addf %318, %322 : vector<8x64xf32>
    %324 = vector.extract_strided_slice %287 {offsets = [56, 0], sizes = [8, 64], strides = [1, 1]} : vector<72x64xf32> to vector<8x64xf32>
    %c7_148 = arith.constant 7 : index
    %c0_149 = arith.constant 0 : index
    %c0_150 = arith.constant 0 : index
    %325 = vector.load %arg5[%c7_148, %c0_149, %c0_150] : memref<9x64x64xf32, #tpu.memory_space<vmem>>, vector<1x64x64xf32>
    %326 = vector.shape_cast %325 : vector<1x64x64xf32> to vector<64x64xf32>
    %cst_151 = arith.constant dense<0.000000e+00> : vector<8x64xf32>
    %327 = tpu.matmul %324, %326, %cst_151 {dimension_numbers = #tpu.dot_dimension_numbers<[1], [0], [0], [1], [0, 0, 1, 1], [], []>} : vector<8x64xf32>, vector<64x64xf32>, vector<8x64xf32> -> vector<8x64xf32>
    %328 = arith.addf %323, %327 : vector<8x64xf32>
    %329 = vector.extract_strided_slice %287 {offsets = [64, 0], sizes = [8, 64], strides = [1, 1]} : vector<72x64xf32> to vector<8x64xf32>
    %c8_152 = arith.constant 8 : index
    %c0_153 = arith.constant 0 : index
    %c0_154 = arith.constant 0 : index
    %330 = vector.load %arg5[%c8_152, %c0_153, %c0_154] : memref<9x64x64xf32, #tpu.memory_space<vmem>>, vector<1x64x64xf32>
    %331 = vector.shape_cast %330 : vector<1x64x64xf32> to vector<64x64xf32>
    %cst_155 = arith.constant dense<0.000000e+00> : vector<8x64xf32>
    %332 = tpu.matmul %329, %331, %cst_155 {dimension_numbers = #tpu.dot_dimension_numbers<[1], [0], [0], [1], [0, 0, 1, 1], [], []>} : vector<8x64xf32>, vector<64x64xf32>, vector<8x64xf32> -> vector<8x64xf32>
    %333 = arith.addf %328, %332 : vector<8x64xf32>
    %c0_156 = arith.constant 0 : index
    %c0_157 = arith.constant 0 : index
    %334 = vector.load %arg6[%c0_156, %c0_157] : memref<1x64xf32, #tpu.memory_space<vmem>>, vector<1x64xf32>
    %335 = vector.broadcast %334 : vector<1x64xf32> to vector<8x64xf32>
    %336 = arith.addf %333, %335 : vector<8x64xf32>
    %cst_158 = arith.constant 0.000000e+00 : f32
    %337 = vector.broadcast %cst_158 : f32 to vector<8x64xf32>
    %338 = arith.maximumf %336, %337 : vector<8x64xf32>
    %c0_159 = arith.constant 0 : index
    %c0_160 = arith.constant 0 : index
    %339 = vector.load %arg7[%c0_159, %c0_160] : memref<64x512xf32, #tpu.memory_space<vmem>>, vector<64x512xf32>
    %cst_161 = arith.constant dense<0.000000e+00> : vector<8x512xf32>
    %340 = tpu.matmul %338, %339, %cst_161 {dimension_numbers = #tpu.dot_dimension_numbers<[1], [0], [0], [1], [0, 0, 1, 1], [], []>} : vector<8x64xf32>, vector<64x512xf32>, vector<8x512xf32> -> vector<8x512xf32>
    %c0_162 = arith.constant 0 : index
    %c0_163 = arith.constant 0 : index
    %341 = vector.load %arg9[%c0_162, %c0_163] : memref<64x27xf32, #tpu.memory_space<vmem>>, vector<64x27xf32>
    %cst_164 = arith.constant dense<0.000000e+00> : vector<8x27xf32>
    %342 = tpu.matmul %338, %341, %cst_164 {dimension_numbers = #tpu.dot_dimension_numbers<[1], [0], [0], [1], [0, 0, 1, 1], [], []>} : vector<8x64xf32>, vector<64x27xf32>, vector<8x27xf32> -> vector<8x27xf32>
    %cst_165 = arith.constant 0.000000e+00 : f32
    %343 = vector.broadcast %cst_165 : f32 to vector<8x6xf32>
    %344 = vector.extract_strided_slice %342 {offsets = [0, 0], sizes = [8, 9], strides = [1, 1]} : vector<8x27xf32> to vector<8x9xf32>
    %c0_166 = arith.constant 0 : index
    %c0_167 = arith.constant 0 : index
    %c0_168 = arith.constant 0 : index
    %345 = vector.load %arg10[%c0_166, %c0_167, %c0_168] : memref<3x9x512xf32, #tpu.memory_space<vmem>>, vector<1x9x512xf32>
    %346 = vector.shape_cast %345 : vector<1x9x512xf32> to vector<9x512xf32>
    %cst_169 = arith.constant dense<0.000000e+00> : vector<8x512xf32>
    %347 = tpu.matmul %344, %346, %cst_169 {dimension_numbers = #tpu.dot_dimension_numbers<[1], [0], [0], [1], [0, 0, 1, 1], [], []>} : vector<8x9xf32>, vector<9x512xf32>, vector<8x512xf32> -> vector<8x512xf32>
    %348 = arith.addf %340, %347 : vector<8x512xf32>
    %c0_170 = arith.constant 0 : index
    %c0_171 = arith.constant 0 : index
    %c0_172 = arith.constant 0 : index
    %349 = vector.load %arg13[%c0_170, %c0_171, %c0_172] : memref<3x1x512xf32, #tpu.memory_space<vmem>>, vector<1x1x512xf32>
    %350 = vector.shape_cast %349 : vector<1x1x512xf32> to vector<1x512xf32>
    %351 = vector.broadcast %350 : vector<1x512xf32> to vector<8x512xf32>
    %352 = arith.addf %348, %351 : vector<8x512xf32>
    %cst_173 = arith.constant 0.000000e+00 : f32
    %353 = vector.broadcast %cst_173 : f32 to vector<8x512xf32>
    %354 = arith.maximumf %352, %353 : vector<8x512xf32>
    %c0_174 = arith.constant 0 : index
    %c0_175 = arith.constant 0 : index
    %355 = vector.load %arg8[%c0_174, %c0_175] : memref<512x6xf32, #tpu.memory_space<vmem>>, vector<512x6xf32>
    %cst_176 = arith.constant dense<0.000000e+00> : vector<8x6xf32>
    %356 = tpu.matmul %354, %355, %cst_176 {dimension_numbers = #tpu.dot_dimension_numbers<[1], [0], [0], [1], [0, 0, 1, 1], [], []>} : vector<8x512xf32>, vector<512x6xf32>, vector<8x6xf32> -> vector<8x6xf32>
    %c0_177 = arith.constant 0 : index
    %c0_178 = arith.constant 0 : index
    %c0_179 = arith.constant 0 : index
    %357 = vector.load %arg11[%c0_177, %c0_178, %c0_179] : memref<3x512x9xf32, #tpu.memory_space<vmem>>, vector<1x512x9xf32>
    %358 = vector.shape_cast %357 : vector<1x512x9xf32> to vector<512x9xf32>
    %cst_180 = arith.constant dense<0.000000e+00> : vector<8x9xf32>
    %359 = tpu.matmul %354, %358, %cst_180 {dimension_numbers = #tpu.dot_dimension_numbers<[1], [0], [0], [1], [0, 0, 1, 1], [], []>} : vector<8x512xf32>, vector<512x9xf32>, vector<8x9xf32> -> vector<8x9xf32>
    %c0_181 = arith.constant 0 : index
    %c0_182 = arith.constant 0 : index
    %c0_183 = arith.constant 0 : index
    %360 = vector.load %arg12[%c0_181, %c0_182, %c0_183] : memref<3x9x6xf32, #tpu.memory_space<vmem>>, vector<1x9x6xf32>
    %361 = vector.shape_cast %360 : vector<1x9x6xf32> to vector<9x6xf32>
    %cst_184 = arith.constant dense<0.000000e+00> : vector<8x6xf32>
    %362 = tpu.matmul %359, %361, %cst_184 {dimension_numbers = #tpu.dot_dimension_numbers<[1], [0], [0], [1], [0, 0, 1, 1], [], []>} : vector<8x9xf32>, vector<9x6xf32>, vector<8x6xf32> -> vector<8x6xf32>
    %363 = arith.addf %356, %362 : vector<8x6xf32>
    %c0_185 = arith.constant 0 : index
    %c0_186 = arith.constant 0 : index
    %c0_187 = arith.constant 0 : index
    %364 = vector.load %arg14[%c0_185, %c0_186, %c0_187] : memref<3x1x6xf32, #tpu.memory_space<vmem>>, vector<1x1x6xf32>
    %365 = vector.shape_cast %364 : vector<1x1x6xf32> to vector<1x6xf32>
    %366 = vector.broadcast %365 : vector<1x6xf32> to vector<8x6xf32>
    %367 = arith.addf %363, %366 : vector<8x6xf32>
    %c0_188 = arith.constant 0 : index
    %368 = memref.load %arg15[%c0_188] : memref<3xf32, #tpu.memory_space<smem>>
    %369 = vector.broadcast %368 : f32 to vector<8x6xf32>
    %370 = arith.mulf %367, %369 : vector<8x6xf32>
    %371 = arith.addf %343, %370 : vector<8x6xf32>
    %372 = vector.extract_strided_slice %342 {offsets = [0, 9], sizes = [8, 9], strides = [1, 1]} : vector<8x27xf32> to vector<8x9xf32>
    %c1_189 = arith.constant 1 : index
    %c0_190 = arith.constant 0 : index
    %c0_191 = arith.constant 0 : index
    %373 = vector.load %arg10[%c1_189, %c0_190, %c0_191] : memref<3x9x512xf32, #tpu.memory_space<vmem>>, vector<1x9x512xf32>
    %374 = vector.shape_cast %373 : vector<1x9x512xf32> to vector<9x512xf32>
    %cst_192 = arith.constant dense<0.000000e+00> : vector<8x512xf32>
    %375 = tpu.matmul %372, %374, %cst_192 {dimension_numbers = #tpu.dot_dimension_numbers<[1], [0], [0], [1], [0, 0, 1, 1], [], []>} : vector<8x9xf32>, vector<9x512xf32>, vector<8x512xf32> -> vector<8x512xf32>
    %376 = arith.addf %340, %375 : vector<8x512xf32>
    %c1_193 = arith.constant 1 : index
    %c0_194 = arith.constant 0 : index
    %c0_195 = arith.constant 0 : index
    %377 = vector.load %arg13[%c1_193, %c0_194, %c0_195] : memref<3x1x512xf32, #tpu.memory_space<vmem>>, vector<1x1x512xf32>
    %378 = vector.shape_cast %377 : vector<1x1x512xf32> to vector<1x512xf32>
    %379 = vector.broadcast %378 : vector<1x512xf32> to vector<8x512xf32>
    %380 = arith.addf %376, %379 : vector<8x512xf32>
    %cst_196 = arith.constant 0.000000e+00 : f32
    %381 = vector.broadcast %cst_196 : f32 to vector<8x512xf32>
    %382 = arith.maximumf %380, %381 : vector<8x512xf32>
    %c0_197 = arith.constant 0 : index
    %c0_198 = arith.constant 0 : index
    %383 = vector.load %arg8[%c0_197, %c0_198] : memref<512x6xf32, #tpu.memory_space<vmem>>, vector<512x6xf32>
    %cst_199 = arith.constant dense<0.000000e+00> : vector<8x6xf32>
    %384 = tpu.matmul %382, %383, %cst_199 {dimension_numbers = #tpu.dot_dimension_numbers<[1], [0], [0], [1], [0, 0, 1, 1], [], []>} : vector<8x512xf32>, vector<512x6xf32>, vector<8x6xf32> -> vector<8x6xf32>
    %c1_200 = arith.constant 1 : index
    %c0_201 = arith.constant 0 : index
    %c0_202 = arith.constant 0 : index
    %385 = vector.load %arg11[%c1_200, %c0_201, %c0_202] : memref<3x512x9xf32, #tpu.memory_space<vmem>>, vector<1x512x9xf32>
    %386 = vector.shape_cast %385 : vector<1x512x9xf32> to vector<512x9xf32>
    %cst_203 = arith.constant dense<0.000000e+00> : vector<8x9xf32>
    %387 = tpu.matmul %382, %386, %cst_203 {dimension_numbers = #tpu.dot_dimension_numbers<[1], [0], [0], [1], [0, 0, 1, 1], [], []>} : vector<8x512xf32>, vector<512x9xf32>, vector<8x9xf32> -> vector<8x9xf32>
    %c1_204 = arith.constant 1 : index
    %c0_205 = arith.constant 0 : index
    %c0_206 = arith.constant 0 : index
    %388 = vector.load %arg12[%c1_204, %c0_205, %c0_206] : memref<3x9x6xf32, #tpu.memory_space<vmem>>, vector<1x9x6xf32>
    %389 = vector.shape_cast %388 : vector<1x9x6xf32> to vector<9x6xf32>
    %cst_207 = arith.constant dense<0.000000e+00> : vector<8x6xf32>
    %390 = tpu.matmul %387, %389, %cst_207 {dimension_numbers = #tpu.dot_dimension_numbers<[1], [0], [0], [1], [0, 0, 1, 1], [], []>} : vector<8x9xf32>, vector<9x6xf32>, vector<8x6xf32> -> vector<8x6xf32>
    %391 = arith.addf %384, %390 : vector<8x6xf32>
    %c1_208 = arith.constant 1 : index
    %c0_209 = arith.constant 0 : index
    %c0_210 = arith.constant 0 : index
    %392 = vector.load %arg14[%c1_208, %c0_209, %c0_210] : memref<3x1x6xf32, #tpu.memory_space<vmem>>, vector<1x1x6xf32>
    %393 = vector.shape_cast %392 : vector<1x1x6xf32> to vector<1x6xf32>
    %394 = vector.broadcast %393 : vector<1x6xf32> to vector<8x6xf32>
    %395 = arith.addf %391, %394 : vector<8x6xf32>
    %c1_211 = arith.constant 1 : index
    %396 = memref.load %arg15[%c1_211] : memref<3xf32, #tpu.memory_space<smem>>
    %397 = vector.broadcast %396 : f32 to vector<8x6xf32>
    %398 = arith.mulf %395, %397 : vector<8x6xf32>
    %399 = arith.addf %371, %398 : vector<8x6xf32>
    %400 = vector.extract_strided_slice %342 {offsets = [0, 18], sizes = [8, 9], strides = [1, 1]} : vector<8x27xf32> to vector<8x9xf32>
    %c2_212 = arith.constant 2 : index
    %c0_213 = arith.constant 0 : index
    %c0_214 = arith.constant 0 : index
    %401 = vector.load %arg10[%c2_212, %c0_213, %c0_214] : memref<3x9x512xf32, #tpu.memory_space<vmem>>, vector<1x9x512xf32>
    %402 = vector.shape_cast %401 : vector<1x9x512xf32> to vector<9x512xf32>
    %cst_215 = arith.constant dense<0.000000e+00> : vector<8x512xf32>
    %403 = tpu.matmul %400, %402, %cst_215 {dimension_numbers = #tpu.dot_dimension_numbers<[1], [0], [0], [1], [0, 0, 1, 1], [], []>} : vector<8x9xf32>, vector<9x512xf32>, vector<8x512xf32> -> vector<8x512xf32>
    %404 = arith.addf %340, %403 : vector<8x512xf32>
    %c2_216 = arith.constant 2 : index
    %c0_217 = arith.constant 0 : index
    %c0_218 = arith.constant 0 : index
    %405 = vector.load %arg13[%c2_216, %c0_217, %c0_218] : memref<3x1x512xf32, #tpu.memory_space<vmem>>, vector<1x1x512xf32>
    %406 = vector.shape_cast %405 : vector<1x1x512xf32> to vector<1x512xf32>
    %407 = vector.broadcast %406 : vector<1x512xf32> to vector<8x512xf32>
    %408 = arith.addf %404, %407 : vector<8x512xf32>
    %cst_219 = arith.constant 0.000000e+00 : f32
    %409 = vector.broadcast %cst_219 : f32 to vector<8x512xf32>
    %410 = arith.maximumf %408, %409 : vector<8x512xf32>
    %c0_220 = arith.constant 0 : index
    %c0_221 = arith.constant 0 : index
    %411 = vector.load %arg8[%c0_220, %c0_221] : memref<512x6xf32, #tpu.memory_space<vmem>>, vector<512x6xf32>
    %cst_222 = arith.constant dense<0.000000e+00> : vector<8x6xf32>
    %412 = tpu.matmul %410, %411, %cst_222 {dimension_numbers = #tpu.dot_dimension_numbers<[1], [0], [0], [1], [0, 0, 1, 1], [], []>} : vector<8x512xf32>, vector<512x6xf32>, vector<8x6xf32> -> vector<8x6xf32>
    %c2_223 = arith.constant 2 : index
    %c0_224 = arith.constant 0 : index
    %c0_225 = arith.constant 0 : index
    %413 = vector.load %arg11[%c2_223, %c0_224, %c0_225] : memref<3x512x9xf32, #tpu.memory_space<vmem>>, vector<1x512x9xf32>
    %414 = vector.shape_cast %413 : vector<1x512x9xf32> to vector<512x9xf32>
    %cst_226 = arith.constant dense<0.000000e+00> : vector<8x9xf32>
    %415 = tpu.matmul %410, %414, %cst_226 {dimension_numbers = #tpu.dot_dimension_numbers<[1], [0], [0], [1], [0, 0, 1, 1], [], []>} : vector<8x512xf32>, vector<512x9xf32>, vector<8x9xf32> -> vector<8x9xf32>
    %c2_227 = arith.constant 2 : index
    %c0_228 = arith.constant 0 : index
    %c0_229 = arith.constant 0 : index
    %416 = vector.load %arg12[%c2_227, %c0_228, %c0_229] : memref<3x9x6xf32, #tpu.memory_space<vmem>>, vector<1x9x6xf32>
    %417 = vector.shape_cast %416 : vector<1x9x6xf32> to vector<9x6xf32>
    %cst_230 = arith.constant dense<0.000000e+00> : vector<8x6xf32>
    %418 = tpu.matmul %415, %417, %cst_230 {dimension_numbers = #tpu.dot_dimension_numbers<[1], [0], [0], [1], [0, 0, 1, 1], [], []>} : vector<8x9xf32>, vector<9x6xf32>, vector<8x6xf32> -> vector<8x6xf32>
    %419 = arith.addf %412, %418 : vector<8x6xf32>
    %c2_231 = arith.constant 2 : index
    %c0_232 = arith.constant 0 : index
    %c0_233 = arith.constant 0 : index
    %420 = vector.load %arg14[%c2_231, %c0_232, %c0_233] : memref<3x1x6xf32, #tpu.memory_space<vmem>>, vector<1x1x6xf32>
    %421 = vector.shape_cast %420 : vector<1x1x6xf32> to vector<1x6xf32>
    %422 = vector.broadcast %421 : vector<1x6xf32> to vector<8x6xf32>
    %423 = arith.addf %419, %422 : vector<8x6xf32>
    %c2_234 = arith.constant 2 : index
    %424 = memref.load %arg15[%c2_234] : memref<3xf32, #tpu.memory_space<smem>>
    %425 = vector.broadcast %424 : f32 to vector<8x6xf32>
    %426 = arith.mulf %423, %425 : vector<8x6xf32>
    %427 = arith.addf %399, %426 : vector<8x6xf32>
    %c0_235 = arith.constant 0 : index
    %c0_236 = arith.constant 0 : index
    %428 = vector.load %arg16[%c0_235, %c0_236] : memref<8x6xf32, #tpu.memory_space<vmem>>, vector<8x6xf32>
    tpu.vector_store %arg16[%c0_235, %c0_236], %427 {strides = array<i32>} : memref<8x6xf32, #tpu.memory_space<vmem>>, vector<8x6xf32>,
    return
  }
}

</mosaic_0001>

<llo_original>
// kernel: forward.1
$region0: #{forward.1}
  #allocation0 [shape = 'u32[]', space=smem, size = 0x4, offset = 0x4, fixed_abs, tag = 'smem constant byte address 0x4 - core index']
  #allocation1 [shape = 'u32[72,128]{1,0:T(1,128)}', space=vmem, size = 0x9000, scoped, tag = 'internal scratch']
  %s0 = inlined_call_operand.vmem [shape: f32[648,64], index: 0, kind: input, shape index: {}]
  %s1 = inlined_call_operand.vmem [shape: f32[4,64,32], index: 1, kind: input, shape index: {}]
  %s2 = inlined_call_operand.vmem [shape: f32[1,32], index: 2, kind: input, shape index: {}]
  %s3 = inlined_call_operand.vmem [shape: f32[16,32,64], index: 3, kind: input, shape index: {}]
  %s4 = inlined_call_operand.vmem [shape: f32[1,64], index: 4, kind: input, shape index: {}]
  %s5 = inlined_call_operand.vmem [shape: f32[9,64,64], index: 5, kind: input, shape index: {}]
  %s6 = inlined_call_operand.vmem [shape: f32[1,64], index: 6, kind: input, shape index: {}]
  %s7 = inlined_call_operand.vmem [shape: f32[64,512], index: 7, kind: input, shape index: {}]
  %s8 = inlined_call_operand.vmem [shape: f32[512,6], index: 8, kind: input, shape index: {}]
  %s9 = inlined_call_operand.vmem [shape: f32[64,27], index: 9, kind: input, shape index: {}]
  %s10 = inlined_call_operand.vmem [shape: f32[3,9,512], index: 10, kind: input, shape index: {}]
  %s11 = inlined_call_operand.vmem [shape: f32[3,512,9], index: 11, kind: input, shape index: {}]
  %s12 = inlined_call_operand.vmem [shape: f32[3,9,6], index: 12, kind: input, shape index: {}]
  %s13 = inlined_call_operand.vmem [shape: f32[3,1,512], index: 13, kind: input, shape index: {}]
  %s14 = inlined_call_operand.vmem [shape: f32[3,1,6], index: 14, kind: input, shape index: {}]
  %s15 = inlined_call_operand.vmem [shape: f32[3], index: 15, kind: input, shape index: {}]
  %s16 = inlined_call_operand.hbm [shape: f32[8,6], index: 16, kind: output, shape index: {}]
  %s17 = sld [smem:[#allocation0]]
  $region78: #{forward.1} parent=0
    _
  %s19 = ssub.s32 1, %s17
  %s20 = scalar_select 0, %s19, %s17
  $region1: #{forward.1} parent=0
    #allocation2 [shape = 'u8[512]{0}', space=smem, size = 0x200, scoped, tag = 'input window, operand 15, single buffered']
    #allocation3 [shape = 's32[1]{0}', space=sflag, size = 0x4, scoped, tag = 'scoped memory for forward.1']
    #allocation4 [shape = 's32[1]{0}', space=sflag, size = 0x4, scoped, tag = 'scoped memory for forward.1']
    #allocation5 [shape = 'u8[4096]{0}', space=vmem, size = 0x1000, scoped, tag = 'output window, operand 0, single buffered']
    %21 = vsyncpa [#allocation4], 0
    %22 = vsyncpa [#allocation3], 0
    // Predicated region
    $region2: #{forward.1} parent=1 // pred_check
      _
    $region3: #{forward.1} parent=1 // pred_check_branch
      %24 = sbr.rel (0) target = $region5
    $region4: #{forward.1} parent=1 // pred_region
      _
    $region5: #{forward.1} parent=1 // pred_fallthru
      _
    // Predicated region
    $region6: #{forward.1} parent=1 // pred_check
      _
    $region7: #{forward.1} parent=1 // pred_check_branch
      %26 = sbr.rel (0) target = $region9
    $region8: #{forward.1} parent=1 // pred_region
      _
    $region9: #{forward.1} parent=1 // pred_fallthru
      _
    // Predicated region
    $region10: #{forward.1} parent=1 // pred_check
      _
    $region11: #{forward.1} parent=1 // pred_check_branch
      %28 = sbr.rel (0) target = $region13
    $region12: #{forward.1} parent=1 // pred_region
      _
    $region13: #{forward.1} parent=1 // pred_fallthru
      _
    // Predicated region
    $region14: #{forward.1} parent=1 // pred_check
      _
    $region15: #{forward.1} parent=1 // pred_check_branch
      %30 = sbr.rel (0) target = $region17
    $region16: #{forward.1} parent=1 // pred_region
      _
    $region17: #{forward.1} parent=1 // pred_fallthru
      _
    // Predicated region
    $region18: #{forward.1} parent=1 // pred_check
      _
    $region19: #{forward.1} parent=1 // pred_check_branch
      %32 = sbr.rel (0) target = $region21
    $region20: #{forward.1} parent=1 // pred_region
      _
    $region21: #{forward.1} parent=1 // pred_fallthru
      _
    // Predicated region
    $region22: #{forward.1} parent=1 // pred_check
      _
    $region23: #{forward.1} parent=1 // pred_check_branch
      %34 = sbr.rel (0) target = $region25
    $region24: #{forward.1} parent=1 // pred_region
      _
    $region25: #{forward.1} parent=1 // pred_fallthru
      _
    // Predicated region
    $region26: #{forward.1} parent=1 // pred_check
      _
    $region27: #{forward.1} parent=1 // pred_check_branch
      %36 = sbr.rel (0) target = $region29
    $region28: #{forward.1} parent=1 // pred_region
      _
    $region29: #{forward.1} parent=1 // pred_fallthru
      _
    // Predicated region
    $region30: #{forward.1} parent=1 // pred_check
      _
    $region31: #{forward.1} parent=1 // pred_check_branch
      %38 = sbr.rel (0) target = $region33
    $region32: #{forward.1} parent=1 // pred_region
      _
    $region33: #{forward.1} parent=1 // pred_fallthru
      _
    // Predicated region
    $region34: #{forward.1} parent=1 // pred_check
      _
    $region35: #{forward.1} parent=1 // pred_check_branch
      %40 = sbr.rel (0) target = $region37
    $region36: #{forward.1} parent=1 // pred_region
      _
    $region37: #{forward.1} parent=1 // pred_fallthru
      _
    // Predicated region
    $region38: #{forward.1} parent=1 // pred_check
      _
    $region39: #{forward.1} parent=1 // pred_check_branch
      %42 = sbr.rel (0) target = $region41
    $region40: #{forward.1} parent=1 // pred_region
      _
    $region41: #{forward.1} parent=1 // pred_fallthru
      _
    // Predicated region
    $region42: #{forward.1} parent=1 // pred_check
      _
    $region43: #{forward.1} parent=1 // pred_check_branch
      %44 = sbr.rel (0) target = $region45
    $region44: #{forward.1} parent=1 // pred_region
      _
    $region45: #{forward.1} parent=1 // pred_fallthru
      _
    // Predicated region
    $region46: #{forward.1} parent=1 // pred_check
      _
    $region47: #{forward.1} parent=1 // pred_check_branch
      %46 = sbr.rel (0) target = $region49
    $region48: #{forward.1} parent=1 // pred_region
      _
    $region49: #{forward.1} parent=1 // pred_fallthru
      _
    // Predicated region
    $region50: #{forward.1} parent=1 // pred_check
      _
    $region51: #{forward.1} parent=1 // pred_check_branch
      %48 = sbr.rel (0) target = $region53
    $region52: #{forward.1} parent=1 // pred_region
      _
    $region53: #{forward.1} parent=1 // pred_fallthru
      _
    // Predicated region
    $region54: #{forward.1} parent=1 // pred_check
      _
    $region55: #{forward.1} parent=1 // pred_check_branch
      %50 = sbr.rel (0) target = $region57
    $region56: #{forward.1} parent=1 // pred_region
      _
    $region57: #{forward.1} parent=1 // pred_fallthru
      _
    // Predicated region
    $region58: #{forward.1} parent=1 // pred_check
      _
    $region59: #{forward.1} parent=1 // pred_check_branch
      %52 = sbr.rel (0) target = $region61
    $region60: #{forward.1} parent=1 // pred_region
      _
    $region61: #{forward.1} parent=1 // pred_fallthru
      _
    // Predicated region
    $region62: #{forward.1} parent=1 // pred_check
      _
    $region63: #{forward.1} parent=1 // pred_check_branch
      %54 = sbr.rel (0) target = $region65
    $region64: #{forward.1} parent=1 // pred_region
      %56 = vsyncadd [#allocation4], 0
      %s58 = sshll.u32 %s15, 4
      %s59 = int_to_ptr.vmem [resolvable:$true] %s58
      %61 = dma.vmem_to_smem %s59, 16, [#allocation2], [#allocation4]
    $region65: #{forward.1} parent=1 // pred_fallthru
      _
    // Predicated region
    $region66: #{forward.1} parent=1 // pred_check
      _
    $region67: #{forward.1} parent=1 // pred_check_branch
      %63 = sbr.rel (0) target = $region69
    $region68: #{forward.1} parent=1 // pred_region
      %65 = dma.done [#allocation4], 16
    $region69: #{forward.1} parent=1 // pred_fallthru
      _
    %66 = sfence
    %v67 = vld [vmem:[%s0] sm:$0xff]
    %v68 = vld [vmem:[%s0 + $0x8] sm:$0xff]
    %v69 = vld [vmem:[%s0 + $0x10] sm:$0xff]
    %v70 = vld [vmem:[%s0 + $0x18] sm:$0xff]
    %v71 = vld [vmem:[%s0 + $0x20] sm:$0xff]
    %v72 = vld [vmem:[%s0 + $0x28] sm:$0xff]
    %v73 = vld [vmem:[%s0 + $0x30] sm:$0xff]
    %v74 = vld [vmem:[%s0 + $0x38] sm:$0xff]
    %v75 = vld [vmem:[%s0 + $0x48] sm:$0xff]
    %v76 = vld [vmem:[%s0 + $0x50] sm:$0xff]
    %v77 = vld [vmem:[%s0 + $0x58] sm:$0xff]
    %v78 = vld [vmem:[%s0 + $0x60] sm:$0xff]
    %v79 = vld [vmem:[%s0 + $0x68] sm:$0xff]
    %v80 = vld [vmem:[%s0 + $0x70] sm:$0xff]
    %v81 = vld [vmem:[%s0 + $0x78] sm:$0xff]
    %v82 = vld [vmem:[%s0 + $0x80] sm:$0xff]
    %v83 = vld [vmem:[%s0 + $0x90] sm:$0xff]
    %v84 = vld [vmem:[%s0 + $0x98] sm:$0xff]
    %v85 = vld [vmem:[%s0 + $0xa0] sm:$0xff]
    %v86 = vld [vmem:[%s0 + $0xa8] sm:$0xff]
    %v87 = vld [vmem:[%s0 + $0xb0] sm:$0xff]
    %v88 = vld [vmem:[%s0 + $0xb8] sm:$0xff]
    %v89 = vld [vmem:[%s0 + $0xc0] sm:$0xff]
    %v90 = vld [vmem:[%s0 + $0xc8] sm:$0xff]
    %v91 = vld [vmem:[%s0 + $0xd8] sm:$0xff]
    %v92 = vld [vmem:[%s0 + $0xe0] sm:$0xff]
    %v93 = vld [vmem:[%s0 + $0xe8] sm:$0xff]
    %v94 = vld [vmem:[%s0 + $0xf0] sm:$0xff]
    %v95 = vld [vmem:[%s0 + $0xf8] sm:$0xff]
    %v96 = vld [vmem:[%s0 + $0x100] sm:$0xff]
    %v97 = vld [vmem:[%s0 + $0x108] sm:$0xff]
    %v98 = vld [vmem:[%s0 + $0x110] sm:$0xff]
    %v99 = vld [vmem:[%s0 + $0x120] sm:$0xff]
    %v100 = vld [vmem:[%s0 + $0x128] sm:$0xff]
    %v101 = vld [vmem:[%s0 + $0x130] sm:$0xff]
    %v102 = vld [vmem:[%s0 + $0x138] sm:$0xff]
    %v103 = vld [vmem:[%s0 + $0x140] sm:$0xff]
    %v104 = vld [vmem:[%s0 + $0x148] sm:$0xff]
    %v105 = vld [vmem:[%s0 + $0x150] sm:$0xff]
    %v106 = vld [vmem:[%s0 + $0x158] sm:$0xff]
    %v107 = vld [vmem:[%s0 + $0x168] sm:$0xff]
    %v108 = vld [vmem:[%s0 + $0x170] sm:$0xff]
    %v109 = vld [vmem:[%s0 + $0x178] sm:$0xff]
    %v110 = vld [vmem:[%s0 + $0x180] sm:$0xff]
    %v111 = vld [vmem:[%s0 + $0x188] sm:$0xff]
    %v112 = vld [vmem:[%s0 + $0x190] sm:$0xff]
    %v113 = vld [vmem:[%s0 + $0x198] sm:$0xff]
    %v114 = vld [vmem:[%s0 + $0x1a0] sm:$0xff]
    %v115 = vld [vmem:[%s0 + $0x1b0] sm:$0xff]
    %v116 = vld [vmem:[%s0 + $0x1b8] sm:$0xff]
    %v117 = vld [vmem:[%s0 + $0x1c0] sm:$0xff]
    %v118 = vld [vmem:[%s0 + $0x1c8] sm:$0xff]
    %v119 = vld [vmem:[%s0 + $0x1d0] sm:$0xff]
    %v120 = vld [vmem:[%s0 + $0x1d8] sm:$0xff]
    %v121 = vld [vmem:[%s0 + $0x1e0] sm:$0xff]
    %v122 = vld [vmem:[%s0 + $0x1e8] sm:$0xff]
    %v123 = vld [vmem:[%s0 + $0x1f8] sm:$0xff]
    %v124 = vld [vmem:[%s0 + $0x200] sm:$0xff]
    %v125 = vld [vmem:[%s0 + $0x208] sm:$0xff]
    %v126 = vld [vmem:[%s0 + $0x210] sm:$0xff]
    %v127 = vld [vmem:[%s0 + $0x218] sm:$0xff]
    %v128 = vld [vmem:[%s0 + $0x220] sm:$0xff]
    %v129 = vld [vmem:[%s0 + $0x228] sm:$0xff]
    %v130 = vld [vmem:[%s0 + $0x230] sm:$0xff]
    %v131 = vld [vmem:[%s1] sm:$0xff]
    %v132 = vld [vmem:[%s1 + $0x8] sm:$0xff]
    %v133 = vld [vmem:[%s1 + $0x10] sm:$0xff]
    %v134 = vld [vmem:[%s1 + $0x18] sm:$0xff]
    %v135 = vld [vmem:[%s1 + $0x20] sm:$0xff]
    %v136 = vld [vmem:[%s1 + $0x28] sm:$0xff]
    %v137 = vld [vmem:[%s1 + $0x30] sm:$0xff]
    %v138 = vld [vmem:[%s1 + $0x38] sm:$0xff]
    %v139 = vld [vmem:[%s0 + $0x40] sm:$0xff]
    %v140 = vld [vmem:[%s0 + $0x88] sm:$0xff]
    %v141 = vld [vmem:[%s0 + $0xd0] sm:$0xff]
    %v142 = vld [vmem:[%s0 + $0x118] sm:$0xff]
    %v143 = vld [vmem:[%s0 + $0x160] sm:$0xff]
    %v144 = vld [vmem:[%s0 + $0x1a8] sm:$0xff]
    %v145 = vld [vmem:[%s0 + $0x1f0] sm:$0xff]
    %v146 = vld [vmem:[%s0 + $0x238] sm:$0xff]
    %s147 = scalar_lea.vmem %s1, 64
    %v148 = vld [vmem:[%s147] sm:$0xff]
    %v149 = vld [vmem:[%s147 + $0x8] sm:$0xff]
    %v150 = vld [vmem:[%s147 + $0x10] sm:$0xff]
    %v151 = vld [vmem:[%s147 + $0x18] sm:$0xff]
    %v152 = vld [vmem:[%s147 + $0x20] sm:$0xff]
    %v153 = vld [vmem:[%s147 + $0x28] sm:$0xff]
    %v154 = vld [vmem:[%s147 + $0x30] sm:$0xff]
    %v155 = vld [vmem:[%s147 + $0x38] sm:$0xff]
    %vm156 = vcmask 523264
    %v158 = vsel %vm156, %v68, 0
    %v161 = vsel %vm156, %v69, 0
    %v164 = vsel %vm156, %v70, 0
    %v167 = vsel %vm156, %v71, 0
    %v170 = vsel %vm156, %v72, 0
    %v173 = vsel %vm156, %v73, 0
    %v176 = vsel %vm156, %v74, 0
    %v179 = vsel %vm156, %v139, 0
    %v182 = vsel %vm156, %v76, 0
    %v185 = vsel %vm156, %v77, 0
    %v188 = vsel %vm156, %v78, 0
    %v191 = vsel %vm156, %v79, 0
    %v194 = vsel %vm156, %v80, 0
    %v197 = vsel %vm156, %v81, 0
    %v200 = vsel %vm156, %v82, 0
    %v203 = vsel %vm156, %v140, 0
    %v206 = vsel %vm156, %v84, 0
    %v209 = vsel %vm156, %v85, 0
    %v212 = vsel %vm156, %v86, 0
    %v215 = vsel %vm156, %v87, 0
    %v218 = vsel %vm156, %v88, 0
    %v221 = vsel %vm156, %v89, 0
    %v224 = vsel %vm156, %v90, 0
    %v227 = vsel %vm156, %v141, 0
    %v230 = vsel %vm156, %v92, 0
    %v233 = vsel %vm156, %v93, 0
    %v236 = vsel %vm156, %v94, 0
    %v239 = vsel %vm156, %v95, 0
    %v242 = vsel %vm156, %v96, 0
    %v245 = vsel %vm156, %v97, 0
    %v248 = vsel %vm156, %v98, 0
    %v251 = vsel %vm156, %v142, 0
    %v254 = vsel %vm156, %v100, 0
    %v257 = vsel %vm156, %v101, 0
    %v260 = vsel %vm156, %v102, 0
    %v263 = vsel %vm156, %v103, 0
    %v266 = vsel %vm156, %v104, 0
    %v269 = vsel %vm156, %v105, 0
    %v272 = vsel %vm156, %v106, 0
    %v275 = vsel %vm156, %v143, 0
    %v278 = vsel %vm156, %v108, 0
    %v281 = vsel %vm156, %v109, 0
    %v284 = vsel %vm156, %v110, 0
    %v287 = vsel %vm156, %v111, 0
    %v290 = vsel %vm156, %v112, 0
    %v293 = vsel %vm156, %v113, 0
    %v296 = vsel %vm156, %v114, 0
    %v299 = vsel %vm156, %v144, 0
    %v302 = vsel %vm156, %v116, 0
    %v305 = vsel %vm156, %v117, 0
    %v308 = vsel %vm156, %v118, 0
    %v311 = vsel %vm156, %v119, 0
    %v314 = vsel %vm156, %v120, 0
    %v317 = vsel %vm156, %v121, 0
    %v320 = vsel %vm156, %v122, 0
    %v323 = vsel %vm156, %v145, 0
    %v326 = vsel %vm156, %v124, 0
    %v329 = vsel %vm156, %v125, 0
    %v332 = vsel %vm156, %v126, 0
    %v335 = vsel %vm156, %v127, 0
    %v338 = vsel %vm156, %v128, 0
    %v341 = vsel %vm156, %v129, 0
    %v344 = vsel %vm156, %v130, 0
    %v347 = vsel %vm156, %v146, 0
    %349 = vmatpush.msra.mxu0 0.0
    %350 = vmatpush.msra.mxu0 0.0
    %351 = vmatpush.msra.mxu0 0.0
    %352 = vmatpush.msra.mxu0 0.0
    %353 = vmatpush.msra.mxu0 0.0
    %354 = vmatpush.msra.mxu0 0.0
    %355 = vmatpush.msra.mxu0 0.0
    %356 = vmatpush.msra.mxu0 0.0
    %357 = vmatpush.msra.mxu0 %v155
    %358 = vmatpush.msra.mxu0 %v154
    %359 = vmatpush.msra.mxu0 %v153
    %360 = vmatpush.msra.mxu0 %v152
    %361 = vmatpush.msra.mxu0 %v151
    %362 = vmatpush.msra.mxu0 %v150
    %363 = vmatpush.msra.mxu0 %v149
    %364 = vmatpush.msra.mxu0 %v148
    %365 = vmatmul.f32.gmra.mxu0 %v158
    %v366 = vpop.f32.mrf.mxu0
    %v367 = vadd.f32 0.0, %v366
    %368 = vmatmul.f32.gmra.mxu0 %v161
    %v369 = vpop.f32.mrf.mxu0
    %v370 = vadd.f32 0.0, %v369
    %371 = vmatmul.f32.gmra.mxu0 %v164
    %v372 = vpop.f32.mrf.mxu0
    %v373 = vadd.f32 0.0, %v372
    %374 = vmatmul.f32.gmra.mxu0 %v167
    %v375 = vpop.f32.mrf.mxu0
    %v376 = vadd.f32 0.0, %v375
    %377 = vmatmul.f32.gmra.mxu0 %v170
    %v378 = vpop.f32.mrf.mxu0
    %v379 = vadd.f32 0.0, %v378
    %380 = vmatmul.f32.gmra.mxu0 %v173
    %v381 = vpop.f32.mrf.mxu0
    %v382 = vadd.f32 0.0, %v381
    %383 = vmatmul.f32.gmra.mxu0 %v176
    %v384 = vpop.f32.mrf.mxu0
    %v385 = vadd.f32 0.0, %v384
    %386 = vmatmul.f32.gmra.mxu0 %v179
    %v387 = vpop.f32.mrf.mxu0
    %v388 = vadd.f32 0.0, %v387
    %389 = vmatmul.f32.gmra.mxu0 %v182
    %v390 = vpop.f32.mrf.mxu0
    %v391 = vadd.f32 0.0, %v390
    %392 = vmatmul.f32.gmra.mxu0 %v185
    %v393 = vpop.f32.mrf.mxu0
    %v394 = vadd.f32 0.0, %v393
    %395 = vmatmul.f32.gmra.mxu0 %v188
    %v396 = vpop.f32.mrf.mxu0
    %v397 = vadd.f32 0.0, %v396
    %398 = vmatmul.f32.gmra.mxu0 %v191
    %v399 = vpop.f32.mrf.mxu0
    %v400 = vadd.f32 0.0, %v399
    %401 = vmatmul.f32.gmra.mxu0 %v194
    %v402 = vpop.f32.mrf.mxu0
    %v403 = vadd.f32 0.0, %v402
    %404 = vmatmul.f32.gmra.mxu0 %v197
    %v405 = vpop.f32.mrf.mxu0
    %v406 = vadd.f32 0.0, %v405
    %407 = vmatmul.f32.gmra.mxu0 %v200
    %v408 = vpop.f32.mrf.mxu0
    %v409 = vadd.f32 0.0, %v408
    %410 = vmatmul.f32.gmra.mxu0 %v203
    %v411 = vpop.f32.mrf.mxu0
    %v412 = vadd.f32 0.0, %v411
    %413 = vmatmul.f32.gmra.mxu0 %v206
    %v414 = vpop.f32.mrf.mxu0
    %v415 = vadd.f32 0.0, %v414
    %416 = vmatmul.f32.gmra.mxu0 %v209
    %v417 = vpop.f32.mrf.mxu0
    %v418 = vadd.f32 0.0, %v417
    %419 = vmatmul.f32.gmra.mxu0 %v212
    %v420 = vpop.f32.mrf.mxu0
    %v421 = vadd.f32 0.0, %v420
    %422 = vmatmul.f32.gmra.mxu0 %v215
    %v423 = vpop.f32.mrf.mxu0
    %v424 = vadd.f32 0.0, %v423
    %425 = vmatmul.f32.gmra.mxu0 %v218
    %v426 = vpop.f32.mrf.mxu0
    %v427 = vadd.f32 0.0, %v426
    %428 = vmatmul.f32.gmra.mxu0 %v221
    %v429 = vpop.f32.mrf.mxu0
    %v430 = vadd.f32 0.0, %v429
    %431 = vmatmul.f32.gmra.mxu0 %v224
    %v432 = vpop.f32.mrf.mxu0
    %v433 = vadd.f32 0.0, %v432
    %434 = vmatmul.f32.gmra.mxu0 %v227
    %v435 = vpop.f32.mrf.mxu0
    %v436 = vadd.f32 0.0, %v435
    %437 = vmatmul.f32.gmra.mxu0 %v230
    %v438 = vpop.f32.mrf.mxu0
    %v439 = vadd.f32 0.0, %v438
    %440 = vmatmul.f32.gmra.mxu0 %v233
    %v441 = vpop.f32.mrf.mxu0
    %v442 = vadd.f32 0.0, %v441
    %443 = vmatmul.f32.gmra.mxu0 %v236
    %v444 = vpop.f32.mrf.mxu0
    %v445 = vadd.f32 0.0, %v444
    %446 = vmatmul.f32.gmra.mxu0 %v239
    %v447 = vpop.f32.mrf.mxu0
    %v448 = vadd.f32 0.0, %v447
    %449 = vmatmul.f32.gmra.mxu0 %v242
    %v450 = vpop.f32.mrf.mxu0
    %v451 = vadd.f32 0.0, %v450
    %452 = vmatmul.f32.gmra.mxu0 %v245
    %v453 = vpop.f32.mrf.mxu0
    %v454 = vadd.f32 0.0, %v453
    %455 = vmatmul.f32.gmra.mxu0 %v248
    %v456 = vpop.f32.mrf.mxu0
    %v457 = vadd.f32 0.0, %v456
    %458 = vmatmul.f32.gmra.mxu0 %v251
    %v459 = vpop.f32.mrf.mxu0
    %v460 = vadd.f32 0.0, %v459
    %461 = vmatmul.f32.gmra.mxu0 %v254
    %v462 = vpop.f32.mrf.mxu0
    %v463 = vadd.f32 0.0, %v462
    %464 = vmatmul.f32.gmra.mxu0 %v257
    %v465 = vpop.f32.mrf.mxu0
    %v466 = vadd.f32 0.0, %v465
    %467 = vmatmul.f32.gmra.mxu0 %v260
    %v468 = vpop.f32.mrf.mxu0
    %v469 = vadd.f32 0.0, %v468
    %470 = vmatmul.f32.gmra.mxu0 %v263
    %v471 = vpop.f32.mrf.mxu0
    %v472 = vadd.f32 0.0, %v471
    %473 = vmatmul.f32.gmra.mxu0 %v266
    %v474 = vpop.f32.mrf.mxu0
    %v475 = vadd.f32 0.0, %v474
    %476 = vmatmul.f32.gmra.mxu0 %v269
    %v477 = vpop.f32.mrf.mxu0
    %v478 = vadd.f32 0.0, %v477
    %479 = vmatmul.f32.gmra.mxu0 %v272
    %v480 = vpop.f32.mrf.mxu0
    %v481 = vadd.f32 0.0, %v480
    %482 = vmatmul.f32.gmra.mxu0 %v275
    %v483 = vpop.f32.mrf.mxu0
    %v484 = vadd.f32 0.0, %v483
    %485 = vmatmul.f32.gmra.mxu0 %v278
    %v486 = vpop.f32.mrf.mxu0
    %v487 = vadd.f32 0.0, %v486
    %488 = vmatmul.f32.gmra.mxu0 %v281
    %v489 = vpop.f32.mrf.mxu0
    %v490 = vadd.f32 0.0, %v489
    %491 = vmatmul.f32.gmra.mxu0 %v284
    %v492 = vpop.f32.mrf.mxu0
    %v493 = vadd.f32 0.0, %v492
    %494 = vmatmul.f32.gmra.mxu0 %v287
    %v495 = vpop.f32.mrf.mxu0
    %v496 = vadd.f32 0.0, %v495
    %497 = vmatmul.f32.gmra.mxu0 %v290
    %v498 = vpop.f32.mrf.mxu0
    %v499 = vadd.f32 0.0, %v498
    %500 = vmatmul.f32.gmra.mxu0 %v293
    %v501 = vpop.f32.mrf.mxu0
    %v502 = vadd.f32 0.0, %v501
    %503 = vmatmul.f32.gmra.mxu0 %v296
    %v504 = vpop.f32.mrf.mxu0
    %v505 = vadd.f32 0.0, %v504
    %506 = vmatmul.f32.gmra.mxu0 %v299
    %v507 = vpop.f32.mrf.mxu0
    %v508 = vadd.f32 0.0, %v507
    %509 = vmatmul.f32.gmra.mxu0 %v302
    %v510 = vpop.f32.mrf.mxu0
    %v511 = vadd.f32 0.0, %v510
    %512 = vmatmul.f32.gmra.mxu0 %v305
    %v513 = vpop.f32.mrf.mxu0
    %v514 = vadd.f32 0.0, %v513
    %515 = vmatmul.f32.gmra.mxu0 %v308
    %v516 = vpop.f32.mrf.mxu0
    %v517 = vadd.f32 0.0, %v516
    %518 = vmatmul.f32.gmra.mxu0 %v311
    %v519 = vpop.f32.mrf.mxu0
    %v520 = vadd.f32 0.0, %v519
    %521 = vmatmul.f32.gmra.mxu0 %v314
    %v522 = vpop.f32.mrf.mxu0
    %v523 = vadd.f32 0.0, %v522
    %524 = vmatmul.f32.gmra.mxu0 %v317
    %v525 = vpop.f32.mrf.mxu0
    %v526 = vadd.f32 0.0, %v525
    %527 = vmatmul.f32.gmra.mxu0 %v320
    %v528 = vpop.f32.mrf.mxu0
    %v529 = vadd.f32 0.0, %v528
    %530 = vmatmul.f32.gmra.mxu0 %v323
    %v531 = vpop.f32.mrf.mxu0
    %v532 = vadd.f32 0.0, %v531
    %533 = vmatmul.f32.gmra.mxu0 %v326
    %v534 = vpop.f32.mrf.mxu0
    %v535 = vadd.f32 0.0, %v534
    %536 = vmatmul.f32.gmra.mxu0 %v329
    %v537 = vpop.f32.mrf.mxu0
    %v538 = vadd.f32 0.0, %v537
    %539 = vmatmul.f32.gmra.mxu0 %v332
    %v540 = vpop.f32.mrf.mxu0
    %v541 = vadd.f32 0.0, %v540
    %542 = vmatmul.f32.gmra.mxu0 %v335
    %v543 = vpop.f32.mrf.mxu0
    %v544 = vadd.f32 0.0, %v543
    %545 = vmatmul.f32.gmra.mxu0 %v338
    %v546 = vpop.f32.mrf.mxu0
    %v547 = vadd.f32 0.0, %v546
    %548 = vmatmul.f32.gmra.mxu0 %v341
    %v549 = vpop.f32.mrf.mxu0
    %v550 = vadd.f32 0.0, %v549
    %551 = vmatmul.f32.gmra.mxu0 %v344
    %v552 = vpop.f32.mrf.mxu0
    %v553 = vadd.f32 0.0, %v552
    %554 = vmatmul.f32.gmra.mxu0 %v347
    %v555 = vpop.f32.mrf.mxu0
    %v556 = vadd.f32 0.0, %v555
    %557 = vdwg.mxu0
    %v559 = vsel %vm156, %v67, 0
    %v562 = vsel %vm156, %v75, 0
    %v565 = vsel %vm156, %v83, 0
    %v568 = vsel %vm156, %v91, 0
    %v571 = vsel %vm156, %v99, 0
    %v574 = vsel %vm156, %v107, 0
    %v577 = vsel %vm156, %v115, 0
    %v580 = vsel %vm156, %v123, 0
    %582 = vmatpush.msra.mxu0 0.0
    %583 = vmatpush.msra.mxu0 0.0
    %584 = vmatpush.msra.mxu0 0.0
    %585 = vmatpush.msra.mxu0 0.0
    %586 = vmatpush.msra.mxu0 0.0
    %587 = vmatpush.msra.mxu0 0.0
    %588 = vmatpush.msra.mxu0 0.0
    %589 = vmatpush.msra.mxu0 0.0
    %590 = vmatpush.msra.mxu0 %v138
    %591 = vmatpush.msra.mxu0 %v137
    %592 = vmatpush.msra.mxu0 %v136
    %593 = vmatpush.msra.mxu0 %v135
    %594 = vmatpush.msra.mxu0 %v134
    %595 = vmatpush.msra.mxu0 %v133
    %596 = vmatpush.msra.mxu0 %v132
    %597 = vmatpush.msra.mxu0 %v131
    %598 = vmatmul.f32.gmra.mxu0 %v559
    %v599 = vpop.f32.mrf.mxu0
    %v600 = vadd.f32 %v367, %v599
    %601 = vmatmul.f32.gmra.mxu0 %v158
    %v602 = vpop.f32.mrf.mxu0
    %v603 = vadd.f32 %v370, %v602
    %604 = vmatmul.f32.gmra.mxu0 %v161
    %v605 = vpop.f32.mrf.mxu0
    %v606 = vadd.f32 %v373, %v605
    %607 = vmatmul.f32.gmra.mxu0 %v164
    %v608 = vpop.f32.mrf.mxu0
    %v609 = vadd.f32 %v376, %v608
    %610 = vmatmul.f32.gmra.mxu0 %v167
    %v611 = vpop.f32.mrf.mxu0
    %v612 = vadd.f32 %v379, %v611
    %613 = vmatmul.f32.gmra.mxu0 %v170
    %v614 = vpop.f32.mrf.mxu0
    %v615 = vadd.f32 %v382, %v614
    %616 = vmatmul.f32.gmra.mxu0 %v173
    %v617 = vpop.f32.mrf.mxu0
    %v618 = vadd.f32 %v385, %v617
    %619 = vmatmul.f32.gmra.mxu0 %v176
    %v620 = vpop.f32.mrf.mxu0
    %v621 = vadd.f32 %v388, %v620
    %622 = vmatmul.f32.gmra.mxu0 %v562
    %v623 = vpop.f32.mrf.mxu0
    %v624 = vadd.f32 %v391, %v623
    %625 = vmatmul.f32.gmra.mxu0 %v182
    %v626 = vpop.f32.mrf.mxu0
    %v627 = vadd.f32 %v394, %v626
    %628 = vmatmul.f32.gmra.mxu0 %v185
    %v629 = vpop.f32.mrf.mxu0
    %v630 = vadd.f32 %v397, %v629
    %631 = vmatmul.f32.gmra.mxu0 %v188
    %v632 = vpop.f32.mrf.mxu0
    %v633 = vadd.f32 %v400, %v632
    %634 = vmatmul.f32.gmra.mxu0 %v191
    %v635 = vpop.f32.mrf.mxu0
    %v636 = vadd.f32 %v403, %v635
    %637 = vmatmul.f32.gmra.mxu0 %v194
    %v638 = vpop.f32.mrf.mxu0
    %v639 = vadd.f32 %v406, %v638
    %640 = vmatmul.f32.gmra.mxu0 %v197
    %v641 = vpop.f32.mrf.mxu0
    %v642 = vadd.f32 %v409, %v641
    %643 = vmatmul.f32.gmra.mxu0 %v200
    %v644 = vpop.f32.mrf.mxu0
    %v645 = vadd.f32 %v412, %v644
    %646 = vmatmul.f32.gmra.mxu0 %v565
    %v647 = vpop.f32.mrf.mxu0
    %v648 = vadd.f32 %v415, %v647
    %649 = vmatmul.f32.gmra.mxu0 %v206
    %v650 = vpop.f32.mrf.mxu0
    %v651 = vadd.f32 %v418, %v650
    %652 = vmatmul.f32.gmra.mxu0 %v209
    %v653 = vpop.f32.mrf.mxu0
    %v654 = vadd.f32 %v421, %v653
    %655 = vmatmul.f32.gmra.mxu0 %v212
    %v656 = vpop.f32.mrf.mxu0
    %v657 = vadd.f32 %v424, %v656
    %658 = vmatmul.f32.gmra.mxu0 %v215
    %v659 = vpop.f32.mrf.mxu0
    %v660 = vadd.f32 %v427, %v659
    %661 = vmatmul.f32.gmra.mxu0 %v218
    %v662 = vpop.f32.mrf.mxu0
    %v663 = vadd.f32 %v430, %v662
    %664 = vmatmul.f32.gmra.mxu0 %v221
    %v665 = vpop.f32.mrf.mxu0
    %v666 = vadd.f32 %v433, %v665
    %667 = vmatmul.f32.gmra.mxu0 %v224
    %v668 = vpop.f32.mrf.mxu0
    %v669 = vadd.f32 %v436, %v668
    %670 = vmatmul.f32.gmra.mxu0 %v568
    %v671 = vpop.f32.mrf.mxu0
    %v672 = vadd.f32 %v439, %v671
    %673 = vmatmul.f32.gmra.mxu0 %v230
    %v674 = vpop.f32.mrf.mxu0
    %v675 = vadd.f32 %v442, %v674
    %676 = vmatmul.f32.gmra.mxu0 %v233
    %v677 = vpop.f32.mrf.mxu0
    %v678 = vadd.f32 %v445, %v677
    %679 = vmatmul.f32.gmra.mxu0 %v236
    %v680 = vpop.f32.mrf.mxu0
    %v681 = vadd.f32 %v448, %v680
    %682 = vmatmul.f32.gmra.mxu0 %v239
    %v683 = vpop.f32.mrf.mxu0
    %v684 = vadd.f32 %v451, %v683
    %685 = vmatmul.f32.gmra.mxu0 %v242
    %v686 = vpop.f32.mrf.mxu0
    %v687 = vadd.f32 %v454, %v686
    %688 = vmatmul.f32.gmra.mxu0 %v245
    %v689 = vpop.f32.mrf.mxu0
    %v690 = vadd.f32 %v457, %v689
    %691 = vmatmul.f32.gmra.mxu0 %v248
    %v692 = vpop.f32.mrf.mxu0
    %v693 = vadd.f32 %v460, %v692
    %694 = vmatmul.f32.gmra.mxu0 %v571
    %v695 = vpop.f32.mrf.mxu0
    %v696 = vadd.f32 %v463, %v695
    %697 = vmatmul.f32.gmra.mxu0 %v254
    %v698 = vpop.f32.mrf.mxu0
    %v699 = vadd.f32 %v466, %v698
    %700 = vmatmul.f32.gmra.mxu0 %v257
    %v701 = vpop.f32.mrf.mxu0
    %v702 = vadd.f32 %v469, %v701
    %703 = vmatmul.f32.gmra.mxu0 %v260
    %v704 = vpop.f32.mrf.mxu0
    %v705 = vadd.f32 %v472, %v704
    %706 = vmatmul.f32.gmra.mxu0 %v263
    %v707 = vpop.f32.mrf.mxu0
    %v708 = vadd.f32 %v475, %v707
    %709 = vmatmul.f32.gmra.mxu0 %v266
    %v710 = vpop.f32.mrf.mxu0
    %v711 = vadd.f32 %v478, %v710
    %712 = vmatmul.f32.gmra.mxu0 %v269
    %v713 = vpop.f32.mrf.mxu0
    %v714 = vadd.f32 %v481, %v713
    %715 = vmatmul.f32.gmra.mxu0 %v272
    %v716 = vpop.f32.mrf.mxu0
    %v717 = vadd.f32 %v484, %v716
    %718 = vmatmul.f32.gmra.mxu0 %v574
    %v719 = vpop.f32.mrf.mxu0
    %v720 = vadd.f32 %v487, %v719
    %721 = vmatmul.f32.gmra.mxu0 %v278
    %v722 = vpop.f32.mrf.mxu0
    %v723 = vadd.f32 %v490, %v722
    %724 = vmatmul.f32.gmra.mxu0 %v281
    %v725 = vpop.f32.mrf.mxu0
    %v726 = vadd.f32 %v493, %v725
    %727 = vmatmul.f32.gmra.mxu0 %v284
    %v728 = vpop.f32.mrf.mxu0
    %v729 = vadd.f32 %v496, %v728
    %730 = vmatmul.f32.gmra.mxu0 %v287
    %v731 = vpop.f32.mrf.mxu0
    %v732 = vadd.f32 %v499, %v731
    %733 = vmatmul.f32.gmra.mxu0 %v290
    %v734 = vpop.f32.mrf.mxu0
    %v735 = vadd.f32 %v502, %v734
    %736 = vmatmul.f32.gmra.mxu0 %v293
    %v737 = vpop.f32.mrf.mxu0
    %v738 = vadd.f32 %v505, %v737
    %739 = vmatmul.f32.gmra.mxu0 %v296
    %v740 = vpop.f32.mrf.mxu0
    %v741 = vadd.f32 %v508, %v740
    %742 = vmatmul.f32.gmra.mxu0 %v577
    %v743 = vpop.f32.mrf.mxu0
    %v744 = vadd.f32 %v511, %v743
    %745 = vmatmul.f32.gmra.mxu0 %v302
    %v746 = vpop.f32.mrf.mxu0
    %v747 = vadd.f32 %v514, %v746
    %748 = vmatmul.f32.gmra.mxu0 %v305
    %v749 = vpop.f32.mrf.mxu0
    %v750 = vadd.f32 %v517, %v749
    %751 = vmatmul.f32.gmra.mxu0 %v308
    %v752 = vpop.f32.mrf.mxu0
    %v753 = vadd.f32 %v520, %v752
    %754 = vmatmul.f32.gmra.mxu0 %v311
    %v755 = vpop.f32.mrf.mxu0
    %v756 = vadd.f32 %v523, %v755
    %757 = vmatmul.f32.gmra.mxu0 %v314
    %v758 = vpop.f32.mrf.mxu0
    %v759 = vadd.f32 %v526, %v758
    %760 = vmatmul.f32.gmra.mxu0 %v317
    %v761 = vpop.f32.mrf.mxu0
    %v762 = vadd.f32 %v529, %v761
    %763 = vmatmul.f32.gmra.mxu0 %v320
    %v764 = vpop.f32.mrf.mxu0
    %v765 = vadd.f32 %v532, %v764
    %766 = vmatmul.f32.gmra.mxu0 %v580
    %v767 = vpop.f32.mrf.mxu0
    %v768 = vadd.f32 %v535, %v767
    %769 = vmatmul.f32.gmra.mxu0 %v326
    %v770 = vpop.f32.mrf.mxu0
    %v771 = vadd.f32 %v538, %v770
    %772 = vmatmul.f32.gmra.mxu0 %v329
    %v773 = vpop.f32.mrf.mxu0
    %v774 = vadd.f32 %v541, %v773
    %775 = vmatmul.f32.gmra.mxu0 %v332
    %v776 = vpop.f32.mrf.mxu0
    %v777 = vadd.f32 %v544, %v776
    %778 = vmatmul.f32.gmra.mxu0 %v335
    %v779 = vpop.f32.mrf.mxu0
    %v780 = vadd.f32 %v547, %v779
    %781 = vmatmul.f32.gmra.mxu0 %v338
    %v782 = vpop.f32.mrf.mxu0
    %v783 = vadd.f32 %v550, %v782
    %784 = vmatmul.f32.gmra.mxu0 %v341
    %v785 = vpop.f32.mrf.mxu0
    %v786 = vadd.f32 %v553, %v785
    %787 = vmatmul.f32.gmra.mxu0 %v344
    %v788 = vpop.f32.mrf.mxu0
    %v789 = vadd.f32 %v556, %v788
    %790 = vdwg.mxu0
    %v791 = vld [vmem:[%s0 + $0x240] sm:$0xff]
    %v792 = vld [vmem:[%s0 + $0x248] sm:$0xff]
    %v793 = vld [vmem:[%s0 + $0x250] sm:$0xff]
    %v794 = vld [vmem:[%s0 + $0x258] sm:$0xff]
    %v795 = vld [vmem:[%s0 + $0x260] sm:$0xff]
    %v796 = vld [vmem:[%s0 + $0x268] sm:$0xff]
    %v797 = vld [vmem:[%s0 + $0x270] sm:$0xff]
    %v798 = vld [vmem:[%s0 + $0x278] sm:$0xff]
    %s799 = scalar_lea.vmem %s1, 128
    %v800 = vld [vmem:[%s799] sm:$0xff]
    %v801 = vld [vmem:[%s799 + $0x8] sm:$0xff]
    %v802 = vld [vmem:[%s799 + $0x10] sm:$0xff]
    %v803 = vld [vmem:[%s799 + $0x18] sm:$0xff]
    %v804 = vld [vmem:[%s799 + $0x20] sm:$0xff]
    %v805 = vld [vmem:[%s799 + $0x28] sm:$0xff]
    %v806 = vld [vmem:[%s799 + $0x30] sm:$0xff]
    %v807 = vld [vmem:[%s799 + $0x38] sm:$0xff]
    %v809 = vsel %vm156, %v791, 0
    %v812 = vsel %vm156, %v792, 0
    %v815 = vsel %vm156, %v793, 0
    %v818 = vsel %vm156, %v794, 0
    %v821 = vsel %vm156, %v795, 0
    %v824 = vsel %vm156, %v796, 0
    %v827 = vsel %vm156, %v797, 0
    %v830 = vsel %vm156, %v798, 0
    %832 = vmatpush.msra.mxu0 0.0
    %833 = vmatpush.msra.mxu0 0.0
    %834 = vmatpush.msra.mxu0 0.0
    %835 = vmatpush.msra.mxu0 0.0
    %836 = vmatpush.msra.mxu0 0.0
    %837 = vmatpush.msra.mxu0 0.0
    %838 = vmatpush.msra.mxu0 0.0
    %839 = vmatpush.msra.mxu0 0.0
    %840 = vmatpush.msra.mxu0 %v807
    %841 = vmatpush.msra.mxu0 %v806
    %842 = vmatpush.msra.mxu0 %v805
    %843 = vmatpush.msra.mxu0 %v804
    %844 = vmatpush.msra.mxu0 %v803
    %845 = vmatpush.msra.mxu0 %v802
    %846 = vmatpush.msra.mxu0 %v801
    %847 = vmatpush.msra.mxu0 %v800
    %848 = vmatmul.f32.gmra.mxu0 %v562
    %v849 = vpop.f32.mrf.mxu0
    %v850 = vadd.f32 0.0, %v849
    %851 = vmatmul.f32.gmra.mxu0 %v182
    %v852 = vpop.f32.mrf.mxu0
    %v853 = vadd.f32 0.0, %v852
    %854 = vmatmul.f32.gmra.mxu0 %v185
    %v855 = vpop.f32.mrf.mxu0
    %v856 = vadd.f32 0.0, %v855
    %857 = vmatmul.f32.gmra.mxu0 %v188
    %v858 = vpop.f32.mrf.mxu0
    %v859 = vadd.f32 0.0, %v858
    %860 = vmatmul.f32.gmra.mxu0 %v191
    %v861 = vpop.f32.mrf.mxu0
    %v862 = vadd.f32 0.0, %v861
    %863 = vmatmul.f32.gmra.mxu0 %v194
    %v864 = vpop.f32.mrf.mxu0
    %v865 = vadd.f32 0.0, %v864
    %866 = vmatmul.f32.gmra.mxu0 %v197
    %v867 = vpop.f32.mrf.mxu0
    %v868 = vadd.f32 0.0, %v867
    %869 = vmatmul.f32.gmra.mxu0 %v200
    %v870 = vpop.f32.mrf.mxu0
    %v871 = vadd.f32 0.0, %v870
    %872 = vmatmul.f32.gmra.mxu0 %v565
    %v873 = vpop.f32.mrf.mxu0
    %v874 = vadd.f32 0.0, %v873
    %875 = vmatmul.f32.gmra.mxu0 %v206
    %v876 = vpop.f32.mrf.mxu0
    %v877 = vadd.f32 0.0, %v876
    %878 = vmatmul.f32.gmra.mxu0 %v209
    %v879 = vpop.f32.mrf.mxu0
    %v880 = vadd.f32 0.0, %v879
    %881 = vmatmul.f32.gmra.mxu0 %v212
    %v882 = vpop.f32.mrf.mxu0
    %v883 = vadd.f32 0.0, %v882
    %884 = vmatmul.f32.gmra.mxu0 %v215
    %v885 = vpop.f32.mrf.mxu0
    %v886 = vadd.f32 0.0, %v885
    %887 = vmatmul.f32.gmra.mxu0 %v218
    %v888 = vpop.f32.mrf.mxu0
    %v889 = vadd.f32 0.0, %v888
    %890 = vmatmul.f32.gmra.mxu0 %v221
    %v891 = vpop.f32.mrf.mxu0
    %v892 = vadd.f32 0.0, %v891
    %893 = vmatmul.f32.gmra.mxu0 %v224
    %v894 = vpop.f32.mrf.mxu0
    %v895 = vadd.f32 0.0, %v894
    %896 = vmatmul.f32.gmra.mxu0 %v568
    %v897 = vpop.f32.mrf.mxu0
    %v898 = vadd.f32 0.0, %v897
    %899 = vmatmul.f32.gmra.mxu0 %v230
    %v900 = vpop.f32.mrf.mxu0
    %v901 = vadd.f32 0.0, %v900
    %902 = vmatmul.f32.gmra.mxu0 %v233
    %v903 = vpop.f32.mrf.mxu0
    %v904 = vadd.f32 0.0, %v903
    %905 = vmatmul.f32.gmra.mxu0 %v236
    %v906 = vpop.f32.mrf.mxu0
    %v907 = vadd.f32 0.0, %v906
    %908 = vmatmul.f32.gmra.mxu0 %v239
    %v909 = vpop.f32.mrf.mxu0
    %v910 = vadd.f32 0.0, %v909
    %911 = vmatmul.f32.gmra.mxu0 %v242
    %v912 = vpop.f32.mrf.mxu0
    %v913 = vadd.f32 0.0, %v912
    %914 = vmatmul.f32.gmra.mxu0 %v245
    %v915 = vpop.f32.mrf.mxu0
    %v916 = vadd.f32 0.0, %v915
    %917 = vmatmul.f32.gmra.mxu0 %v248
    %v918 = vpop.f32.mrf.mxu0
    %v919 = vadd.f32 0.0, %v918
    %920 = vmatmul.f32.gmra.mxu0 %v571
    %v921 = vpop.f32.mrf.mxu0
    %v922 = vadd.f32 0.0, %v921
    %923 = vmatmul.f32.gmra.mxu0 %v254
    %v924 = vpop.f32.mrf.mxu0
    %v925 = vadd.f32 0.0, %v924
    %926 = vmatmul.f32.gmra.mxu0 %v257
    %v927 = vpop.f32.mrf.mxu0
    %v928 = vadd.f32 0.0, %v927
    %929 = vmatmul.f32.gmra.mxu0 %v260
    %v930 = vpop.f32.mrf.mxu0
    %v931 = vadd.f32 0.0, %v930
    %932 = vmatmul.f32.gmra.mxu0 %v263
    %v933 = vpop.f32.mrf.mxu0
    %v934 = vadd.f32 0.0, %v933
    %935 = vmatmul.f32.gmra.mxu0 %v266
    %v936 = vpop.f32.mrf.mxu0
    %v937 = vadd.f32 0.0, %v936
    %938 = vmatmul.f32.gmra.mxu0 %v269
    %v939 = vpop.f32.mrf.mxu0
    %v940 = vadd.f32 0.0, %v939
    %941 = vmatmul.f32.gmra.mxu0 %v272
    %v942 = vpop.f32.mrf.mxu0
    %v943 = vadd.f32 0.0, %v942
    %944 = vmatmul.f32.gmra.mxu0 %v574
    %v945 = vpop.f32.mrf.mxu0
    %v946 = vadd.f32 0.0, %v945
    %947 = vmatmul.f32.gmra.mxu0 %v278
    %v948 = vpop.f32.mrf.mxu0
    %v949 = vadd.f32 0.0, %v948
    %950 = vmatmul.f32.gmra.mxu0 %v281
    %v951 = vpop.f32.mrf.mxu0
    %v952 = vadd.f32 0.0, %v951
    %953 = vmatmul.f32.gmra.mxu0 %v284
    %v954 = vpop.f32.mrf.mxu0
    %v955 = vadd.f32 0.0, %v954
    %956 = vmatmul.f32.gmra.mxu0 %v287
    %v957 = vpop.f32.mrf.mxu0
    %v958 = vadd.f32 0.0, %v957
    %959 = vmatmul.f32.gmra.mxu0 %v290
    %v960 = vpop.f32.mrf.mxu0
    %v961 = vadd.f32 0.0, %v960
    %962 = vmatmul.f32.gmra.mxu0 %v293
    %v963 = vpop.f32.mrf.mxu0
    %v964 = vadd.f32 0.0, %v963
    %965 = vmatmul.f32.gmra.mxu0 %v296
    %v966 = vpop.f32.mrf.mxu0
    %v967 = vadd.f32 0.0, %v966
    %968 = vmatmul.f32.gmra.mxu0 %v577
    %v969 = vpop.f32.mrf.mxu0
    %v970 = vadd.f32 0.0, %v969
    %971 = vmatmul.f32.gmra.mxu0 %v302
    %v972 = vpop.f32.mrf.mxu0
    %v973 = vadd.f32 0.0, %v972
    %974 = vmatmul.f32.gmra.mxu0 %v305
    %v975 = vpop.f32.mrf.mxu0
    %v976 = vadd.f32 0.0, %v975
    %977 = vmatmul.f32.gmra.mxu0 %v308
    %v978 = vpop.f32.mrf.mxu0
    %v979 = vadd.f32 0.0, %v978
    %980 = vmatmul.f32.gmra.mxu0 %v311
    %v981 = vpop.f32.mrf.mxu0
    %v982 = vadd.f32 0.0, %v981
    %983 = vmatmul.f32.gmra.mxu0 %v314
    %v984 = vpop.f32.mrf.mxu0
    %v985 = vadd.f32 0.0, %v984
    %986 = vmatmul.f32.gmra.mxu0 %v317
    %v987 = vpop.f32.mrf.mxu0
    %v988 = vadd.f32 0.0, %v987
    %989 = vmatmul.f32.gmra.mxu0 %v320
    %v990 = vpop.f32.mrf.mxu0
    %v991 = vadd.f32 0.0, %v990
    %992 = vmatmul.f32.gmra.mxu0 %v580
    %v993 = vpop.f32.mrf.mxu0
    %v994 = vadd.f32 0.0, %v993
    %995 = vmatmul.f32.gmra.mxu0 %v326
    %v996 = vpop.f32.mrf.mxu0
    %v997 = vadd.f32 0.0, %v996
    %998 = vmatmul.f32.gmra.mxu0 %v329
    %v999 = vpop.f32.mrf.mxu0
    %v1000 = vadd.f32 0.0, %v999
    %1001 = vmatmul.f32.gmra.mxu0 %v332
    %v1002 = vpop.f32.mrf.mxu0
    %v1003 = vadd.f32 0.0, %v1002
    %1004 = vmatmul.f32.gmra.mxu0 %v335
    %v1005 = vpop.f32.mrf.mxu0
    %v1006 = vadd.f32 0.0, %v1005
    %1007 = vmatmul.f32.gmra.mxu0 %v338
    %v1008 = vpop.f32.mrf.mxu0
    %v1009 = vadd.f32 0.0, %v1008
    %1010 = vmatmul.f32.gmra.mxu0 %v341
    %v1011 = vpop.f32.mrf.mxu0
    %v1012 = vadd.f32 0.0, %v1011
    %1013 = vmatmul.f32.gmra.mxu0 %v344
    %v1014 = vpop.f32.mrf.mxu0
    %v1015 = vadd.f32 0.0, %v1014
    %1016 = vmatmul.f32.gmra.mxu0 %v809
    %v1017 = vpop.f32.mrf.mxu0
    %v1018 = vadd.f32 0.0, %v1017
    %1019 = vmatmul.f32.gmra.mxu0 %v812
    %v1020 = vpop.f32.mrf.mxu0
    %v1021 = vadd.f32 0.0, %v1020
    %1022 = vmatmul.f32.gmra.mxu0 %v815
    %v1023 = vpop.f32.mrf.mxu0
    %v1024 = vadd.f32 0.0, %v1023
    %1025 = vmatmul.f32.gmra.mxu0 %v818
    %v1026 = vpop.f32.mrf.mxu0
    %v1027 = vadd.f32 0.0, %v1026
    %1028 = vmatmul.f32.gmra.mxu0 %v821
    %v1029 = vpop.f32.mrf.mxu0
    %v1030 = vadd.f32 0.0, %v1029
    %1031 = vmatmul.f32.gmra.mxu0 %v824
    %v1032 = vpop.f32.mrf.mxu0
    %v1033 = vadd.f32 0.0, %v1032
    %1034 = vmatmul.f32.gmra.mxu0 %v827
    %v1035 = vpop.f32.mrf.mxu0
    %v1036 = vadd.f32 0.0, %v1035
    %1037 = vmatmul.f32.gmra.mxu0 %v830
    %v1038 = vpop.f32.mrf.mxu0
    %v1039 = vadd.f32 0.0, %v1038
    %1040 = vdwg.mxu0
    %v1041 = vadd.f32 %v600, %v850
    %v1042 = vadd.f32 %v603, %v853
    %v1043 = vadd.f32 %v606, %v856
    %v1044 = vadd.f32 %v609, %v859
    %v1045 = vadd.f32 %v612, %v862
    %v1046 = vadd.f32 %v615, %v865
    %v1047 = vadd.f32 %v618, %v868
    %v1048 = vadd.f32 %v621, %v871
    %v1049 = vadd.f32 %v624, %v874
    %v1050 = vadd.f32 %v627, %v877
    %v1051 = vadd.f32 %v630, %v880
    %v1052 = vadd.f32 %v633, %v883
    %v1053 = vadd.f32 %v636, %v886
    %v1054 = vadd.f32 %v639, %v889
    %v1055 = vadd.f32 %v642, %v892
    %v1056 = vadd.f32 %v645, %v895
    %v1057 = vadd.f32 %v648, %v898
    %v1058 = vadd.f32 %v651, %v901
    %v1059 = vadd.f32 %v654, %v904
    %v1060 = vadd.f32 %v657, %v907
    %v1061 = vadd.f32 %v660, %v910
    %v1062 = vadd.f32 %v663, %v913
    %v1063 = vadd.f32 %v666, %v916
    %v1064 = vadd.f32 %v669, %v919
    %v1065 = vadd.f32 %v672, %v922
    %v1066 = vadd.f32 %v675, %v925
    %v1067 = vadd.f32 %v678, %v928
    %v1068 = vadd.f32 %v681, %v931
    %v1069 = vadd.f32 %v684, %v934
    %v1070 = vadd.f32 %v687, %v937
    %v1071 = vadd.f32 %v690, %v940
    %v1072 = vadd.f32 %v693, %v943
    %v1073 = vadd.f32 %v696, %v946
    %v1074 = vadd.f32 %v699, %v949
    %v1075 = vadd.f32 %v702, %v952
    %v1076 = vadd.f32 %v705, %v955
    %v1077 = vadd.f32 %v708, %v958
    %v1078 = vadd.f32 %v711, %v961
    %v1079 = vadd.f32 %v714, %v964
    %v1080 = vadd.f32 %v717, %v967
    %v1081 = vadd.f32 %v720, %v970
    %v1082 = vadd.f32 %v723, %v973
    %v1083 = vadd.f32 %v726, %v976
    %v1084 = vadd.f32 %v729, %v979
    %v1085 = vadd.f32 %v732, %v982
    %v1086 = vadd.f32 %v735, %v985
    %v1087 = vadd.f32 %v738, %v988
    %v1088 = vadd.f32 %v741, %v991
    %v1089 = vadd.f32 %v744, %v994
    %v1090 = vadd.f32 %v747, %v997
    %v1091 = vadd.f32 %v750, %v1000
    %v1092 = vadd.f32 %v753, %v1003
    %v1093 = vadd.f32 %v756, %v1006
    %v1094 = vadd.f32 %v759, %v1009
    %v1095 = vadd.f32 %v762, %v1012
    %v1096 = vadd.f32 %v765, %v1015
    %v1097 = vadd.f32 %v768, %v1018
    %v1098 = vadd.f32 %v771, %v1021
    %v1099 = vadd.f32 %v774, %v1024
    %v1100 = vadd.f32 %v777, %v1027
    %v1101 = vadd.f32 %v780, %v1030
    %v1102 = vadd.f32 %v783, %v1033
    %v1103 = vadd.f32 %v786, %v1036
    %v1104 = vadd.f32 %v789, %v1039
    %v1105 = vld [vmem:[%s0 + $0x248] sm:$0xff]
    %v1106 = vld [vmem:[%s0 + $0x250] sm:$0xff]
    %v1107 = vld [vmem:[%s0 + $0x258] sm:$0xff]
    %v1108 = vld [vmem:[%s0 + $0x260] sm:$0xff]
    %v1109 = vld [vmem:[%s0 + $0x268] sm:$0xff]
    %v1110 = vld [vmem:[%s0 + $0x270] sm:$0xff]
    %v1111 = vld [vmem:[%s0 + $0x278] sm:$0xff]
    %v1112 = vld [vmem:[%s0 + $0x280] sm:$0xff]
    %s1113 = scalar_lea.vmem %s1, 192
    %v1114 = vld [vmem:[%s1113] sm:$0xff]
    %v1115 = vld [vmem:[%s1113 + $0x8] sm:$0xff]
    %v1116 = vld [vmem:[%s1113 + $0x10] sm:$0xff]
    %v1117 = vld [vmem:[%s1113 + $0x18] sm:$0xff]
    %v1118 = vld [vmem:[%s1113 + $0x20] sm:$0xff]
    %v1119 = vld [vmem:[%s1113 + $0x28] sm:$0xff]
    %v1120 = vld [vmem:[%s1113 + $0x30] sm:$0xff]
    %v1121 = vld [vmem:[%s1113 + $0x38] sm:$0xff]
    %v1123 = vsel %vm156, %v1105, 0
    %v1126 = vsel %vm156, %v1106, 0
    %v1129 = vsel %vm156, %v1107, 0
    %v1132 = vsel %vm156, %v1108, 0
    %v1135 = vsel %vm156, %v1109, 0
    %v1138 = vsel %vm156, %v1110, 0
    %v1141 = vsel %vm156, %v1111, 0
    %v1144 = vsel %vm156, %v1112, 0
    %1146 = vmatpush.msra.mxu0 0.0
    %1147 = vmatpush.msra.mxu0 0.0
    %1148 = vmatpush.msra.mxu0 0.0
    %1149 = vmatpush.msra.mxu0 0.0
    %1150 = vmatpush.msra.mxu0 0.0
    %1151 = vmatpush.msra.mxu0 0.0
    %1152 = vmatpush.msra.mxu0 0.0
    %1153 = vmatpush.msra.mxu0 0.0
    %1154 = vmatpush.msra.mxu0 %v1121
    %1155 = vmatpush.msra.mxu0 %v1120
    %1156 = vmatpush.msra.mxu0 %v1119
    %1157 = vmatpush.msra.mxu0 %v1118
    %1158 = vmatpush.msra.mxu0 %v1117
    %1159 = vmatpush.msra.mxu0 %v1116
    %1160 = vmatpush.msra.mxu0 %v1115
    %1161 = vmatpush.msra.mxu0 %v1114
    %1162 = vmatmul.f32.gmra.mxu0 %v182
    %v1163 = vpop.f32.mrf.mxu0
    %v1164 = vadd.f32 0.0, %v1163
    %1165 = vmatmul.f32.gmra.mxu0 %v185
    %v1166 = vpop.f32.mrf.mxu0
    %v1167 = vadd.f32 0.0, %v1166
    %1168 = vmatmul.f32.gmra.mxu0 %v188
    %v1169 = vpop.f32.mrf.mxu0
    %v1170 = vadd.f32 0.0, %v1169
    %1171 = vmatmul.f32.gmra.mxu0 %v191
    %v1172 = vpop.f32.mrf.mxu0
    %v1173 = vadd.f32 0.0, %v1172
    %1174 = vmatmul.f32.gmra.mxu0 %v194
    %v1175 = vpop.f32.mrf.mxu0
    %v1176 = vadd.f32 0.0, %v1175
    %1177 = vmatmul.f32.gmra.mxu0 %v197
    %v1178 = vpop.f32.mrf.mxu0
    %v1179 = vadd.f32 0.0, %v1178
    %1180 = vmatmul.f32.gmra.mxu0 %v200
    %v1181 = vpop.f32.mrf.mxu0
    %v1182 = vadd.f32 0.0, %v1181
    %1183 = vmatmul.f32.gmra.mxu0 %v203
    %v1184 = vpop.f32.mrf.mxu0
    %v1185 = vadd.f32 0.0, %v1184
    %1186 = vmatmul.f32.gmra.mxu0 %v206
    %v1187 = vpop.f32.mrf.mxu0
    %v1188 = vadd.f32 0.0, %v1187
    %1189 = vmatmul.f32.gmra.mxu0 %v209
    %v1190 = vpop.f32.mrf.mxu0
    %v1191 = vadd.f32 0.0, %v1190
    %1192 = vmatmul.f32.gmra.mxu0 %v212
    %v1193 = vpop.f32.mrf.mxu0
    %v1194 = vadd.f32 0.0, %v1193
    %1195 = vmatmul.f32.gmra.mxu0 %v215
    %v1196 = vpop.f32.mrf.mxu0
    %v1197 = vadd.f32 0.0, %v1196
    %1198 = vmatmul.f32.gmra.mxu0 %v218
    %v1199 = vpop.f32.mrf.mxu0
    %v1200 = vadd.f32 0.0, %v1199
    %1201 = vmatmul.f32.gmra.mxu0 %v221
    %v1202 = vpop.f32.mrf.mxu0
    %v1203 = vadd.f32 0.0, %v1202
    %1204 = vmatmul.f32.gmra.mxu0 %v224
    %v1205 = vpop.f32.mrf.mxu0
    %v1206 = vadd.f32 0.0, %v1205
    %1207 = vmatmul.f32.gmra.mxu0 %v227
    %v1208 = vpop.f32.mrf.mxu0
    %v1209 = vadd.f32 0.0, %v1208
    %1210 = vmatmul.f32.gmra.mxu0 %v230
    %v1211 = vpop.f32.mrf.mxu0
    %v1212 = vadd.f32 0.0, %v1211
    %1213 = vmatmul.f32.gmra.mxu0 %v233
    %v1214 = vpop.f32.mrf.mxu0
    %v1215 = vadd.f32 0.0, %v1214
    %1216 = vmatmul.f32.gmra.mxu0 %v236
    %v1217 = vpop.f32.mrf.mxu0
    %v1218 = vadd.f32 0.0, %v1217
    %1219 = vmatmul.f32.gmra.mxu0 %v239
    %v1220 = vpop.f32.mrf.mxu0
    %v1221 = vadd.f32 0.0, %v1220
    %1222 = vmatmul.f32.gmra.mxu0 %v242
    %v1223 = vpop.f32.mrf.mxu0
    %v1224 = vadd.f32 0.0, %v1223
    %1225 = vmatmul.f32.gmra.mxu0 %v245
    %v1226 = vpop.f32.mrf.mxu0
    %v1227 = vadd.f32 0.0, %v1226
    %1228 = vmatmul.f32.gmra.mxu0 %v248
    %v1229 = vpop.f32.mrf.mxu0
    %v1230 = vadd.f32 0.0, %v1229
    %1231 = vmatmul.f32.gmra.mxu0 %v251
    %v1232 = vpop.f32.mrf.mxu0
    %v1233 = vadd.f32 0.0, %v1232
    %1234 = vmatmul.f32.gmra.mxu0 %v254
    %v1235 = vpop.f32.mrf.mxu0
    %v1236 = vadd.f32 0.0, %v1235
    %1237 = vmatmul.f32.gmra.mxu0 %v257
    %v1238 = vpop.f32.mrf.mxu0
    %v1239 = vadd.f32 0.0, %v1238
    %1240 = vmatmul.f32.gmra.mxu0 %v260
    %v1241 = vpop.f32.mrf.mxu0
    %v1242 = vadd.f32 0.0, %v1241
    %1243 = vmatmul.f32.gmra.mxu0 %v263
    %v1244 = vpop.f32.mrf.mxu0
    %v1245 = vadd.f32 0.0, %v1244
    %1246 = vmatmul.f32.gmra.mxu0 %v266
    %v1247 = vpop.f32.mrf.mxu0
    %v1248 = vadd.f32 0.0, %v1247
    %1249 = vmatmul.f32.gmra.mxu0 %v269
    %v1250 = vpop.f32.mrf.mxu0
    %v1251 = vadd.f32 0.0, %v1250
    %1252 = vmatmul.f32.gmra.mxu0 %v272
    %v1253 = vpop.f32.mrf.mxu0
    %v1254 = vadd.f32 0.0, %v1253
    %1255 = vmatmul.f32.gmra.mxu0 %v275
    %v1256 = vpop.f32.mrf.mxu0
    %v1257 = vadd.f32 0.0, %v1256
    %1258 = vmatmul.f32.gmra.mxu0 %v278
    %v1259 = vpop.f32.mrf.mxu0
    %v1260 = vadd.f32 0.0, %v1259
    %1261 = vmatmul.f32.gmra.mxu0 %v281
    %v1262 = vpop.f32.mrf.mxu0
    %v1263 = vadd.f32 0.0, %v1262
    %1264 = vmatmul.f32.gmra.mxu0 %v284
    %v1265 = vpop.f32.mrf.mxu0
    %v1266 = vadd.f32 0.0, %v1265
    %1267 = vmatmul.f32.gmra.mxu0 %v287
    %v1268 = vpop.f32.mrf.mxu0
    %v1269 = vadd.f32 0.0, %v1268
    %1270 = vmatmul.f32.gmra.mxu0 %v290
    %v1271 = vpop.f32.mrf.mxu0
    %v1272 = vadd.f32 0.0, %v1271
    %1273 = vmatmul.f32.gmra.mxu0 %v293
    %v1274 = vpop.f32.mrf.mxu0
    %v1275 = vadd.f32 0.0, %v1274
    %1276 = vmatmul.f32.gmra.mxu0 %v296
    %v1277 = vpop.f32.mrf.mxu0
    %v1278 = vadd.f32 0.0, %v1277
    %1279 = vmatmul.f32.gmra.mxu0 %v299
    %v1280 = vpop.f32.mrf.mxu0
    %v1281 = vadd.f32 0.0, %v1280
    %1282 = vmatmul.f32.gmra.mxu0 %v302
    %v1283 = vpop.f32.mrf.mxu0
    %v1284 = vadd.f32 0.0, %v1283
    %1285 = vmatmul.f32.gmra.mxu0 %v305
    %v1286 = vpop.f32.mrf.mxu0
    %v1287 = vadd.f32 0.0, %v1286
    %1288 = vmatmul.f32.gmra.mxu0 %v308
    %v1289 = vpop.f32.mrf.mxu0
    %v1290 = vadd.f32 0.0, %v1289
    %1291 = vmatmul.f32.gmra.mxu0 %v311
    %v1292 = vpop.f32.mrf.mxu0
    %v1293 = vadd.f32 0.0, %v1292
    %1294 = vmatmul.f32.gmra.mxu0 %v314
    %v1295 = vpop.f32.mrf.mxu0
    %v1296 = vadd.f32 0.0, %v1295
    %1297 = vmatmul.f32.gmra.mxu0 %v317
    %v1298 = vpop.f32.mrf.mxu0
    %v1299 = vadd.f32 0.0, %v1298
    %1300 = vmatmul.f32.gmra.mxu0 %v320
    %v1301 = vpop.f32.mrf.mxu0
    %v1302 = vadd.f32 0.0, %v1301
    %1303 = vmatmul.f32.gmra.mxu0 %v323
    %v1304 = vpop.f32.mrf.mxu0
    %v1305 = vadd.f32 0.0, %v1304
    %1306 = vmatmul.f32.gmra.mxu0 %v326
    %v1307 = vpop.f32.mrf.mxu0
    %v1308 = vadd.f32 0.0, %v1307
    %1309 = vmatmul.f32.gmra.mxu0 %v329
    %v1310 = vpop.f32.mrf.mxu0
    %v1311 = vadd.f32 0.0, %v1310
    %1312 = vmatmul.f32.gmra.mxu0 %v332
    %v1313 = vpop.f32.mrf.mxu0
    %v1314 = vadd.f32 0.0, %v1313
    %1315 = vmatmul.f32.gmra.mxu0 %v335
    %v1316 = vpop.f32.mrf.mxu0
    %v1317 = vadd.f32 0.0, %v1316
    %1318 = vmatmul.f32.gmra.mxu0 %v338
    %v1319 = vpop.f32.mrf.mxu0
    %v1320 = vadd.f32 0.0, %v1319
    %1321 = vmatmul.f32.gmra.mxu0 %v341
    %v1322 = vpop.f32.mrf.mxu0
    %v1323 = vadd.f32 0.0, %v1322
    %1324 = vmatmul.f32.gmra.mxu0 %v344
    %v1325 = vpop.f32.mrf.mxu0
    %v1326 = vadd.f32 0.0, %v1325
    %1327 = vmatmul.f32.gmra.mxu0 %v347
    %v1328 = vpop.f32.mrf.mxu0
    %v1329 = vadd.f32 0.0, %v1328
    %1330 = vmatmul.f32.gmra.mxu0 %v1123
    %v1331 = vpop.f32.mrf.mxu0
    %v1332 = vadd.f32 0.0, %v1331
    %1333 = vmatmul.f32.gmra.mxu0 %v1126
    %v1334 = vpop.f32.mrf.mxu0
    %v1335 = vadd.f32 0.0, %v1334
    %1336 = vmatmul.f32.gmra.mxu0 %v1129
    %v1337 = vpop.f32.mrf.mxu0
    %v1338 = vadd.f32 0.0, %v1337
    %1339 = vmatmul.f32.gmra.mxu0 %v1132
    %v1340 = vpop.f32.mrf.mxu0
    %v1341 = vadd.f32 0.0, %v1340
    %1342 = vmatmul.f32.gmra.mxu0 %v1135
    %v1343 = vpop.f32.mrf.mxu0
    %v1344 = vadd.f32 0.0, %v1343
    %1345 = vmatmul.f32.gmra.mxu0 %v1138
    %v1346 = vpop.f32.mrf.mxu0
    %v1347 = vadd.f32 0.0, %v1346
    %1348 = vmatmul.f32.gmra.mxu0 %v1141
    %v1349 = vpop.f32.mrf.mxu0
    %v1350 = vadd.f32 0.0, %v1349
    %1351 = vmatmul.f32.gmra.mxu0 %v1144
    %v1352 = vpop.f32.mrf.mxu0
    %v1353 = vadd.f32 0.0, %v1352
    %1354 = vdwg.mxu0
    %v1355 = vadd.f32 %v1041, %v1164
    %v1356 = vadd.f32 %v1042, %v1167
    %v1357 = vadd.f32 %v1043, %v1170
    %v1358 = vadd.f32 %v1044, %v1173
    %v1359 = vadd.f32 %v1045, %v1176
    %v1360 = vadd.f32 %v1046, %v1179
    %v1361 = vadd.f32 %v1047, %v1182
    %v1362 = vadd.f32 %v1048, %v1185
    %v1363 = vadd.f32 %v1049, %v1188
    %v1364 = vadd.f32 %v1050, %v1191
    %v1365 = vadd.f32 %v1051, %v1194
    %v1366 = vadd.f32 %v1052, %v1197
    %v1367 = vadd.f32 %v1053, %v1200
    %v1368 = vadd.f32 %v1054, %v1203
    %v1369 = vadd.f32 %v1055, %v1206
    %v1370 = vadd.f32 %v1056, %v1209
    %v1371 = vadd.f32 %v1057, %v1212
    %v1372 = vadd.f32 %v1058, %v1215
    %v1373 = vadd.f32 %v1059, %v1218
    %v1374 = vadd.f32 %v1060, %v1221
    %v1375 = vadd.f32 %v1061, %v1224
    %v1376 = vadd.f32 %v1062, %v1227
    %v1377 = vadd.f32 %v1063, %v1230
    %v1378 = vadd.f32 %v1064, %v1233
    %v1379 = vadd.f32 %v1065, %v1236
    %v1380 = vadd.f32 %v1066, %v1239
    %v1381 = vadd.f32 %v1067, %v1242
    %v1382 = vadd.f32 %v1068, %v1245
    %v1383 = vadd.f32 %v1069, %v1248
    %v1384 = vadd.f32 %v1070, %v1251
    %v1385 = vadd.f32 %v1071, %v1254
    %v1386 = vadd.f32 %v1072, %v1257
    %v1387 = vadd.f32 %v1073, %v1260
    %v1388 = vadd.f32 %v1074, %v1263
    %v1389 = vadd.f32 %v1075, %v1266
    %v1390 = vadd.f32 %v1076, %v1269
    %v1391 = vadd.f32 %v1077, %v1272
    %v1392 = vadd.f32 %v1078, %v1275
    %v1393 = vadd.f32 %v1079, %v1278
    %v1394 = vadd.f32 %v1080, %v1281
    %v1395 = vadd.f32 %v1081, %v1284
    %v1396 = vadd.f32 %v1082, %v1287
    %v1397 = vadd.f32 %v1083, %v1290
    %v1398 = vadd.f32 %v1084, %v1293
    %v1399 = vadd.f32 %v1085, %v1296
    %v1400 = vadd.f32 %v1086, %v1299
    %v1401 = vadd.f32 %v1087, %v1302
    %v1402 = vadd.f32 %v1088, %v1305
    %v1403 = vadd.f32 %v1089, %v1308
    %v1404 = vadd.f32 %v1090, %v1311
    %v1405 = vadd.f32 %v1091, %v1314
    %v1406 = vadd.f32 %v1092, %v1317
    %v1407 = vadd.f32 %v1093, %v1320
    %v1408 = vadd.f32 %v1094, %v1323
    %v1409 = vadd.f32 %v1095, %v1326
    %v1410 = vadd.f32 %v1096, %v1329
    %v1411 = vadd.f32 %v1097, %v1332
    %v1412 = vadd.f32 %v1098, %v1335
    %v1413 = vadd.f32 %v1099, %v1338
    %v1414 = vadd.f32 %v1100, %v1341
    %v1415 = vadd.f32 %v1101, %v1344
    %v1416 = vadd.f32 %v1102, %v1347
    %v1417 = vadd.f32 %v1103, %v1350
    %v1418 = vadd.f32 %v1104, %v1353
    %v1419 = vld [vmem:[%s2] sm:$0x1]
    %v1421 = vperm.slane %v1419, 0
    %v1423 = vadd.f32 %v1355, %v1421
    %v1424 = vadd.f32 %v1356, %v1421
    %v1425 = vadd.f32 %v1357, %v1421
    %v1426 = vadd.f32 %v1358, %v1421
    %v1427 = vadd.f32 %v1359, %v1421
    %v1428 = vadd.f32 %v1360, %v1421
    %v1429 = vadd.f32 %v1361, %v1421
    %v1430 = vadd.f32 %v1362, %v1421
    %v1431 = vadd.f32 %v1363, %v1421
    %v1432 = vadd.f32 %v1364, %v1421
    %v1433 = vadd.f32 %v1365, %v1421
    %v1434 = vadd.f32 %v1366, %v1421
    %v1435 = vadd.f32 %v1367, %v1421
    %v1436 = vadd.f32 %v1368, %v1421
    %v1437 = vadd.f32 %v1369, %v1421
    %v1438 = vadd.f32 %v1370, %v1421
    %v1439 = vadd.f32 %v1371, %v1421
    %v1440 = vadd.f32 %v1372, %v1421
    %v1441 = vadd.f32 %v1373, %v1421
    %v1442 = vadd.f32 %v1374, %v1421
    %v1443 = vadd.f32 %v1375, %v1421
    %v1444 = vadd.f32 %v1376, %v1421
    %v1445 = vadd.f32 %v1377, %v1421
    %v1446 = vadd.f32 %v1378, %v1421
    %v1447 = vadd.f32 %v1379, %v1421
    %v1448 = vadd.f32 %v1380, %v1421
    %v1449 = vadd.f32 %v1381, %v1421
    %v1450 = vadd.f32 %v1382, %v1421
    %v1451 = vadd.f32 %v1383, %v1421
    %v1452 = vadd.f32 %v1384, %v1421
    %v1453 = vadd.f32 %v1385, %v1421
    %v1454 = vadd.f32 %v1386, %v1421
    %v1455 = vadd.f32 %v1387, %v1421
    %v1456 = vadd.f32 %v1388, %v1421
    %v1457 = vadd.f32 %v1389, %v1421
    %v1458 = vadd.f32 %v1390, %v1421
    %v1459 = vadd.f32 %v1391, %v1421
    %v1460 = vadd.f32 %v1392, %v1421
    %v1461 = vadd.f32 %v1393, %v1421
    %v1462 = vadd.f32 %v1394, %v1421
    %v1463 = vadd.f32 %v1395, %v1421
    %v1464 = vadd.f32 %v1396, %v1421
    %v1465 = vadd.f32 %v1397, %v1421
    %v1466 = vadd.f32 %v1398, %v1421
    %v1467 = vadd.f32 %v1399, %v1421
    %v1468 = vadd.f32 %v1400, %v1421
    %v1469 = vadd.f32 %v1401, %v1421
    %v1470 = vadd.f32 %v1402, %v1421
    %v1471 = vadd.f32 %v1403, %v1421
    %v1472 = vadd.f32 %v1404, %v1421
    %v1473 = vadd.f32 %v1405, %v1421
    %v1474 = vadd.f32 %v1406, %v1421
    %v1475 = vadd.f32 %v1407, %v1421
    %v1476 = vadd.f32 %v1408, %v1421
    %v1477 = vadd.f32 %v1409, %v1421
    %v1478 = vadd.f32 %v1410, %v1421
    %v1479 = vadd.f32 %v1411, %v1421
    %v1480 = vadd.f32 %v1412, %v1421
    %v1481 = vadd.f32 %v1413, %v1421
    %v1482 = vadd.f32 %v1414, %v1421
    %v1483 = vadd.f32 %v1415, %v1421
    %v1484 = vadd.f32 %v1416, %v1421
    %v1485 = vadd.f32 %v1417, %v1421
    %v1486 = vadd.f32 %v1418, %v1421
    %v1487 = vmax.f32 %v1423, 0.0
    %v1488 = vmax.f32 %v1424, 0.0
    %v1489 = vmax.f32 %v1425, 0.0
    %v1490 = vmax.f32 %v1426, 0.0
    %v1491 = vmax.f32 %v1427, 0.0
    %v1492 = vmax.f32 %v1428, 0.0
    %v1493 = vmax.f32 %v1429, 0.0
    %v1494 = vmax.f32 %v1430, 0.0
    %v1495 = vmax.f32 %v1431, 0.0
    %v1496 = vmax.f32 %v1432, 0.0
    %v1497 = vmax.f32 %v1433, 0.0
    %v1498 = vmax.f32 %v1434, 0.0
    %v1499 = vmax.f32 %v1435, 0.0
    %v1500 = vmax.f32 %v1436, 0.0
    %v1501 = vmax.f32 %v1437, 0.0
    %v1502 = vmax.f32 %v1438, 0.0
    %v1503 = vmax.f32 %v1439, 0.0
    %v1504 = vmax.f32 %v1440, 0.0
    %v1505 = vmax.f32 %v1441, 0.0
    %v1506 = vmax.f32 %v1442, 0.0
    %v1507 = vmax.f32 %v1443, 0.0
    %v1508 = vmax.f32 %v1444, 0.0
    %v1509 = vmax.f32 %v1445, 0.0
    %v1510 = vmax.f32 %v1446, 0.0
    %v1511 = vmax.f32 %v1447, 0.0
    %v1512 = vmax.f32 %v1448, 0.0
    %v1513 = vmax.f32 %v1449, 0.0
    %v1514 = vmax.f32 %v1450, 0.0
    %v1515 = vmax.f32 %v1451, 0.0
    %v1516 = vmax.f32 %v1452, 0.0
    %v1517 = vmax.f32 %v1453, 0.0
    %v1518 = vmax.f32 %v1454, 0.0
    %v1519 = vmax.f32 %v1455, 0.0
    %v1520 = vmax.f32 %v1456, 0.0
    %v1521 = vmax.f32 %v1457, 0.0
    %v1522 = vmax.f32 %v1458, 0.0
    %v1523 = vmax.f32 %v1459, 0.0
    %v1524 = vmax.f32 %v1460, 0.0
    %v1525 = vmax.f32 %v1461, 0.0
    %v1526 = vmax.f32 %v1462, 0.0
    %v1527 = vmax.f32 %v1463, 0.0
    %v1528 = vmax.f32 %v1464, 0.0
    %v1529 = vmax.f32 %v1465, 0.0
    %v1530 = vmax.f32 %v1466, 0.0
    %v1531 = vmax.f32 %v1467, 0.0
    %v1532 = vmax.f32 %v1468, 0.0
    %v1533 = vmax.f32 %v1469, 0.0
    %v1534 = vmax.f32 %v1470, 0.0
    %v1535 = vmax.f32 %v1471, 0.0
    %v1536 = vmax.f32 %v1472, 0.0
    %v1537 = vmax.f32 %v1473, 0.0
    %v1538 = vmax.f32 %v1474, 0.0
    %v1539 = vmax.f32 %v1475, 0.0
    %v1540 = vmax.f32 %v1476, 0.0
    %v1541 = vmax.f32 %v1477, 0.0
    %v1542 = vmax.f32 %v1478, 0.0
    %v1543 = vmax.f32 %v1479, 0.0
    %v1544 = vmax.f32 %v1480, 0.0
    %v1545 = vmax.f32 %v1481, 0.0
    %v1546 = vmax.f32 %v1482, 0.0
    %v1547 = vmax.f32 %v1483, 0.0
    %v1548 = vmax.f32 %v1484, 0.0
    %v1549 = vmax.f32 %v1485, 0.0
    %v1550 = vmax.f32 %v1486, 0.0
    %v1551 = vld [vmem:[%s3] sm:$0xff]
    %v1552 = vld [vmem:[%s3 + $0x8] sm:$0xff]
    %v1553 = vld [vmem:[%s3 + $0x10] sm:$0xff]
    %v1554 = vld [vmem:[%s3 + $0x18] sm:$0xff]
    %s1555 = scalar_lea.vmem %s3, 32
    %v1556 = vld [vmem:[%s1555] sm:$0xff]
    %v1557 = vld [vmem:[%s1555 + $0x8] sm:$0xff]
    %v1558 = vld [vmem:[%s1555 + $0x10] sm:$0xff]
    %v1559 = vld [vmem:[%s1555 + $0x18] sm:$0xff]
    %vm1560 = vcmask 261120
    %v1562 = vsel %vm1560, %v1488, 0
    %v1565 = vsel %vm1560, %v1490, 0
    %v1568 = vsel %vm1560, %v1492, 0
    %v1571 = vsel %vm1560, %v1504, 0
    %v1574 = vsel %vm1560, %v1506, 0
    %v1577 = vsel %vm1560, %v1508, 0
    %v1580 = vsel %vm1560, %v1520, 0
    %v1583 = vsel %vm1560, %v1522, 0
    %v1586 = vsel %vm1560, %v1524, 0
    %1588 = vmatpush.msra.mxu0 0.0
    %1589 = vmatpush.msra.mxu0 0.0
    %1590 = vmatpush.msra.mxu0 0.0
    %1591 = vmatpush.msra.mxu0 0.0
    %1592 = vmatpush.msra.mxu0 0.0
    %1593 = vmatpush.msra.mxu0 0.0
    %1594 = vmatpush.msra.mxu0 0.0
    %1595 = vmatpush.msra.mxu0 0.0
    %1596 = vmatpush.msra.mxu0 0.0
    %1597 = vmatpush.msra.mxu0 0.0
    %1598 = vmatpush.msra.mxu0 0.0
    %1599 = vmatpush.msra.mxu0 0.0
    %1600 = vmatpush.msra.mxu0 %v1559
    %1601 = vmatpush.msra.mxu0 %v1558
    %1602 = vmatpush.msra.mxu0 %v1557
    %1603 = vmatpush.msra.mxu0 %v1556
    %1604 = vmatmul.f32.gmra.mxu0 %v1562
    %v1605 = vpop.f32.mrf.mxu0
    %v1606 = vadd.f32 0.0, %v1605
    %1607 = vmatmul.f32.gmra.mxu0 %v1565
    %v1608 = vpop.f32.mrf.mxu0
    %v1609 = vadd.f32 0.0, %v1608
    %1610 = vmatmul.f32.gmra.mxu0 %v1568
    %v1611 = vpop.f32.mrf.mxu0
    %v1612 = vadd.f32 0.0, %v1611
    %1613 = vmatmul.f32.gmra.mxu0 %v1571
    %v1614 = vpop.f32.mrf.mxu0
    %v1615 = vadd.f32 0.0, %v1614
    %1616 = vmatmul.f32.gmra.mxu0 %v1574
    %v1617 = vpop.f32.mrf.mxu0
    %v1618 = vadd.f32 0.0, %v1617
    %1619 = vmatmul.f32.gmra.mxu0 %v1577
    %v1620 = vpop.f32.mrf.mxu0
    %v1621 = vadd.f32 0.0, %v1620
    %1622 = vmatmul.f32.gmra.mxu0 %v1580
    %v1623 = vpop.f32.mrf.mxu0
    %v1624 = vadd.f32 0.0, %v1623
    %1625 = vmatmul.f32.gmra.mxu0 %v1583
    %v1626 = vpop.f32.mrf.mxu0
    %v1627 = vadd.f32 0.0, %v1626
    %1628 = vmatmul.f32.gmra.mxu0 %v1586
    %v1629 = vpop.f32.mrf.mxu0
    %v1630 = vadd.f32 0.0, %v1629
    %1631 = vdwg.mxu0
    %v1633 = vsel %vm1560, %v1487, 0
    %v1636 = vsel %vm1560, %v1489, 0
    %v1639 = vsel %vm1560, %v1491, 0
    %v1642 = vsel %vm1560, %v1503, 0
    %v1645 = vsel %vm1560, %v1505, 0
    %v1648 = vsel %vm1560, %v1507, 0
    %v1651 = vsel %vm1560, %v1519, 0
    %v1654 = vsel %vm1560, %v1521, 0
    %v1657 = vsel %vm1560, %v1523, 0
    %1659 = vmatpush.msra.mxu0 0.0
    %1660 = vmatpush.msra.mxu0 0.0
    %1661 = vmatpush.msra.mxu0 0.0
    %1662 = vmatpush.msra.mxu0 0.0
    %1663 = vmatpush.msra.mxu0 0.0
    %1664 = vmatpush.msra.mxu0 0.0
    %1665 = vmatpush.msra.mxu0 0.0
    %1666 = vmatpush.msra.mxu0 0.0
    %1667 = vmatpush.msra.mxu0 0.0
    %1668 = vmatpush.msra.mxu0 0.0
    %1669 = vmatpush.msra.mxu0 0.0
    %1670 = vmatpush.msra.mxu0 0.0
    %1671 = vmatpush.msra.mxu0 %v1554
    %1672 = vmatpush.msra.mxu0 %v1553
    %1673 = vmatpush.msra.mxu0 %v1552
    %1674 = vmatpush.msra.mxu0 %v1551
    %1675 = vmatmul.f32.gmra.mxu0 %v1633
    %v1676 = vpop.f32.mrf.mxu0
    %v1677 = vadd.f32 %v1606, %v1676
    %1678 = vmatmul.f32.gmra.mxu0 %v1636
    %v1679 = vpop.f32.mrf.mxu0
    %v1680 = vadd.f32 %v1609, %v1679
    %1681 = vmatmul.f32.gmra.mxu0 %v1639
    %v1682 = vpop.f32.mrf.mxu0
    %v1683 = vadd.f32 %v1612, %v1682
    %1684 = vmatmul.f32.gmra.mxu0 %v1642
    %v1685 = vpop.f32.mrf.mxu0
    %v1686 = vadd.f32 %v1615, %v1685
    %1687 = vmatmul.f32.gmra.mxu0 %v1645
    %v1688 = vpop.f32.mrf.mxu0
    %v1689 = vadd.f32 %v1618, %v1688
    %1690 = vmatmul.f32.gmra.mxu0 %v1648
    %v1691 = vpop.f32.mrf.mxu0
    %v1692 = vadd.f32 %v1621, %v1691
    %1693 = vmatmul.f32.gmra.mxu0 %v1651
    %v1694 = vpop.f32.mrf.mxu0
    %v1695 = vadd.f32 %v1624, %v1694
    %1696 = vmatmul.f32.gmra.mxu0 %v1654
    %v1697 = vpop.f32.mrf.mxu0
    %v1698 = vadd.f32 %v1627, %v1697
    %1699 = vmatmul.f32.gmra.mxu0 %v1657
    %v1700 = vpop.f32.mrf.mxu0
    %v1701 = vadd.f32 %v1630, %v1700
    %1702 = vdwg.mxu0
    %s1703 = scalar_lea.vmem %s3, 64
    %v1704 = vld [vmem:[%s1703] sm:$0xff]
    %v1705 = vld [vmem:[%s1703 + $0x8] sm:$0xff]
    %v1706 = vld [vmem:[%s1703 + $0x10] sm:$0xff]
    %v1707 = vld [vmem:[%s1703 + $0x18] sm:$0xff]
    %v1709 = vsel %vm1560, %v1493, 0
    %v1712 = vsel %vm1560, %v1509, 0
    %v1715 = vsel %vm1560, %v1525, 0
    %1717 = vmatpush.msra.mxu0 0.0
    %1718 = vmatpush.msra.mxu0 0.0
    %1719 = vmatpush.msra.mxu0 0.0
    %1720 = vmatpush.msra.mxu0 0.0
    %1721 = vmatpush.msra.mxu0 0.0
    %1722 = vmatpush.msra.mxu0 0.0
    %1723 = vmatpush.msra.mxu0 0.0
    %1724 = vmatpush.msra.mxu0 0.0
    %1725 = vmatpush.msra.mxu0 0.0
    %1726 = vmatpush.msra.mxu0 0.0
    %1727 = vmatpush.msra.mxu0 0.0
    %1728 = vmatpush.msra.mxu0 0.0
    %1729 = vmatpush.msra.mxu0 %v1707
    %1730 = vmatpush.msra.mxu0 %v1706
    %1731 = vmatpush.msra.mxu0 %v1705
    %1732 = vmatpush.msra.mxu0 %v1704
    %1733 = vmatmul.f32.gmra.mxu0 %v1636
    %v1734 = vpop.f32.mrf.mxu0
    %v1735 = vadd.f32 0.0, %v1734
    %1736 = vmatmul.f32.gmra.mxu0 %v1639
    %v1737 = vpop.f32.mrf.mxu0
    %v1738 = vadd.f32 0.0, %v1737
    %1739 = vmatmul.f32.gmra.mxu0 %v1709
    %v1740 = vpop.f32.mrf.mxu0
    %v1741 = vadd.f32 0.0, %v1740
    %1742 = vmatmul.f32.gmra.mxu0 %v1645
    %v1743 = vpop.f32.mrf.mxu0
    %v1744 = vadd.f32 0.0, %v1743
    %1745 = vmatmul.f32.gmra.mxu0 %v1648
    %v1746 = vpop.f32.mrf.mxu0
    %v1747 = vadd.f32 0.0, %v1746
    %1748 = vmatmul.f32.gmra.mxu0 %v1712
    %v1749 = vpop.f32.mrf.mxu0
    %v1750 = vadd.f32 0.0, %v1749
    %1751 = vmatmul.f32.gmra.mxu0 %v1654
    %v1752 = vpop.f32.mrf.mxu0
    %v1753 = vadd.f32 0.0, %v1752
    %1754 = vmatmul.f32.gmra.mxu0 %v1657
    %v1755 = vpop.f32.mrf.mxu0
    %v1756 = vadd.f32 0.0, %v1755
    %1757 = vmatmul.f32.gmra.mxu0 %v1715
    %v1758 = vpop.f32.mrf.mxu0
    %v1759 = vadd.f32 0.0, %v1758
    %1760 = vdwg.mxu0
    %v1761 = vadd.f32 %v1677, %v1735
    %v1762 = vadd.f32 %v1680, %v1738
    %v1763 = vadd.f32 %v1683, %v1741
    %v1764 = vadd.f32 %v1686, %v1744
    %v1765 = vadd.f32 %v1689, %v1747
    %v1766 = vadd.f32 %v1692, %v1750
    %v1767 = vadd.f32 %v1695, %v1753
    %v1768 = vadd.f32 %v1698, %v1756
    %v1769 = vadd.f32 %v1701, %v1759
    %s1770 = scalar_lea.vmem %s3, 96
    %v1771 = vld [vmem:[%s1770] sm:$0xff]
    %v1772 = vld [vmem:[%s1770 + $0x8] sm:$0xff]
    %v1773 = vld [vmem:[%s1770 + $0x10] sm:$0xff]
    %v1774 = vld [vmem:[%s1770 + $0x18] sm:$0xff]
    %v1776 = vsel %vm1560, %v1494, 0
    %v1779 = vsel %vm1560, %v1510, 0
    %v1782 = vsel %vm1560, %v1526, 0
    %1784 = vmatpush.msra.mxu0 0.0
    %1785 = vmatpush.msra.mxu0 0.0
    %1786 = vmatpush.msra.mxu0 0.0
    %1787 = vmatpush.msra.mxu0 0.0
    %1788 = vmatpush.msra.mxu0 0.0
    %1789 = vmatpush.msra.mxu0 0.0
    %1790 = vmatpush.msra.mxu0 0.0
    %1791 = vmatpush.msra.mxu0 0.0
    %1792 = vmatpush.msra.mxu0 0.0
    %1793 = vmatpush.msra.mxu0 0.0
    %1794 = vmatpush.msra.mxu0 0.0
    %1795 = vmatpush.msra.mxu0 0.0
    %1796 = vmatpush.msra.mxu0 %v1774
    %1797 = vmatpush.msra.mxu0 %v1773
    %1798 = vmatpush.msra.mxu0 %v1772
    %1799 = vmatpush.msra.mxu0 %v1771
    %1800 = vmatmul.f32.gmra.mxu0 %v1565
    %v1801 = vpop.f32.mrf.mxu0
    %v1802 = vadd.f32 0.0, %v1801
    %1803 = vmatmul.f32.gmra.mxu0 %v1568
    %v1804 = vpop.f32.mrf.mxu0
    %v1805 = vadd.f32 0.0, %v1804
    %1806 = vmatmul.f32.gmra.mxu0 %v1776
    %v1807 = vpop.f32.mrf.mxu0
    %v1808 = vadd.f32 0.0, %v1807
    %1809 = vmatmul.f32.gmra.mxu0 %v1574
    %v1810 = vpop.f32.mrf.mxu0
    %v1811 = vadd.f32 0.0, %v1810
    %1812 = vmatmul.f32.gmra.mxu0 %v1577
    %v1813 = vpop.f32.mrf.mxu0
    %v1814 = vadd.f32 0.0, %v1813
    %1815 = vmatmul.f32.gmra.mxu0 %v1779
    %v1816 = vpop.f32.mrf.mxu0
    %v1817 = vadd.f32 0.0, %v1816
    %1818 = vmatmul.f32.gmra.mxu0 %v1583
    %v1819 = vpop.f32.mrf.mxu0
    %v1820 = vadd.f32 0.0, %v1819
    %1821 = vmatmul.f32.gmra.mxu0 %v1586
    %v1822 = vpop.f32.mrf.mxu0
    %v1823 = vadd.f32 0.0, %v1822
    %1824 = vmatmul.f32.gmra.mxu0 %v1782
    %v1825 = vpop.f32.mrf.mxu0
    %v1826 = vadd.f32 0.0, %v1825
    %1827 = vdwg.mxu0
    %v1828 = vadd.f32 %v1761, %v1802
    %v1829 = vadd.f32 %v1762, %v1805
    %v1830 = vadd.f32 %v1763, %v1808
    %v1831 = vadd.f32 %v1764, %v1811
    %v1832 = vadd.f32 %v1765, %v1814
    %v1833 = vadd.f32 %v1766, %v1817
    %v1834 = vadd.f32 %v1767, %v1820
    %v1835 = vadd.f32 %v1768, %v1823
    %v1836 = vadd.f32 %v1769, %v1826
    %s1837 = scalar_lea.vmem %s3, 128
    %v1838 = vld [vmem:[%s1837] sm:$0xff]
    %v1839 = vld [vmem:[%s1837 + $0x8] sm:$0xff]
    %v1840 = vld [vmem:[%s1837 + $0x10] sm:$0xff]
    %v1841 = vld [vmem:[%s1837 + $0x18] sm:$0xff]
    %v1843 = vsel %vm1560, %v1495, 0
    %v1846 = vsel %vm1560, %v1497, 0
    %v1849 = vsel %vm1560, %v1499, 0
    %v1852 = vsel %vm1560, %v1511, 0
    %v1855 = vsel %vm1560, %v1513, 0
    %v1858 = vsel %vm1560, %v1515, 0
    %v1861 = vsel %vm1560, %v1527, 0
    %v1864 = vsel %vm1560, %v1529, 0
    %v1867 = vsel %vm1560, %v1531, 0
    %1869 = vmatpush.msra.mxu0 0.0
    %1870 = vmatpush.msra.mxu0 0.0
    %1871 = vmatpush.msra.mxu0 0.0
    %1872 = vmatpush.msra.mxu0 0.0
    %1873 = vmatpush.msra.mxu0 0.0
    %1874 = vmatpush.msra.mxu0 0.0
    %1875 = vmatpush.msra.mxu0 0.0
    %1876 = vmatpush.msra.mxu0 0.0
    %1877 = vmatpush.msra.mxu0 0.0
    %1878 = vmatpush.msra.mxu0 0.0
    %1879 = vmatpush.msra.mxu0 0.0
    %1880 = vmatpush.msra.mxu0 0.0
    %1881 = vmatpush.msra.mxu0 %v1841
    %1882 = vmatpush.msra.mxu0 %v1840
    %1883 = vmatpush.msra.mxu0 %v1839
    %1884 = vmatpush.msra.mxu0 %v1838
    %1885 = vmatmul.f32.gmra.mxu0 %v1843
    %v1886 = vpop.f32.mrf.mxu0
    %v1887 = vadd.f32 0.0, %v1886
    %1888 = vmatmul.f32.gmra.mxu0 %v1846
    %v1889 = vpop.f32.mrf.mxu0
    %v1890 = vadd.f32 0.0, %v1889
    %1891 = vmatmul.f32.gmra.mxu0 %v1849
    %v1892 = vpop.f32.mrf.mxu0
    %v1893 = vadd.f32 0.0, %v1892
    %1894 = vmatmul.f32.gmra.mxu0 %v1852
    %v1895 = vpop.f32.mrf.mxu0
    %v1896 = vadd.f32 0.0, %v1895
    %1897 = vmatmul.f32.gmra.mxu0 %v1855
    %v1898 = vpop.f32.mrf.mxu0
    %v1899 = vadd.f32 0.0, %v1898
    %1900 = vmatmul.f32.gmra.mxu0 %v1858
    %v1901 = vpop.f32.mrf.mxu0
    %v1902 = vadd.f32 0.0, %v1901
    %1903 = vmatmul.f32.gmra.mxu0 %v1861
    %v1904 = vpop.f32.mrf.mxu0
    %v1905 = vadd.f32 0.0, %v1904
    %1906 = vmatmul.f32.gmra.mxu0 %v1864
    %v1907 = vpop.f32.mrf.mxu0
    %v1908 = vadd.f32 0.0, %v1907
    %1909 = vmatmul.f32.gmra.mxu0 %v1867
    %v1910 = vpop.f32.mrf.mxu0
    %v1911 = vadd.f32 0.0, %v1910
    %1912 = vdwg.mxu0
    %v1913 = vadd.f32 %v1828, %v1887
    %v1914 = vadd.f32 %v1829, %v1890
    %v1915 = vadd.f32 %v1830, %v1893
    %v1916 = vadd.f32 %v1831, %v1896
    %v1917 = vadd.f32 %v1832, %v1899
    %v1918 = vadd.f32 %v1833, %v1902
    %v1919 = vadd.f32 %v1834, %v1905
    %v1920 = vadd.f32 %v1835, %v1908
    %v1921 = vadd.f32 %v1836, %v1911
    %s1922 = scalar_lea.vmem %s3, 160
    %v1923 = vld [vmem:[%s1922] sm:$0xff]
    %v1924 = vld [vmem:[%s1922 + $0x8] sm:$0xff]
    %v1925 = vld [vmem:[%s1922 + $0x10] sm:$0xff]
    %v1926 = vld [vmem:[%s1922 + $0x18] sm:$0xff]
    %v1928 = vsel %vm1560, %v1496, 0
    %v1931 = vsel %vm1560, %v1498, 0
    %v1934 = vsel %vm1560, %v1500, 0
    %v1937 = vsel %vm1560, %v1512, 0
    %v1940 = vsel %vm1560, %v1514, 0
    %v1943 = vsel %vm1560, %v1516, 0
    %v1946 = vsel %vm1560, %v1528, 0
    %v1949 = vsel %vm1560, %v1530, 0
    %v1952 = vsel %vm1560, %v1532, 0
    %1954 = vmatpush.msra.mxu0 0.0
    %1955 = vmatpush.msra.mxu0 0.0
    %1956 = vmatpush.msra.mxu0 0.0
    %1957 = vmatpush.msra.mxu0 0.0
    %1958 = vmatpush.msra.mxu0 0.0
    %1959 = vmatpush.msra.mxu0 0.0
    %1960 = vmatpush.msra.mxu0 0.0
    %1961 = vmatpush.msra.mxu0 0.0
    %1962 = vmatpush.msra.mxu0 0.0
    %1963 = vmatpush.msra.mxu0 0.0
    %1964 = vmatpush.msra.mxu0 0.0
    %1965 = vmatpush.msra.mxu0 0.0
    %1966 = vmatpush.msra.mxu0 %v1926
    %1967 = vmatpush.msra.mxu0 %v1925
    %1968 = vmatpush.msra.mxu0 %v1924
    %1969 = vmatpush.msra.mxu0 %v1923
    %1970 = vmatmul.f32.gmra.mxu0 %v1928
    %v1971 = vpop.f32.mrf.mxu0
    %v1972 = vadd.f32 0.0, %v1971
    %1973 = vmatmul.f32.gmra.mxu0 %v1931
    %v1974 = vpop.f32.mrf.mxu0
    %v1975 = vadd.f32 0.0, %v1974
    %1976 = vmatmul.f32.gmra.mxu0 %v1934
    %v1977 = vpop.f32.mrf.mxu0
    %v1978 = vadd.f32 0.0, %v1977
    %1979 = vmatmul.f32.gmra.mxu0 %v1937
    %v1980 = vpop.f32.mrf.mxu0
    %v1981 = vadd.f32 0.0, %v1980
    %1982 = vmatmul.f32.gmra.mxu0 %v1940
    %v1983 = vpop.f32.mrf.mxu0
    %v1984 = vadd.f32 0.0, %v1983
    %1985 = vmatmul.f32.gmra.mxu0 %v1943
    %v1986 = vpop.f32.mrf.mxu0
    %v1987 = vadd.f32 0.0, %v1986
    %1988 = vmatmul.f32.gmra.mxu0 %v1946
    %v1989 = vpop.f32.mrf.mxu0
    %v1990 = vadd.f32 0.0, %v1989
    %1991 = vmatmul.f32.gmra.mxu0 %v1949
    %v1992 = vpop.f32.mrf.mxu0
    %v1993 = vadd.f32 0.0, %v1992
    %1994 = vmatmul.f32.gmra.mxu0 %v1952
    %v1995 = vpop.f32.mrf.mxu0
    %v1996 = vadd.f32 0.0, %v1995
    %1997 = vdwg.mxu0
    %v1998 = vadd.f32 %v1913, %v1972
    %v1999 = vadd.f32 %v1914, %v1975
    %v2000 = vadd.f32 %v1915, %v1978
    %v2001 = vadd.f32 %v1916, %v1981
    %v2002 = vadd.f32 %v1917, %v1984
    %v2003 = vadd.f32 %v1918, %v1987
    %v2004 = vadd.f32 %v1919, %v1990
    %v2005 = vadd.f32 %v1920, %v1993
    %v2006 = vadd.f32 %v1921, %v1996
    %s2007 = scalar_lea.vmem %s3, 192
    %v2008 = vld [vmem:[%s2007] sm:$0xff]
    %v2009 = vld [vmem:[%s2007 + $0x8] sm:$0xff]
    %v2010 = vld [vmem:[%s2007 + $0x10] sm:$0xff]
    %v2011 = vld [vmem:[%s2007 + $0x18] sm:$0xff]
    %v2013 = vsel %vm1560, %v1501, 0
    %v2016 = vsel %vm1560, %v1517, 0
    %v2019 = vsel %vm1560, %v1533, 0
    %2021 = vmatpush.msra.mxu0 0.0
    %2022 = vmatpush.msra.mxu0 0.0
    %2023 = vmatpush.msra.mxu0 0.0
    %2024 = vmatpush.msra.mxu0 0.0
    %2025 = vmatpush.msra.mxu0 0.0
    %2026 = vmatpush.msra.mxu0 0.0
    %2027 = vmatpush.msra.mxu0 0.0
    %2028 = vmatpush.msra.mxu0 0.0
    %2029 = vmatpush.msra.mxu0 0.0
    %2030 = vmatpush.msra.mxu0 0.0
    %2031 = vmatpush.msra.mxu0 0.0
    %2032 = vmatpush.msra.mxu0 0.0
    %2033 = vmatpush.msra.mxu0 %v2011
    %2034 = vmatpush.msra.mxu0 %v2010
    %2035 = vmatpush.msra.mxu0 %v2009
    %2036 = vmatpush.msra.mxu0 %v2008
    %2037 = vmatmul.f32.gmra.mxu0 %v1846
    %v2038 = vpop.f32.mrf.mxu0
    %v2039 = vadd.f32 0.0, %v2038
    %2040 = vmatmul.f32.gmra.mxu0 %v1849
    %v2041 = vpop.f32.mrf.mxu0
    %v2042 = vadd.f32 0.0, %v2041
    %2043 = vmatmul.f32.gmra.mxu0 %v2013
    %v2044 = vpop.f32.mrf.mxu0
    %v2045 = vadd.f32 0.0, %v2044
    %2046 = vmatmul.f32.gmra.mxu0 %v1855
    %v2047 = vpop.f32.mrf.mxu0
    %v2048 = vadd.f32 0.0, %v2047
    %2049 = vmatmul.f32.gmra.mxu0 %v1858
    %v2050 = vpop.f32.mrf.mxu0
    %v2051 = vadd.f32 0.0, %v2050
    %2052 = vmatmul.f32.gmra.mxu0 %v2016
    %v2053 = vpop.f32.mrf.mxu0
    %v2054 = vadd.f32 0.0, %v2053
    %2055 = vmatmul.f32.gmra.mxu0 %v1864
    %v2056 = vpop.f32.mrf.mxu0
    %v2057 = vadd.f32 0.0, %v2056
    %2058 = vmatmul.f32.gmra.mxu0 %v1867
    %v2059 = vpop.f32.mrf.mxu0
    %v2060 = vadd.f32 0.0, %v2059
    %2061 = vmatmul.f32.gmra.mxu0 %v2019
    %v2062 = vpop.f32.mrf.mxu0
    %v2063 = vadd.f32 0.0, %v2062
    %2064 = vdwg.mxu0
    %v2065 = vadd.f32 %v1998, %v2039
    %v2066 = vadd.f32 %v1999, %v2042
    %v2067 = vadd.f32 %v2000, %v2045
    %v2068 = vadd.f32 %v2001, %v2048
    %v2069 = vadd.f32 %v2002, %v2051
    %v2070 = vadd.f32 %v2003, %v2054
    %v2071 = vadd.f32 %v2004, %v2057
    %v2072 = vadd.f32 %v2005, %v2060
    %v2073 = vadd.f32 %v2006, %v2063
    %s2074 = scalar_lea.vmem %s3, 224
    %v2075 = vld [vmem:[%s2074] sm:$0xff]
    %v2076 = vld [vmem:[%s2074 + $0x8] sm:$0xff]
    %v2077 = vld [vmem:[%s2074 + $0x10] sm:$0xff]
    %v2078 = vld [vmem:[%s2074 + $0x18] sm:$0xff]
    %v2080 = vsel %vm1560, %v1502, 0
    %v2083 = vsel %vm1560, %v1518, 0
    %v2086 = vsel %vm1560, %v1534, 0
    %2088 = vmatpush.msra.mxu0 0.0
    %2089 = vmatpush.msra.mxu0 0.0
    %2090 = vmatpush.msra.mxu0 0.0
    %2091 = vmatpush.msra.mxu0 0.0
    %2092 = vmatpush.msra.mxu0 0.0
    %2093 = vmatpush.msra.mxu0 0.0
    %2094 = vmatpush.msra.mxu0 0.0
    %2095 = vmatpush.msra.mxu0 0.0
    %2096 = vmatpush.msra.mxu0 0.0
    %2097 = vmatpush.msra.mxu0 0.0
    %2098 = vmatpush.msra.mxu0 0.0
    %2099 = vmatpush.msra.mxu0 0.0
    %2100 = vmatpush.msra.mxu0 %v2078
    %2101 = vmatpush.msra.mxu0 %v2077
    %2102 = vmatpush.msra.mxu0 %v2076
    %2103 = vmatpush.msra.mxu0 %v2075
    %2104 = vmatmul.f32.gmra.mxu0 %v1931
    %v2105 = vpop.f32.mrf.mxu0
    %v2106 = vadd.f32 0.0, %v2105
    %2107 = vmatmul.f32.gmra.mxu0 %v1934
    %v2108 = vpop.f32.mrf.mxu0
    %v2109 = vadd.f32 0.0, %v2108
    %2110 = vmatmul.f32.gmra.mxu0 %v2080
    %v2111 = vpop.f32.mrf.mxu0
    %v2112 = vadd.f32 0.0, %v2111
    %2113 = vmatmul.f32.gmra.mxu0 %v1940
    %v2114 = vpop.f32.mrf.mxu0
    %v2115 = vadd.f32 0.0, %v2114
    %2116 = vmatmul.f32.gmra.mxu0 %v1943
    %v2117 = vpop.f32.mrf.mxu0
    %v2118 = vadd.f32 0.0, %v2117
    %2119 = vmatmul.f32.gmra.mxu0 %v2083
    %v2120 = vpop.f32.mrf.mxu0
    %v2121 = vadd.f32 0.0, %v2120
    %2122 = vmatmul.f32.gmra.mxu0 %v1949
    %v2123 = vpop.f32.mrf.mxu0
    %v2124 = vadd.f32 0.0, %v2123
    %2125 = vmatmul.f32.gmra.mxu0 %v1952
    %v2126 = vpop.f32.mrf.mxu0
    %v2127 = vadd.f32 0.0, %v2126
    %2128 = vmatmul.f32.gmra.mxu0 %v2086
    %v2129 = vpop.f32.mrf.mxu0
    %v2130 = vadd.f32 0.0, %v2129
    %2131 = vdwg.mxu0
    %v2132 = vadd.f32 %v2065, %v2106
    %v2133 = vadd.f32 %v2066, %v2109
    %v2134 = vadd.f32 %v2067, %v2112
    %v2135 = vadd.f32 %v2068, %v2115
    %v2136 = vadd.f32 %v2069, %v2118
    %v2137 = vadd.f32 %v2070, %v2121
    %v2138 = vadd.f32 %v2071, %v2124
    %v2139 = vadd.f32 %v2072, %v2127
    %v2140 = vadd.f32 %v2073, %v2130
    %s2141 = scalar_lea.vmem %s3, 256
    %v2142 = vld [vmem:[%s2141] sm:$0xff]
    %v2143 = vld [vmem:[%s2141 + $0x8] sm:$0xff]
    %v2144 = vld [vmem:[%s2141 + $0x10] sm:$0xff]
    %v2145 = vld [vmem:[%s2141 + $0x18] sm:$0xff]
    %v2147 = vsel %vm1560, %v1535, 0
    %v2150 = vsel %vm1560, %v1537, 0
    %v2153 = vsel %vm1560, %v1539, 0
    %2155 = vmatpush.msra.mxu0 0.0
    %2156 = vmatpush.msra.mxu0 0.0
    %2157 = vmatpush.msra.mxu0 0.0
    %2158 = vmatpush.msra.mxu0 0.0
    %2159 = vmatpush.msra.mxu0 0.0
    %2160 = vmatpush.msra.mxu0 0.0
    %2161 = vmatpush.msra.mxu0 0.0
    %2162 = vmatpush.msra.mxu0 0.0
    %2163 = vmatpush.msra.mxu0 0.0
    %2164 = vmatpush.msra.mxu0 0.0
    %2165 = vmatpush.msra.mxu0 0.0
    %2166 = vmatpush.msra.mxu0 0.0
    %2167 = vmatpush.msra.mxu0 %v2145
    %2168 = vmatpush.msra.mxu0 %v2144
    %2169 = vmatpush.msra.mxu0 %v2143
    %2170 = vmatpush.msra.mxu0 %v2142
    %2171 = vmatmul.f32.gmra.mxu0 %v1642
    %v2172 = vpop.f32.mrf.mxu0
    %v2173 = vadd.f32 0.0, %v2172
    %2174 = vmatmul.f32.gmra.mxu0 %v1645
    %v2175 = vpop.f32.mrf.mxu0
    %v2176 = vadd.f32 0.0, %v2175
    %2177 = vmatmul.f32.gmra.mxu0 %v1648
    %v2178 = vpop.f32.mrf.mxu0
    %v2179 = vadd.f32 0.0, %v2178
    %2180 = vmatmul.f32.gmra.mxu0 %v1651
    %v2181 = vpop.f32.mrf.mxu0
    %v2182 = vadd.f32 0.0, %v2181
    %2183 = vmatmul.f32.gmra.mxu0 %v1654
    %v2184 = vpop.f32.mrf.mxu0
    %v2185 = vadd.f32 0.0, %v2184
    %2186 = vmatmul.f32.gmra.mxu0 %v1657
    %v2187 = vpop.f32.mrf.mxu0
    %v2188 = vadd.f32 0.0, %v2187
    %2189 = vmatmul.f32.gmra.mxu0 %v2147
    %v2190 = vpop.f32.mrf.mxu0
    %v2191 = vadd.f32 0.0, %v2190
    %2192 = vmatmul.f32.gmra.mxu0 %v2150
    %v2193 = vpop.f32.mrf.mxu0
    %v2194 = vadd.f32 0.0, %v2193
    %2195 = vmatmul.f32.gmra.mxu0 %v2153
    %v2196 = vpop.f32.mrf.mxu0
    %v2197 = vadd.f32 0.0, %v2196
    %2198 = vdwg.mxu0
    %v2199 = vadd.f32 %v2132, %v2173
    %v2200 = vadd.f32 %v2133, %v2176
    %v2201 = vadd.f32 %v2134, %v2179
    %v2202 = vadd.f32 %v2135, %v2182
    %v2203 = vadd.f32 %v2136, %v2185
    %v2204 = vadd.f32 %v2137, %v2188
    %v2205 = vadd.f32 %v2138, %v2191
    %v2206 = vadd.f32 %v2139, %v2194
    %v2207 = vadd.f32 %v2140, %v2197
    %s2208 = scalar_lea.vmem %s3, 288
    %v2209 = vld [vmem:[%s2208] sm:$0xff]
    %v2210 = vld [vmem:[%s2208 + $0x8] sm:$0xff]
    %v2211 = vld [vmem:[%s2208 + $0x10] sm:$0xff]
    %v2212 = vld [vmem:[%s2208 + $0x18] sm:$0xff]
    %v2214 = vsel %vm1560, %v1536, 0
    %v2217 = vsel %vm1560, %v1538, 0
    %v2220 = vsel %vm1560, %v1540, 0
    %2222 = vmatpush.msra.mxu0 0.0
    %2223 = vmatpush.msra.mxu0 0.0
    %2224 = vmatpush.msra.mxu0 0.0
    %2225 = vmatpush.msra.mxu0 0.0
    %2226 = vmatpush.msra.mxu0 0.0
    %2227 = vmatpush.msra.mxu0 0.0
    %2228 = vmatpush.msra.mxu0 0.0
    %2229 = vmatpush.msra.mxu0 0.0
    %2230 = vmatpush.msra.mxu0 0.0
    %2231 = vmatpush.msra.mxu0 0.0
    %2232 = vmatpush.msra.mxu0 0.0
    %2233 = vmatpush.msra.mxu0 0.0
    %2234 = vmatpush.msra.mxu0 %v2212
    %2235 = vmatpush.msra.mxu0 %v2211
    %2236 = vmatpush.msra.mxu0 %v2210
    %2237 = vmatpush.msra.mxu0 %v2209
    %2238 = vmatmul.f32.gmra.mxu0 %v1571
    %v2239 = vpop.f32.mrf.mxu0
    %v2240 = vadd.f32 0.0, %v2239
    %2241 = vmatmul.f32.gmra.mxu0 %v1574
    %v2242 = vpop.f32.mrf.mxu0
    %v2243 = vadd.f32 0.0, %v2242
    %2244 = vmatmul.f32.gmra.mxu0 %v1577
    %v2245 = vpop.f32.mrf.mxu0
    %v2246 = vadd.f32 0.0, %v2245
    %2247 = vmatmul.f32.gmra.mxu0 %v1580
    %v2248 = vpop.f32.mrf.mxu0
    %v2249 = vadd.f32 0.0, %v2248
    %2250 = vmatmul.f32.gmra.mxu0 %v1583
    %v2251 = vpop.f32.mrf.mxu0
    %v2252 = vadd.f32 0.0, %v2251
    %2253 = vmatmul.f32.gmra.mxu0 %v1586
    %v2254 = vpop.f32.mrf.mxu0
    %v2255 = vadd.f32 0.0, %v2254
    %2256 = vmatmul.f32.gmra.mxu0 %v2214
    %v2257 = vpop.f32.mrf.mxu0
    %v2258 = vadd.f32 0.0, %v2257
    %2259 = vmatmul.f32.gmra.mxu0 %v2217
    %v2260 = vpop.f32.mrf.mxu0
    %v2261 = vadd.f32 0.0, %v2260
    %2262 = vmatmul.f32.gmra.mxu0 %v2220
    %v2263 = vpop.f32.mrf.mxu0
    %v2264 = vadd.f32 0.0, %v2263
    %2265 = vdwg.mxu0
    %v2266 = vadd.f32 %v2199, %v2240
    %v2267 = vadd.f32 %v2200, %v2243
    %v2268 = vadd.f32 %v2201, %v2246
    %v2269 = vadd.f32 %v2202, %v2249
    %v2270 = vadd.f32 %v2203, %v2252
    %v2271 = vadd.f32 %v2204, %v2255
    %v2272 = vadd.f32 %v2205, %v2258
    %v2273 = vadd.f32 %v2206, %v2261
    %v2274 = vadd.f32 %v2207, %v2264
    %s2275 = scalar_lea.vmem %s3, 320
    %v2276 = vld [vmem:[%s2275] sm:$0xff]
    %v2277 = vld [vmem:[%s2275 + $0x8] sm:$0xff]
    %v2278 = vld [vmem:[%s2275 + $0x10] sm:$0xff]
    %v2279 = vld [vmem:[%s2275 + $0x18] sm:$0xff]
    %v2281 = vsel %vm1560, %v1541, 0
    %2283 = vmatpush.msra.mxu0 0.0
    %2284 = vmatpush.msra.mxu0 0.0
    %2285 = vmatpush.msra.mxu0 0.0
    %2286 = vmatpush.msra.mxu0 0.0
    %2287 = vmatpush.msra.mxu0 0.0
    %2288 = vmatpush.msra.mxu0 0.0
    %2289 = vmatpush.msra.mxu0 0.0
    %2290 = vmatpush.msra.mxu0 0.0
    %2291 = vmatpush.msra.mxu0 0.0
    %2292 = vmatpush.msra.mxu0 0.0
    %2293 = vmatpush.msra.mxu0 0.0
    %2294 = vmatpush.msra.mxu0 0.0
    %2295 = vmatpush.msra.mxu0 %v2279
    %2296 = vmatpush.msra.mxu0 %v2278
    %2297 = vmatpush.msra.mxu0 %v2277
    %2298 = vmatpush.msra.mxu0 %v2276
    %2299 = vmatmul.f32.gmra.mxu0 %v1645
    %v2300 = vpop.f32.mrf.mxu0
    %v2301 = vadd.f32 0.0, %v2300
    %2302 = vmatmul.f32.gmra.mxu0 %v1648
    %v2303 = vpop.f32.mrf.mxu0
    %v2304 = vadd.f32 0.0, %v2303
    %2305 = vmatmul.f32.gmra.mxu0 %v1712
    %v2306 = vpop.f32.mrf.mxu0
    %v2307 = vadd.f32 0.0, %v2306
    %2308 = vmatmul.f32.gmra.mxu0 %v1654
    %v2309 = vpop.f32.mrf.mxu0
    %v2310 = vadd.f32 0.0, %v2309
    %2311 = vmatmul.f32.gmra.mxu0 %v1657
    %v2312 = vpop.f32.mrf.mxu0
    %v2313 = vadd.f32 0.0, %v2312
    %2314 = vmatmul.f32.gmra.mxu0 %v1715
    %v2315 = vpop.f32.mrf.mxu0
    %v2316 = vadd.f32 0.0, %v2315
    %2317 = vmatmul.f32.gmra.mxu0 %v2150
    %v2318 = vpop.f32.mrf.mxu0
    %v2319 = vadd.f32 0.0, %v2318
    %2320 = vmatmul.f32.gmra.mxu0 %v2153
    %v2321 = vpop.f32.mrf.mxu0
    %v2322 = vadd.f32 0.0, %v2321
    %2323 = vmatmul.f32.gmra.mxu0 %v2281
    %v2324 = vpop.f32.mrf.mxu0
    %v2325 = vadd.f32 0.0, %v2324
    %2326 = vdwg.mxu0
    %v2327 = vadd.f32 %v2266, %v2301
    %v2328 = vadd.f32 %v2267, %v2304
    %v2329 = vadd.f32 %v2268, %v2307
    %v2330 = vadd.f32 %v2269, %v2310
    %v2331 = vadd.f32 %v2270, %v2313
    %v2332 = vadd.f32 %v2271, %v2316
    %v2333 = vadd.f32 %v2272, %v2319
    %v2334 = vadd.f32 %v2273, %v2322
    %v2335 = vadd.f32 %v2274, %v2325
    %s2336 = scalar_lea.vmem %s3, 352
    %v2337 = vld [vmem:[%s2336] sm:$0xff]
    %v2338 = vld [vmem:[%s2336 + $0x8] sm:$0xff]
    %v2339 = vld [vmem:[%s2336 + $0x10] sm:$0xff]
    %v2340 = vld [vmem:[%s2336 + $0x18] sm:$0xff]
    %v2342 = vsel %vm1560, %v1542, 0
    %2344 = vmatpush.msra.mxu0 0.0
    %2345 = vmatpush.msra.mxu0 0.0
    %2346 = vmatpush.msra.mxu0 0.0
    %2347 = vmatpush.msra.mxu0 0.0
    %2348 = vmatpush.msra.mxu0 0.0
    %2349 = vmatpush.msra.mxu0 0.0
    %2350 = vmatpush.msra.mxu0 0.0
    %2351 = vmatpush.msra.mxu0 0.0
    %2352 = vmatpush.msra.mxu0 0.0
    %2353 = vmatpush.msra.mxu0 0.0
    %2354 = vmatpush.msra.mxu0 0.0
    %2355 = vmatpush.msra.mxu0 0.0
    %2356 = vmatpush.msra.mxu0 %v2340
    %2357 = vmatpush.msra.mxu0 %v2339
    %2358 = vmatpush.msra.mxu0 %v2338
    %2359 = vmatpush.msra.mxu0 %v2337
    %2360 = vmatmul.f32.gmra.mxu0 %v1574
    %v2361 = vpop.f32.mrf.mxu0
    %v2362 = vadd.f32 0.0, %v2361
    %2363 = vmatmul.f32.gmra.mxu0 %v1577
    %v2364 = vpop.f32.mrf.mxu0
    %v2365 = vadd.f32 0.0, %v2364
    %2366 = vmatmul.f32.gmra.mxu0 %v1779
    %v2367 = vpop.f32.mrf.mxu0
    %v2368 = vadd.f32 0.0, %v2367
    %2369 = vmatmul.f32.gmra.mxu0 %v1583
    %v2370 = vpop.f32.mrf.mxu0
    %v2371 = vadd.f32 0.0, %v2370
    %2372 = vmatmul.f32.gmra.mxu0 %v1586
    %v2373 = vpop.f32.mrf.mxu0
    %v2374 = vadd.f32 0.0, %v2373
    %2375 = vmatmul.f32.gmra.mxu0 %v1782
    %v2376 = vpop.f32.mrf.mxu0
    %v2377 = vadd.f32 0.0, %v2376
    %2378 = vmatmul.f32.gmra.mxu0 %v2217
    %v2379 = vpop.f32.mrf.mxu0
    %v2380 = vadd.f32 0.0, %v2379
    %2381 = vmatmul.f32.gmra.mxu0 %v2220
    %v2382 = vpop.f32.mrf.mxu0
    %v2383 = vadd.f32 0.0, %v2382
    %2384 = vmatmul.f32.gmra.mxu0 %v2342
    %v2385 = vpop.f32.mrf.mxu0
    %v2386 = vadd.f32 0.0, %v2385
    %2387 = vdwg.mxu0
    %v2388 = vadd.f32 %v2327, %v2362
    %v2389 = vadd.f32 %v2328, %v2365
    %v2390 = vadd.f32 %v2329, %v2368
    %v2391 = vadd.f32 %v2330, %v2371
    %v2392 = vadd.f32 %v2331, %v2374
    %v2393 = vadd.f32 %v2332, %v2377
    %v2394 = vadd.f32 %v2333, %v2380
    %v2395 = vadd.f32 %v2334, %v2383
    %v2396 = vadd.f32 %v2335, %v2386
    %s2397 = scalar_lea.vmem %s3, 384
    %v2398 = vld [vmem:[%s2397] sm:$0xff]
    %v2399 = vld [vmem:[%s2397 + $0x8] sm:$0xff]
    %v2400 = vld [vmem:[%s2397 + $0x10] sm:$0xff]
    %v2401 = vld [vmem:[%s2397 + $0x18] sm:$0xff]
    %v2403 = vsel %vm1560, %v1543, 0
    %v2406 = vsel %vm1560, %v1545, 0
    %v2409 = vsel %vm1560, %v1547, 0
    %2411 = vmatpush.msra.mxu0 0.0
    %2412 = vmatpush.msra.mxu0 0.0
    %2413 = vmatpush.msra.mxu0 0.0
    %2414 = vmatpush.msra.mxu0 0.0
    %2415 = vmatpush.msra.mxu0 0.0
    %2416 = vmatpush.msra.mxu0 0.0
    %2417 = vmatpush.msra.mxu0 0.0
    %2418 = vmatpush.msra.mxu0 0.0
    %2419 = vmatpush.msra.mxu0 0.0
    %2420 = vmatpush.msra.mxu0 0.0
    %2421 = vmatpush.msra.mxu0 0.0
    %2422 = vmatpush.msra.mxu0 0.0
    %2423 = vmatpush.msra.mxu0 %v2401
    %2424 = vmatpush.msra.mxu0 %v2400
    %2425 = vmatpush.msra.mxu0 %v2399
    %2426 = vmatpush.msra.mxu0 %v2398
    %2427 = vmatmul.f32.gmra.mxu0 %v1852
    %v2428 = vpop.f32.mrf.mxu0
    %v2429 = vadd.f32 0.0, %v2428
    %2430 = vmatmul.f32.gmra.mxu0 %v1855
    %v2431 = vpop.f32.mrf.mxu0
    %v2432 = vadd.f32 0.0, %v2431
    %2433 = vmatmul.f32.gmra.mxu0 %v1858
    %v2434 = vpop.f32.mrf.mxu0
    %v2435 = vadd.f32 0.0, %v2434
    %2436 = vmatmul.f32.gmra.mxu0 %v1861
    %v2437 = vpop.f32.mrf.mxu0
    %v2438 = vadd.f32 0.0, %v2437
    %2439 = vmatmul.f32.gmra.mxu0 %v1864
    %v2440 = vpop.f32.mrf.mxu0
    %v2441 = vadd.f32 0.0, %v2440
    %2442 = vmatmul.f32.gmra.mxu0 %v1867
    %v2443 = vpop.f32.mrf.mxu0
    %v2444 = vadd.f32 0.0, %v2443
    %2445 = vmatmul.f32.gmra.mxu0 %v2403
    %v2446 = vpop.f32.mrf.mxu0
    %v2447 = vadd.f32 0.0, %v2446
    %2448 = vmatmul.f32.gmra.mxu0 %v2406
    %v2449 = vpop.f32.mrf.mxu0
    %v2450 = vadd.f32 0.0, %v2449
    %2451 = vmatmul.f32.gmra.mxu0 %v2409
    %v2452 = vpop.f32.mrf.mxu0
    %v2453 = vadd.f32 0.0, %v2452
    %2454 = vdwg.mxu0
    %v2455 = vadd.f32 %v2388, %v2429
    %v2456 = vadd.f32 %v2389, %v2432
    %v2457 = vadd.f32 %v2390, %v2435
    %v2458 = vadd.f32 %v2391, %v2438
    %v2459 = vadd.f32 %v2392, %v2441
    %v2460 = vadd.f32 %v2393, %v2444
    %v2461 = vadd.f32 %v2394, %v2447
    %v2462 = vadd.f32 %v2395, %v2450
    %v2463 = vadd.f32 %v2396, %v2453
    %s2464 = scalar_lea.vmem %s3, 416
    %v2465 = vld [vmem:[%s2464] sm:$0xff]
    %v2466 = vld [vmem:[%s2464 + $0x8] sm:$0xff]
    %v2467 = vld [vmem:[%s2464 + $0x10] sm:$0xff]
    %v2468 = vld [vmem:[%s2464 + $0x18] sm:$0xff]
    %v2470 = vsel %vm1560, %v1544, 0
    %v2473 = vsel %vm1560, %v1546, 0
    %v2476 = vsel %vm1560, %v1548, 0
    %2478 = vmatpush.msra.mxu0 0.0
    %2479 = vmatpush.msra.mxu0 0.0
    %2480 = vmatpush.msra.mxu0 0.0
    %2481 = vmatpush.msra.mxu0 0.0
    %2482 = vmatpush.msra.mxu0 0.0
    %2483 = vmatpush.msra.mxu0 0.0
    %2484 = vmatpush.msra.mxu0 0.0
    %2485 = vmatpush.msra.mxu0 0.0
    %2486 = vmatpush.msra.mxu0 0.0
    %2487 = vmatpush.msra.mxu0 0.0
    %2488 = vmatpush.msra.mxu0 0.0
    %2489 = vmatpush.msra.mxu0 0.0
    %2490 = vmatpush.msra.mxu0 %v2468
    %2491 = vmatpush.msra.mxu0 %v2467
    %2492 = vmatpush.msra.mxu0 %v2466
    %2493 = vmatpush.msra.mxu0 %v2465
    %2494 = vmatmul.f32.gmra.mxu0 %v1937
    %v2495 = vpop.f32.mrf.mxu0
    %v2496 = vadd.f32 0.0, %v2495
    %2497 = vmatmul.f32.gmra.mxu0 %v1940
    %v2498 = vpop.f32.mrf.mxu0
    %v2499 = vadd.f32 0.0, %v2498
    %2500 = vmatmul.f32.gmra.mxu0 %v1943
    %v2501 = vpop.f32.mrf.mxu0
    %v2502 = vadd.f32 0.0, %v2501
    %2503 = vmatmul.f32.gmra.mxu0 %v1946
    %v2504 = vpop.f32.mrf.mxu0
    %v2505 = vadd.f32 0.0, %v2504
    %2506 = vmatmul.f32.gmra.mxu0 %v1949
    %v2507 = vpop.f32.mrf.mxu0
    %v2508 = vadd.f32 0.0, %v2507
    %2509 = vmatmul.f32.gmra.mxu0 %v1952
    %v2510 = vpop.f32.mrf.mxu0
    %v2511 = vadd.f32 0.0, %v2510
    %2512 = vmatmul.f32.gmra.mxu0 %v2470
    %v2513 = vpop.f32.mrf.mxu0
    %v2514 = vadd.f32 0.0, %v2513
    %2515 = vmatmul.f32.gmra.mxu0 %v2473
    %v2516 = vpop.f32.mrf.mxu0
    %v2517 = vadd.f32 0.0, %v2516
    %2518 = vmatmul.f32.gmra.mxu0 %v2476
    %v2519 = vpop.f32.mrf.mxu0
    %v2520 = vadd.f32 0.0, %v2519
    %2521 = vdwg.mxu0
    %v2522 = vadd.f32 %v2455, %v2496
    %v2523 = vadd.f32 %v2456, %v2499
    %v2524 = vadd.f32 %v2457, %v2502
    %v2525 = vadd.f32 %v2458, %v2505
    %v2526 = vadd.f32 %v2459, %v2508
    %v2527 = vadd.f32 %v2460, %v2511
    %v2528 = vadd.f32 %v2461, %v2514
    %v2529 = vadd.f32 %v2462, %v2517
    %v2530 = vadd.f32 %v2463, %v2520
    %s2531 = scalar_lea.vmem %s3, 448
    %v2532 = vld [vmem:[%s2531] sm:$0xff]
    %v2533 = vld [vmem:[%s2531 + $0x8] sm:$0xff]
    %v2534 = vld [vmem:[%s2531 + $0x10] sm:$0xff]
    %v2535 = vld [vmem:[%s2531 + $0x18] sm:$0xff]
    %v2537 = vsel %vm1560, %v1549, 0
    %2539 = vmatpush.msra.mxu0 0.0
    %2540 = vmatpush.msra.mxu0 0.0
    %2541 = vmatpush.msra.mxu0 0.0
    %2542 = vmatpush.msra.mxu0 0.0
    %2543 = vmatpush.msra.mxu0 0.0
    %2544 = vmatpush.msra.mxu0 0.0
    %2545 = vmatpush.msra.mxu0 0.0
    %2546 = vmatpush.msra.mxu0 0.0
    %2547 = vmatpush.msra.mxu0 0.0
    %2548 = vmatpush.msra.mxu0 0.0
    %2549 = vmatpush.msra.mxu0 0.0
    %2550 = vmatpush.msra.mxu0 0.0
    %2551 = vmatpush.msra.mxu0 %v2535
    %2552 = vmatpush.msra.mxu0 %v2534
    %2553 = vmatpush.msra.mxu0 %v2533
    %2554 = vmatpush.msra.mxu0 %v2532
    %2555 = vmatmul.f32.gmra.mxu0 %v1855
    %v2556 = vpop.f32.mrf.mxu0
    %v2557 = vadd.f32 0.0, %v2556
    %2558 = vmatmul.f32.gmra.mxu0 %v1858
    %v2559 = vpop.f32.mrf.mxu0
    %v2560 = vadd.f32 0.0, %v2559
    %2561 = vmatmul.f32.gmra.mxu0 %v2016
    %v2562 = vpop.f32.mrf.mxu0
    %v2563 = vadd.f32 0.0, %v2562
    %2564 = vmatmul.f32.gmra.mxu0 %v1864
    %v2565 = vpop.f32.mrf.mxu0
    %v2566 = vadd.f32 0.0, %v2565
    %2567 = vmatmul.f32.gmra.mxu0 %v1867
    %v2568 = vpop.f32.mrf.mxu0
    %v2569 = vadd.f32 0.0, %v2568
    %2570 = vmatmul.f32.gmra.mxu0 %v2019
    %v2571 = vpop.f32.mrf.mxu0
    %v2572 = vadd.f32 0.0, %v2571
    %2573 = vmatmul.f32.gmra.mxu0 %v2406
    %v2574 = vpop.f32.mrf.mxu0
    %v2575 = vadd.f32 0.0, %v2574
    %2576 = vmatmul.f32.gmra.mxu0 %v2409
    %v2577 = vpop.f32.mrf.mxu0
    %v2578 = vadd.f32 0.0, %v2577
    %2579 = vmatmul.f32.gmra.mxu0 %v2537
    %v2580 = vpop.f32.mrf.mxu0
    %v2581 = vadd.f32 0.0, %v2580
    %2582 = vdwg.mxu0
    %v2583 = vadd.f32 %v2522, %v2557
    %v2584 = vadd.f32 %v2523, %v2560
    %v2585 = vadd.f32 %v2524, %v2563
    %v2586 = vadd.f32 %v2525, %v2566
    %v2587 = vadd.f32 %v2526, %v2569
    %v2588 = vadd.f32 %v2527, %v2572
    %v2589 = vadd.f32 %v2528, %v2575
    %v2590 = vadd.f32 %v2529, %v2578
    %v2591 = vadd.f32 %v2530, %v2581
    %s2592 = scalar_lea.vmem %s3, 480
    %v2593 = vld [vmem:[%s2592] sm:$0xff]
    %v2594 = vld [vmem:[%s2592 + $0x8] sm:$0xff]
    %v2595 = vld [vmem:[%s2592 + $0x10] sm:$0xff]
    %v2596 = vld [vmem:[%s2592 + $0x18] sm:$0xff]
    %v2598 = vsel %vm1560, %v1550, 0
    %2600 = vmatpush.msra.mxu0 0.0
    %2601 = vmatpush.msra.mxu0 0.0
    %2602 = vmatpush.msra.mxu0 0.0
    %2603 = vmatpush.msra.mxu0 0.0
    %2604 = vmatpush.msra.mxu0 0.0
    %2605 = vmatpush.msra.mxu0 0.0
    %2606 = vmatpush.msra.mxu0 0.0
    %2607 = vmatpush.msra.mxu0 0.0
    %2608 = vmatpush.msra.mxu0 0.0
    %2609 = vmatpush.msra.mxu0 0.0
    %2610 = vmatpush.msra.mxu0 0.0
    %2611 = vmatpush.msra.mxu0 0.0
    %2612 = vmatpush.msra.mxu0 %v2596
    %2613 = vmatpush.msra.mxu0 %v2595
    %2614 = vmatpush.msra.mxu0 %v2594
    %2615 = vmatpush.msra.mxu0 %v2593
    %2616 = vmatmul.f32.gmra.mxu0 %v1940
    %v2617 = vpop.f32.mrf.mxu0
    %v2618 = vadd.f32 0.0, %v2617
    %2619 = vmatmul.f32.gmra.mxu0 %v1943
    %v2620 = vpop.f32.mrf.mxu0
    %v2621 = vadd.f32 0.0, %v2620
    %2622 = vmatmul.f32.gmra.mxu0 %v2083
    %v2623 = vpop.f32.mrf.mxu0
    %v2624 = vadd.f32 0.0, %v2623
    %2625 = vmatmul.f32.gmra.mxu0 %v1949
    %v2626 = vpop.f32.mrf.mxu0
    %v2627 = vadd.f32 0.0, %v2626
    %2628 = vmatmul.f32.gmra.mxu0 %v1952
    %v2629 = vpop.f32.mrf.mxu0
    %v2630 = vadd.f32 0.0, %v2629
    %2631 = vmatmul.f32.gmra.mxu0 %v2086
    %v2632 = vpop.f32.mrf.mxu0
    %v2633 = vadd.f32 0.0, %v2632
    %2634 = vmatmul.f32.gmra.mxu0 %v2473
    %v2635 = vpop.f32.mrf.mxu0
    %v2636 = vadd.f32 0.0, %v2635
    %2637 = vmatmul.f32.gmra.mxu0 %v2476
    %v2638 = vpop.f32.mrf.mxu0
    %v2639 = vadd.f32 0.0, %v2638
    %2640 = vmatmul.f32.gmra.mxu0 %v2598
    %v2641 = vpop.f32.mrf.mxu0
    %v2642 = vadd.f32 0.0, %v2641
    %2643 = vdwg.mxu0
    %v2644 = vadd.f32 %v2583, %v2618
    %v2645 = vadd.f32 %v2584, %v2621
    %v2646 = vadd.f32 %v2585, %v2624
    %v2647 = vadd.f32 %v2586, %v2627
    %v2648 = vadd.f32 %v2587, %v2630
    %v2649 = vadd.f32 %v2588, %v2633
    %v2650 = vadd.f32 %v2589, %v2636
    %v2651 = vadd.f32 %v2590, %v2639
    %v2652 = vadd.f32 %v2591, %v2642
    %v2653 = vld [vmem:[%s4] sm:$0x1]
    %v2655 = vperm.slane %v2653, 0
    %v2657 = vadd.f32 %v2644, %v2655
    %v2658 = vadd.f32 %v2645, %v2655
    %v2659 = vadd.f32 %v2646, %v2655
    %v2660 = vadd.f32 %v2647, %v2655
    %v2661 = vadd.f32 %v2648, %v2655
    %v2662 = vadd.f32 %v2649, %v2655
    %v2663 = vadd.f32 %v2650, %v2655
    %v2664 = vadd.f32 %v2651, %v2655
    %v2665 = vadd.f32 %v2652, %v2655
    %v2666 = vmax.f32 %v2657, 0.0
    %v2667 = vmax.f32 %v2658, 0.0
    %v2668 = vmax.f32 %v2659, 0.0
    %v2669 = vmax.f32 %v2660, 0.0
    %v2670 = vmax.f32 %v2661, 0.0
    %v2671 = vmax.f32 %v2662, 0.0
    %v2672 = vmax.f32 %v2663, 0.0
    %v2673 = vmax.f32 %v2664, 0.0
    %v2674 = vmax.f32 %v2665, 0.0
    %v2675 = vld [vmem:[%s5] sm:$0xff]
    %v2676 = vld [vmem:[%s5 + $0x8] sm:$0xff]
    %v2677 = vld [vmem:[%s5 + $0x10] sm:$0xff]
    %v2678 = vld [vmem:[%s5 + $0x18] sm:$0xff]
    %v2679 = vld [vmem:[%s5 + $0x20] sm:$0xff]
    %v2680 = vld [vmem:[%s5 + $0x28] sm:$0xff]
    %v2681 = vld [vmem:[%s5 + $0x30] sm:$0xff]
    %v2682 = vld [vmem:[%s5 + $0x38] sm:$0xff]
    %s2683 = scalar_lea.vmem %s5, 64
    %v2684 = vld [vmem:[%s2683] sm:$0xff]
    %v2685 = vld [vmem:[%s2683 + $0x8] sm:$0xff]
    %v2686 = vld [vmem:[%s2683 + $0x10] sm:$0xff]
    %v2687 = vld [vmem:[%s2683 + $0x18] sm:$0xff]
    %v2688 = vld [vmem:[%s2683 + $0x20] sm:$0xff]
    %v2689 = vld [vmem:[%s2683 + $0x28] sm:$0xff]
    %v2690 = vld [vmem:[%s2683 + $0x30] sm:$0xff]
    %v2691 = vld [vmem:[%s2683 + $0x38] sm:$0xff]
    %v2693 = vsel %vm156, %v2667, 0
    %2695 = vmatpush.msra.mxu0 0.0
    %2696 = vmatpush.msra.mxu0 0.0
    %2697 = vmatpush.msra.mxu0 0.0
    %2698 = vmatpush.msra.mxu0 0.0
    %2699 = vmatpush.msra.mxu0 0.0
    %2700 = vmatpush.msra.mxu0 0.0
    %2701 = vmatpush.msra.mxu0 0.0
    %2702 = vmatpush.msra.mxu0 0.0
    %2703 = vmatpush.msra.mxu0 %v2691
    %2704 = vmatpush.msra.mxu0 %v2690
    %2705 = vmatpush.msra.mxu0 %v2689
    %2706 = vmatpush.msra.mxu0 %v2688
    %2707 = vmatpush.msra.mxu0 %v2687
    %2708 = vmatpush.msra.mxu0 %v2686
    %2709 = vmatpush.msra.mxu0 %v2685
    %2710 = vmatpush.msra.mxu0 %v2684
    %2711 = vmatmul.f32.gmra.mxu0 %v2693
    %v2712 = vpop.f32.mrf.mxu0
    %v2713 = vadd.f32 0.0, %v2712
    %2714 = vdwg.mxu0
    %v2716 = vsel %vm156, %v2666, 0
    %2718 = vmatpush.msra.mxu0 0.0
    %2719 = vmatpush.msra.mxu0 0.0
    %2720 = vmatpush.msra.mxu0 0.0
    %2721 = vmatpush.msra.mxu0 0.0
    %2722 = vmatpush.msra.mxu0 0.0
    %2723 = vmatpush.msra.mxu0 0.0
    %2724 = vmatpush.msra.mxu0 0.0
    %2725 = vmatpush.msra.mxu0 0.0
    %2726 = vmatpush.msra.mxu0 %v2682
    %2727 = vmatpush.msra.mxu0 %v2681
    %2728 = vmatpush.msra.mxu0 %v2680
    %2729 = vmatpush.msra.mxu0 %v2679
    %2730 = vmatpush.msra.mxu0 %v2678
    %2731 = vmatpush.msra.mxu0 %v2677
    %2732 = vmatpush.msra.mxu0 %v2676
    %2733 = vmatpush.msra.mxu0 %v2675
    %2734 = vmatmul.f32.gmra.mxu0 %v2716
    %v2735 = vpop.f32.mrf.mxu0
    %v2736 = vadd.f32 %v2713, %v2735
    %2737 = vdwg.mxu0
    %s2738 = scalar_lea.vmem %s5, 128
    %v2739 = vld [vmem:[%s2738] sm:$0xff]
    %v2740 = vld [vmem:[%s2738 + $0x8] sm:$0xff]
    %v2741 = vld [vmem:[%s2738 + $0x10] sm:$0xff]
    %v2742 = vld [vmem:[%s2738 + $0x18] sm:$0xff]
    %v2743 = vld [vmem:[%s2738 + $0x20] sm:$0xff]
    %v2744 = vld [vmem:[%s2738 + $0x28] sm:$0xff]
    %v2745 = vld [vmem:[%s2738 + $0x30] sm:$0xff]
    %v2746 = vld [vmem:[%s2738 + $0x38] sm:$0xff]
    %v2748 = vsel %vm156, %v2668, 0
    %2750 = vmatpush.msra.mxu0 0.0
    %2751 = vmatpush.msra.mxu0 0.0
    %2752 = vmatpush.msra.mxu0 0.0
    %2753 = vmatpush.msra.mxu0 0.0
    %2754 = vmatpush.msra.mxu0 0.0
    %2755 = vmatpush.msra.mxu0 0.0
    %2756 = vmatpush.msra.mxu0 0.0
    %2757 = vmatpush.msra.mxu0 0.0
    %2758 = vmatpush.msra.mxu0 %v2746
    %2759 = vmatpush.msra.mxu0 %v2745
    %2760 = vmatpush.msra.mxu0 %v2744
    %2761 = vmatpush.msra.mxu0 %v2743
    %2762 = vmatpush.msra.mxu0 %v2742
    %2763 = vmatpush.msra.mxu0 %v2741
    %2764 = vmatpush.msra.mxu0 %v2740
    %2765 = vmatpush.msra.mxu0 %v2739
    %2766 = vmatmul.f32.gmra.mxu0 %v2748
    %v2767 = vpop.f32.mrf.mxu0
    %v2768 = vadd.f32 0.0, %v2767
    %2769 = vdwg.mxu0
    %v2770 = vadd.f32 %v2736, %v2768
    %s2771 = scalar_lea.vmem %s5, 192
    %v2772 = vld [vmem:[%s2771] sm:$0xff]
    %v2773 = vld [vmem:[%s2771 + $0x8] sm:$0xff]
    %v2774 = vld [vmem:[%s2771 + $0x10] sm:$0xff]
    %v2775 = vld [vmem:[%s2771 + $0x18] sm:$0xff]
    %v2776 = vld [vmem:[%s2771 + $0x20] sm:$0xff]
    %v2777 = vld [vmem:[%s2771 + $0x28] sm:$0xff]
    %v2778 = vld [vmem:[%s2771 + $0x30] sm:$0xff]
    %v2779 = vld [vmem:[%s2771 + $0x38] sm:$0xff]
    %v2781 = vsel %vm156, %v2669, 0
    %2783 = vmatpush.msra.mxu0 0.0
    %2784 = vmatpush.msra.mxu0 0.0
    %2785 = vmatpush.msra.mxu0 0.0
    %2786 = vmatpush.msra.mxu0 0.0
    %2787 = vmatpush.msra.mxu0 0.0
    %2788 = vmatpush.msra.mxu0 0.0
    %2789 = vmatpush.msra.mxu0 0.0
    %2790 = vmatpush.msra.mxu0 0.0
    %2791 = vmatpush.msra.mxu0 %v2779
    %2792 = vmatpush.msra.mxu0 %v2778
    %2793 = vmatpush.msra.mxu0 %v2777
    %2794 = vmatpush.msra.mxu0 %v2776
    %2795 = vmatpush.msra.mxu0 %v2775
    %2796 = vmatpush.msra.mxu0 %v2774
    %2797 = vmatpush.msra.mxu0 %v2773
    %2798 = vmatpush.msra.mxu0 %v2772
    %2799 = vmatmul.f32.gmra.mxu0 %v2781
    %v2800 = vpop.f32.mrf.mxu0
    %v2801 = vadd.f32 0.0, %v2800
    %2802 = vdwg.mxu0
    %v2803 = vadd.f32 %v2770, %v2801
    %s2804 = scalar_lea.vmem %s5, 256
    %v2805 = vld [vmem:[%s2804] sm:$0xff]
    %v2806 = vld [vmem:[%s2804 + $0x8] sm:$0xff]
    %v2807 = vld [vmem:[%s2804 + $0x10] sm:$0xff]
    %v2808 = vld [vmem:[%s2804 + $0x18] sm:$0xff]
    %v2809 = vld [vmem:[%s2804 + $0x20] sm:$0xff]
    %v2810 = vld [vmem:[%s2804 + $0x28] sm:$0xff]
    %v2811 = vld [vmem:[%s2804 + $0x30] sm:$0xff]
    %v2812 = vld [vmem:[%s2804 + $0x38] sm:$0xff]
    %v2814 = vsel %vm156, %v2670, 0
    %2816 = vmatpush.msra.mxu0 0.0
    %2817 = vmatpush.msra.mxu0 0.0
    %2818 = vmatpush.msra.mxu0 0.0
    %2819 = vmatpush.msra.mxu0 0.0
    %2820 = vmatpush.msra.mxu0 0.0
    %2821 = vmatpush.msra.mxu0 0.0
    %2822 = vmatpush.msra.mxu0 0.0
    %2823 = vmatpush.msra.mxu0 0.0
    %2824 = vmatpush.msra.mxu0 %v2812
    %2825 = vmatpush.msra.mxu0 %v2811
    %2826 = vmatpush.msra.mxu0 %v2810
    %2827 = vmatpush.msra.mxu0 %v2809
    %2828 = vmatpush.msra.mxu0 %v2808
    %2829 = vmatpush.msra.mxu0 %v2807
    %2830 = vmatpush.msra.mxu0 %v2806
    %2831 = vmatpush.msra.mxu0 %v2805
    %2832 = vmatmul.f32.gmra.mxu0 %v2814
    %v2833 = vpop.f32.mrf.mxu0
    %v2834 = vadd.f32 0.0, %v2833
    %2835 = vdwg.mxu0
    %v2836 = vadd.f32 %v2803, %v2834
    %s2837 = scalar_lea.vmem %s5, 320
    %v2838 = vld [vmem:[%s2837] sm:$0xff]
    %v2839 = vld [vmem:[%s2837 + $0x8] sm:$0xff]
    %v2840 = vld [vmem:[%s2837 + $0x10] sm:$0xff]
    %v2841 = vld [vmem:[%s2837 + $0x18] sm:$0xff]
    %v2842 = vld [vmem:[%s2837 + $0x20] sm:$0xff]
    %v2843 = vld [vmem:[%s2837 + $0x28] sm:$0xff]
    %v2844 = vld [vmem:[%s2837 + $0x30] sm:$0xff]
    %v2845 = vld [vmem:[%s2837 + $0x38] sm:$0xff]
    %v2847 = vsel %vm156, %v2671, 0
    %2849 = vmatpush.msra.mxu0 0.0
    %2850 = vmatpush.msra.mxu0 0.0
    %2851 = vmatpush.msra.mxu0 0.0
    %2852 = vmatpush.msra.mxu0 0.0
    %2853 = vmatpush.msra.mxu0 0.0
    %2854 = vmatpush.msra.mxu0 0.0
    %2855 = vmatpush.msra.mxu0 0.0
    %2856 = vmatpush.msra.mxu0 0.0
    %2857 = vmatpush.msra.mxu0 %v2845
    %2858 = vmatpush.msra.mxu0 %v2844
    %2859 = vmatpush.msra.mxu0 %v2843
    %2860 = vmatpush.msra.mxu0 %v2842
    %2861 = vmatpush.msra.mxu0 %v2841
    %2862 = vmatpush.msra.mxu0 %v2840
    %2863 = vmatpush.msra.mxu0 %v2839
    %2864 = vmatpush.msra.mxu0 %v2838
    %2865 = vmatmul.f32.gmra.mxu0 %v2847
    %v2866 = vpop.f32.mrf.mxu0
    %v2867 = vadd.f32 0.0, %v2866
    %2868 = vdwg.mxu0
    %v2869 = vadd.f32 %v2836, %v2867
    %s2870 = scalar_lea.vmem %s5, 384
    %v2871 = vld [vmem:[%s2870] sm:$0xff]
    %v2872 = vld [vmem:[%s2870 + $0x8] sm:$0xff]
    %v2873 = vld [vmem:[%s2870 + $0x10] sm:$0xff]
    %v2874 = vld [vmem:[%s2870 + $0x18] sm:$0xff]
    %v2875 = vld [vmem:[%s2870 + $0x20] sm:$0xff]
    %v2876 = vld [vmem:[%s2870 + $0x28] sm:$0xff]
    %v2877 = vld [vmem:[%s2870 + $0x30] sm:$0xff]
    %v2878 = vld [vmem:[%s2870 + $0x38] sm:$0xff]
    %v2880 = vsel %vm156, %v2672, 0
    %2882 = vmatpush.msra.mxu0 0.0
    %2883 = vmatpush.msra.mxu0 0.0
    %2884 = vmatpush.msra.mxu0 0.0
    %2885 = vmatpush.msra.mxu0 0.0
    %2886 = vmatpush.msra.mxu0 0.0
    %2887 = vmatpush.msra.mxu0 0.0
    %2888 = vmatpush.msra.mxu0 0.0
    %2889 = vmatpush.msra.mxu0 0.0
    %2890 = vmatpush.msra.mxu0 %v2878
    %2891 = vmatpush.msra.mxu0 %v2877
    %2892 = vmatpush.msra.mxu0 %v2876
    %2893 = vmatpush.msra.mxu0 %v2875
    %2894 = vmatpush.msra.mxu0 %v2874
    %2895 = vmatpush.msra.mxu0 %v2873
    %2896 = vmatpush.msra.mxu0 %v2872
    %2897 = vmatpush.msra.mxu0 %v2871
    %2898 = vmatmul.f32.gmra.mxu0 %v2880
    %v2899 = vpop.f32.mrf.mxu0
    %v2900 = vadd.f32 0.0, %v2899
    %2901 = vdwg.mxu0
    %v2902 = vadd.f32 %v2869, %v2900
    %s2903 = scalar_lea.vmem %s5, 448
    %v2904 = vld [vmem:[%s2903] sm:$0xff]
    %v2905 = vld [vmem:[%s2903 + $0x8] sm:$0xff]
    %v2906 = vld [vmem:[%s2903 + $0x10] sm:$0xff]
    %v2907 = vld [vmem:[%s2903 + $0x18] sm:$0xff]
    %v2908 = vld [vmem:[%s2903 + $0x20] sm:$0xff]
    %v2909 = vld [vmem:[%s2903 + $0x28] sm:$0xff]
    %v2910 = vld [vmem:[%s2903 + $0x30] sm:$0xff]
    %v2911 = vld [vmem:[%s2903 + $0x38] sm:$0xff]
    %v2913 = vsel %vm156, %v2673, 0
    %2915 = vmatpush.msra.mxu0 0.0
    %2916 = vmatpush.msra.mxu0 0.0
    %2917 = vmatpush.msra.mxu0 0.0
    %2918 = vmatpush.msra.mxu0 0.0
    %2919 = vmatpush.msra.mxu0 0.0
    %2920 = vmatpush.msra.mxu0 0.0
    %2921 = vmatpush.msra.mxu0 0.0
    %2922 = vmatpush.msra.mxu0 0.0
    %2923 = vmatpush.msra.mxu0 %v2911
    %2924 = vmatpush.msra.mxu0 %v2910
    %2925 = vmatpush.msra.mxu0 %v2909
    %2926 = vmatpush.msra.mxu0 %v2908
    %2927 = vmatpush.msra.mxu0 %v2907
    %2928 = vmatpush.msra.mxu0 %v2906
    %2929 = vmatpush.msra.mxu0 %v2905
    %2930 = vmatpush.msra.mxu0 %v2904
    %2931 = vmatmul.f32.gmra.mxu0 %v2913
    %v2932 = vpop.f32.mrf.mxu0
    %v2933 = vadd.f32 0.0, %v2932
    %2934 = vdwg.mxu0
    %v2935 = vadd.f32 %v2902, %v2933
    %s2936 = scalar_lea.vmem %s5, 512
    %v2937 = vld [vmem:[%s2936] sm:$0xff]
    %v2938 = vld [vmem:[%s2936 + $0x8] sm:$0xff]
    %v2939 = vld [vmem:[%s2936 + $0x10] sm:$0xff]
    %v2940 = vld [vmem:[%s2936 + $0x18] sm:$0xff]
    %v2941 = vld [vmem:[%s2936 + $0x20] sm:$0xff]
    %v2942 = vld [vmem:[%s2936 + $0x28] sm:$0xff]
    %v2943 = vld [vmem:[%s2936 + $0x30] sm:$0xff]
    %v2944 = vld [vmem:[%s2936 + $0x38] sm:$0xff]
    %v2946 = vsel %vm156, %v2674, 0
    %2948 = vmatpush.msra.mxu0 0.0
    %2949 = vmatpush.msra.mxu0 0.0
    %2950 = vmatpush.msra.mxu0 0.0
    %2951 = vmatpush.msra.mxu0 0.0
    %2952 = vmatpush.msra.mxu0 0.0
    %2953 = vmatpush.msra.mxu0 0.0
    %2954 = vmatpush.msra.mxu0 0.0
    %2955 = vmatpush.msra.mxu0 0.0
    %2956 = vmatpush.msra.mxu0 %v2944
    %2957 = vmatpush.msra.mxu0 %v2943
    %2958 = vmatpush.msra.mxu0 %v2942
    %2959 = vmatpush.msra.mxu0 %v2941
    %2960 = vmatpush.msra.mxu0 %v2940
    %2961 = vmatpush.msra.mxu0 %v2939
    %2962 = vmatpush.msra.mxu0 %v2938
    %2963 = vmatpush.msra.mxu0 %v2937
    %2964 = vmatmul.f32.gmra.mxu0 %v2946
    %v2965 = vpop.f32.mrf.mxu0
    %v2966 = vadd.f32 0.0, %v2965
    %2967 = vdwg.mxu0
    %v2968 = vadd.f32 %v2935, %v2966
    %v2969 = vld [vmem:[%s6] sm:$0x1]
    %v2971 = vperm.slane %v2969, 0
    %v2973 = vadd.f32 %v2968, %v2971
    %v2974 = vmax.f32 %v2973, 0.0
    %v2975 = vld [vmem:[%s7] sm:$0xff]
    %v2976 = vld [vmem:[%s7 + $0x8] sm:$0xff]
    %v2977 = vld [vmem:[%s7 + $0x10] sm:$0xff]
    %v2978 = vld [vmem:[%s7 + $0x18] sm:$0xff]
    %v2979 = vld [vmem:[%s7 + $0x20] sm:$0xff]
    %v2980 = vld [vmem:[%s7 + $0x28] sm:$0xff]
    %v2981 = vld [vmem:[%s7 + $0x30] sm:$0xff]
    %v2982 = vld [vmem:[%s7 + $0x38] sm:$0xff]
    %v2983 = vld [vmem:[%s7 + $0x40] sm:$0xff]
    %v2984 = vld [vmem:[%s7 + $0x48] sm:$0xff]
    %v2985 = vld [vmem:[%s7 + $0x50] sm:$0xff]
    %v2986 = vld [vmem:[%s7 + $0x58] sm:$0xff]
    %v2987 = vld [vmem:[%s7 + $0x60] sm:$0xff]
    %v2988 = vld [vmem:[%s7 + $0x68] sm:$0xff]
    %v2989 = vld [vmem:[%s7 + $0x70] sm:$0xff]
    %v2990 = vld [vmem:[%s7 + $0x78] sm:$0xff]
    %v2991 = vld [vmem:[%s7 + $0x80] sm:$0xff]
    %v2992 = vld [vmem:[%s7 + $0x88] sm:$0xff]
    %v2993 = vld [vmem:[%s7 + $0x90] sm:$0xff]
    %v2994 = vld [vmem:[%s7 + $0x98] sm:$0xff]
    %v2995 = vld [vmem:[%s7 + $0xa0] sm:$0xff]
    %v2996 = vld [vmem:[%s7 + $0xa8] sm:$0xff]
    %v2997 = vld [vmem:[%s7 + $0xb0] sm:$0xff]
    %v2998 = vld [vmem:[%s7 + $0xb8] sm:$0xff]
    %v2999 = vld [vmem:[%s7 + $0xc0] sm:$0xff]
    %v3000 = vld [vmem:[%s7 + $0xc8] sm:$0xff]
    %v3001 = vld [vmem:[%s7 + $0xd0] sm:$0xff]
    %v3002 = vld [vmem:[%s7 + $0xd8] sm:$0xff]
    %v3003 = vld [vmem:[%s7 + $0xe0] sm:$0xff]
    %v3004 = vld [vmem:[%s7 + $0xe8] sm:$0xff]
    %v3005 = vld [vmem:[%s7 + $0xf0] sm:$0xff]
    %v3006 = vld [vmem:[%s7 + $0xf8] sm:$0xff]
    %v3008 = vsel %vm156, %v2974, 0
    %3010 = vmatpush.msra.mxu0 0.0
    %3011 = vmatpush.msra.mxu0 0.0
    %3012 = vmatpush.msra.mxu0 0.0
    %3013 = vmatpush.msra.mxu0 0.0
    %3014 = vmatpush.msra.mxu0 0.0
    %3015 = vmatpush.msra.mxu0 0.0
    %3016 = vmatpush.msra.mxu0 0.0
    %3017 = vmatpush.msra.mxu0 0.0
    %3018 = vmatpush.msra.mxu0 %v3003
    %3019 = vmatpush.msra.mxu0 %v2999
    %3020 = vmatpush.msra.mxu0 %v2995
    %3021 = vmatpush.msra.mxu0 %v2991
    %3022 = vmatpush.msra.mxu0 %v2987
    %3023 = vmatpush.msra.mxu0 %v2983
    %3024 = vmatpush.msra.mxu0 %v2979
    %3025 = vmatpush.msra.mxu0 %v2975
    %3026 = vmatmul.f32.gmra.mxu0 %v3008
    %v3027 = vpop.f32.mrf.mxu0
    %v3028 = vadd.f32 0.0, %v3027
    %3029 = vdwg.mxu0
    %3030 = vmatpush.msra.mxu0 0.0
    %3031 = vmatpush.msra.mxu0 0.0
    %3032 = vmatpush.msra.mxu0 0.0
    %3033 = vmatpush.msra.mxu0 0.0
    %3034 = vmatpush.msra.mxu0 0.0
    %3035 = vmatpush.msra.mxu0 0.0
    %3036 = vmatpush.msra.mxu0 0.0
    %3037 = vmatpush.msra.mxu0 0.0
    %3038 = vmatpush.msra.mxu0 %v3004
    %3039 = vmatpush.msra.mxu0 %v3000
    %3040 = vmatpush.msra.mxu0 %v2996
    %3041 = vmatpush.msra.mxu0 %v2992
    %3042 = vmatpush.msra.mxu0 %v2988
    %3043 = vmatpush.msra.mxu0 %v2984
    %3044 = vmatpush.msra.mxu0 %v2980
    %3045 = vmatpush.msra.mxu0 %v2976
    %3046 = vmatmul.f32.gmra.mxu0 %v3008
    %v3047 = vpop.f32.mrf.mxu0
    %v3048 = vadd.f32 0.0, %v3047
    %3049 = vdwg.mxu0
    %3050 = vmatpush.msra.mxu0 0.0
    %3051 = vmatpush.msra.mxu0 0.0
    %3052 = vmatpush.msra.mxu0 0.0
    %3053 = vmatpush.msra.mxu0 0.0
    %3054 = vmatpush.msra.mxu0 0.0
    %3055 = vmatpush.msra.mxu0 0.0
    %3056 = vmatpush.msra.mxu0 0.0
    %3057 = vmatpush.msra.mxu0 0.0
    %3058 = vmatpush.msra.mxu0 %v3005
    %3059 = vmatpush.msra.mxu0 %v3001
    %3060 = vmatpush.msra.mxu0 %v2997
    %3061 = vmatpush.msra.mxu0 %v2993
    %3062 = vmatpush.msra.mxu0 %v2989
    %3063 = vmatpush.msra.mxu0 %v2985
    %3064 = vmatpush.msra.mxu0 %v2981
    %3065 = vmatpush.msra.mxu0 %v2977
    %3066 = vmatmul.f32.gmra.mxu0 %v3008
    %v3067 = vpop.f32.mrf.mxu0
    %v3068 = vadd.f32 0.0, %v3067
    %3069 = vdwg.mxu0
    %3070 = vmatpush.msra.mxu0 0.0
    %3071 = vmatpush.msra.mxu0 0.0
    %3072 = vmatpush.msra.mxu0 0.0
    %3073 = vmatpush.msra.mxu0 0.0
    %3074 = vmatpush.msra.mxu0 0.0
    %3075 = vmatpush.msra.mxu0 0.0
    %3076 = vmatpush.msra.mxu0 0.0
    %3077 = vmatpush.msra.mxu0 0.0
    %3078 = vmatpush.msra.mxu0 %v3006
    %3079 = vmatpush.msra.mxu0 %v3002
    %3080 = vmatpush.msra.mxu0 %v2998
    %3081 = vmatpush.msra.mxu0 %v2994
    %3082 = vmatpush.msra.mxu0 %v2990
    %3083 = vmatpush.msra.mxu0 %v2986
    %3084 = vmatpush.msra.mxu0 %v2982
    %3085 = vmatpush.msra.mxu0 %v2978
    %3086 = vmatmul.f32.gmra.mxu0 %v3008
    %v3087 = vpop.f32.mrf.mxu0
    %v3088 = vadd.f32 0.0, %v3087
    %3089 = vdwg.mxu0
    %v3090 = vld [vmem:[%s9] sm:$0xff]
    %v3091 = vld [vmem:[%s9 + $0x8] sm:$0xff]
    %v3092 = vld [vmem:[%s9 + $0x10] sm:$0xff]
    %v3093 = vld [vmem:[%s9 + $0x18] sm:$0xff]
    %v3094 = vld [vmem:[%s9 + $0x20] sm:$0xff]
    %v3095 = vld [vmem:[%s9 + $0x28] sm:$0xff]
    %v3096 = vld [vmem:[%s9 + $0x30] sm:$0xff]
    %v3097 = vld [vmem:[%s9 + $0x38] sm:$0xff]
    %3098 = vmatpush.msra.mxu0 0.0
    %3099 = vmatpush.msra.mxu0 0.0
    %3100 = vmatpush.msra.mxu0 0.0
    %3101 = vmatpush.msra.mxu0 0.0
    %3102 = vmatpush.msra.mxu0 0.0
    %3103 = vmatpush.msra.mxu0 0.0
    %3104 = vmatpush.msra.mxu0 0.0
    %3105 = vmatpush.msra.mxu0 0.0
    %3106 = vmatpush.msra.mxu0 %v3097
    %3107 = vmatpush.msra.mxu0 %v3096
    %3108 = vmatpush.msra.mxu0 %v3095
    %3109 = vmatpush.msra.mxu0 %v3094
    %3110 = vmatpush.msra.mxu0 %v3093
    %3111 = vmatpush.msra.mxu0 %v3092
    %3112 = vmatpush.msra.mxu0 %v3091
    %3113 = vmatpush.msra.mxu0 %v3090
    %3114 = vmatmul.f32.gmra.mxu0 %v3008
    %v3115 = vpop.f32.mrf.mxu0
    %v3116 = vadd.f32 0.0, %v3115
    %3117 = vdwg.mxu0
    %v3118 = vld [vmem:[%s10] sm:$0xff]
    %v3119 = vld [vmem:[%s10 + $0x8] sm:$0xff]
    %v3120 = vld [vmem:[%s10 + $0x10] sm:$0xff]
    %v3121 = vld [vmem:[%s10 + $0x18] sm:$0xff]
    %v3122 = vld [vmem:[%s10 + $0x20] sm:$0x1]
    %v3123 = vld [vmem:[%s10 + $0x28] sm:$0x1]
    %v3124 = vld [vmem:[%s10 + $0x30] sm:$0x1]
    %v3125 = vld [vmem:[%s10 + $0x38] sm:$0x1]
    %vm3126 = vcmask 72704
    %v3128 = vsel %vm3126, %v3116, 0
    %vm3130 = vcmask 1040384
    %v3132 = vsel %vm3130, %v3122, 0
    %v3135 = vsel %vm3130, %v3123, 0
    %v3138 = vsel %vm3130, %v3124, 0
    %v3141 = vsel %vm3130, %v3125, 0
    %3143 = vmatpush.msra.mxu0 0.0
    %3144 = vmatpush.msra.mxu0 0.0
    %3145 = vmatpush.msra.mxu0 0.0
    %3146 = vmatpush.msra.mxu0 0.0
    %3147 = vmatpush.msra.mxu0 0.0
    %3148 = vmatpush.msra.mxu0 0.0
    %3149 = vmatpush.msra.mxu0 0.0
    %3150 = vmatpush.msra.mxu0 0.0
    %3151 = vmatpush.msra.mxu0 0.0
    %3152 = vmatpush.msra.mxu0 0.0
    %3153 = vmatpush.msra.mxu0 0.0
    %3154 = vmatpush.msra.mxu0 0.0
    %3155 = vmatpush.msra.mxu0 0.0
    %3156 = vmatpush.msra.mxu0 0.0
    %3157 = vmatpush.msra.mxu0 %v3132
    %3158 = vmatpush.msra.mxu0 %v3118
    %3159 = vmatmul.f32.gmra.mxu0 %v3128
    %v3160 = vpop.f32.mrf.mxu0
    %v3161 = vadd.f32 0.0, %v3160
    %3162 = vdwg.mxu0
    %3163 = vmatpush.msra.mxu0 0.0
    %3164 = vmatpush.msra.mxu0 0.0
    %3165 = vmatpush.msra.mxu0 0.0
    %3166 = vmatpush.msra.mxu0 0.0
    %3167 = vmatpush.msra.mxu0 0.0
    %3168 = vmatpush.msra.mxu0 0.0
    %3169 = vmatpush.msra.mxu0 0.0
    %3170 = vmatpush.msra.mxu0 0.0
    %3171 = vmatpush.msra.mxu0 0.0
    %3172 = vmatpush.msra.mxu0 0.0
    %3173 = vmatpush.msra.mxu0 0.0
    %3174 = vmatpush.msra.mxu0 0.0
    %3175 = vmatpush.msra.mxu0 0.0
    %3176 = vmatpush.msra.mxu0 0.0
    %3177 = vmatpush.msra.mxu0 %v3135
    %3178 = vmatpush.msra.mxu0 %v3119
    %3179 = vmatmul.f32.gmra.mxu0 %v3128
    %v3180 = vpop.f32.mrf.mxu0
    %v3181 = vadd.f32 0.0, %v3180
    %3182 = vdwg.mxu0
    %3183 = vmatpush.msra.mxu0 0.0
    %3184 = vmatpush.msra.mxu0 0.0
    %3185 = vmatpush.msra.mxu0 0.0
    %3186 = vmatpush.msra.mxu0 0.0
    %3187 = vmatpush.msra.mxu0 0.0
    %3188 = vmatpush.msra.mxu0 0.0
    %3189 = vmatpush.msra.mxu0 0.0
    %3190 = vmatpush.msra.mxu0 0.0
    %3191 = vmatpush.msra.mxu0 0.0
    %3192 = vmatpush.msra.mxu0 0.0
    %3193 = vmatpush.msra.mxu0 0.0
    %3194 = vmatpush.msra.mxu0 0.0
    %3195 = vmatpush.msra.mxu0 0.0
    %3196 = vmatpush.msra.mxu0 0.0
    %3197 = vmatpush.msra.mxu0 %v3138
    %3198 = vmatpush.msra.mxu0 %v3120
    %3199 = vmatmul.f32.gmra.mxu0 %v3128
    %v3200 = vpop.f32.mrf.mxu0
    %v3201 = vadd.f32 0.0, %v3200
    %3202 = vdwg.mxu0
    %3203 = vmatpush.msra.mxu0 0.0
    %3204 = vmatpush.msra.mxu0 0.0
    %3205 = vmatpush.msra.mxu0 0.0
    %3206 = vmatpush.msra.mxu0 0.0
    %3207 = vmatpush.msra.mxu0 0.0
    %3208 = vmatpush.msra.mxu0 0.0
    %3209 = vmatpush.msra.mxu0 0.0
    %3210 = vmatpush.msra.mxu0 0.0
    %3211 = vmatpush.msra.mxu0 0.0
    %3212 = vmatpush.msra.mxu0 0.0
    %3213 = vmatpush.msra.mxu0 0.0
    %3214 = vmatpush.msra.mxu0 0.0
    %3215 = vmatpush.msra.mxu0 0.0
    %3216 = vmatpush.msra.mxu0 0.0
    %3217 = vmatpush.msra.mxu0 %v3141
    %3218 = vmatpush.msra.mxu0 %v3121
    %3219 = vmatmul.f32.gmra.mxu0 %v3128
    %v3220 = vpop.f32.mrf.mxu0
    %v3221 = vadd.f32 0.0, %v3220
    %3222 = vdwg.mxu0
    %v3223 = vadd.f32 %v3028, %v3161
    %v3224 = vadd.f32 %v3048, %v3181
    %v3225 = vadd.f32 %v3068, %v3201
    %v3226 = vadd.f32 %v3088, %v3221
    %v3227 = vld [vmem:[%s13] sm:$0xf]
    %v3229 = vperm.slane %v3227, 0
    %v3230 = vperm.slane %v3227, 1
    %v3231 = vperm.slane %v3227, 2
    %v3232 = vperm.slane %v3227, 3
    %v3237 = vadd.f32 %v3223, %v3229
    %v3238 = vadd.f32 %v3224, %v3230
    %v3239 = vadd.f32 %v3225, %v3231
    %v3240 = vadd.f32 %v3226, %v3232
    %v3241 = vmax.f32 %v3237, 0.0
    %v3242 = vmax.f32 %v3238, 0.0
    %v3243 = vmax.f32 %v3239, 0.0
    %v3244 = vmax.f32 %v3240, 0.0
    %v3245 = vld [vmem:[%s8] sm:$0xff]
    %v3246 = vld [vmem:[%s8 + $0x8] sm:$0xff]
    %v3247 = vld [vmem:[%s8 + $0x10] sm:$0xff]
    %v3248 = vld [vmem:[%s8 + $0x18] sm:$0xff]
    %v3249 = vld [vmem:[%s8 + $0x20] sm:$0xff]
    %v3250 = vld [vmem:[%s8 + $0x28] sm:$0xff]
    %v3251 = vld [vmem:[%s8 + $0x30] sm:$0xff]
    %v3252 = vld [vmem:[%s8 + $0x38] sm:$0xff]
    %v3253 = vld [vmem:[%s8 + $0x40] sm:$0xff]
    %v3254 = vld [vmem:[%s8 + $0x48] sm:$0xff]
    %v3255 = vld [vmem:[%s8 + $0x50] sm:$0xff]
    %v3256 = vld [vmem:[%s8 + $0x58] sm:$0xff]
    %v3257 = vld [vmem:[%s8 + $0x60] sm:$0xff]
    %v3258 = vld [vmem:[%s8 + $0x68] sm:$0xff]
    %v3259 = vld [vmem:[%s8 + $0x70] sm:$0xff]
    %v3260 = vld [vmem:[%s8 + $0x78] sm:$0xff]
    %v3261 = vld [vmem:[%s8 + $0x80] sm:$0xff]
    %v3262 = vld [vmem:[%s8 + $0x88] sm:$0xff]
    %v3263 = vld [vmem:[%s8 + $0x90] sm:$0xff]
    %v3264 = vld [vmem:[%s8 + $0x98] sm:$0xff]
    %v3265 = vld [vmem:[%s8 + $0xa0] sm:$0xff]
    %v3266 = vld [vmem:[%s8 + $0xa8] sm:$0xff]
    %v3267 = vld [vmem:[%s8 + $0xb0] sm:$0xff]
    %v3268 = vld [vmem:[%s8 + $0xb8] sm:$0xff]
    %v3269 = vld [vmem:[%s8 + $0xc0] sm:$0xff]
    %v3270 = vld [vmem:[%s8 + $0xc8] sm:$0xff]
    %v3271 = vld [vmem:[%s8 + $0xd0] sm:$0xff]
    %v3272 = vld [vmem:[%s8 + $0xd8] sm:$0xff]
    %v3273 = vld [vmem:[%s8 + $0xe0] sm:$0xff]
    %v3274 = vld [vmem:[%s8 + $0xe8] sm:$0xff]
    %v3275 = vld [vmem:[%s8 + $0xf0] sm:$0xff]
    %v3276 = vld [vmem:[%s8 + $0xf8] sm:$0xff]
    %v3277 = vld [vmem:[%s8 + $0x100] sm:$0xff]
    %v3278 = vld [vmem:[%s8 + $0x108] sm:$0xff]
    %v3279 = vld [vmem:[%s8 + $0x110] sm:$0xff]
    %v3280 = vld [vmem:[%s8 + $0x118] sm:$0xff]
    %v3281 = vld [vmem:[%s8 + $0x120] sm:$0xff]
    %v3282 = vld [vmem:[%s8 + $0x128] sm:$0xff]
    %v3283 = vld [vmem:[%s8 + $0x130] sm:$0xff]
    %v3284 = vld [vmem:[%s8 + $0x138] sm:$0xff]
    %v3285 = vld [vmem:[%s8 + $0x140] sm:$0xff]
    %v3286 = vld [vmem:[%s8 + $0x148] sm:$0xff]
    %v3287 = vld [vmem:[%s8 + $0x150] sm:$0xff]
    %v3288 = vld [vmem:[%s8 + $0x158] sm:$0xff]
    %v3289 = vld [vmem:[%s8 + $0x160] sm:$0xff]
    %v3290 = vld [vmem:[%s8 + $0x168] sm:$0xff]
    %v3291 = vld [vmem:[%s8 + $0x170] sm:$0xff]
    %v3292 = vld [vmem:[%s8 + $0x178] sm:$0xff]
    %v3293 = vld [vmem:[%s8 + $0x180] sm:$0xff]
    %v3294 = vld [vmem:[%s8 + $0x188] sm:$0xff]
    %v3295 = vld [vmem:[%s8 + $0x190] sm:$0xff]
    %v3296 = vld [vmem:[%s8 + $0x198] sm:$0xff]
    %v3297 = vld [vmem:[%s8 + $0x1a0] sm:$0xff]
    %v3298 = vld [vmem:[%s8 + $0x1a8] sm:$0xff]
    %v3299 = vld [vmem:[%s8 + $0x1b0] sm:$0xff]
    %v3300 = vld [vmem:[%s8 + $0x1b8] sm:$0xff]
    %v3301 = vld [vmem:[%s8 + $0x1c0] sm:$0xff]
    %v3302 = vld [vmem:[%s8 + $0x1c8] sm:$0xff]
    %v3303 = vld [vmem:[%s8 + $0x1d0] sm:$0xff]
    %v3304 = vld [vmem:[%s8 + $0x1d8] sm:$0xff]
    %v3305 = vld [vmem:[%s8 + $0x1e0] sm:$0xff]
    %v3306 = vld [vmem:[%s8 + $0x1e8] sm:$0xff]
    %v3307 = vld [vmem:[%s8 + $0x1f0] sm:$0xff]
    %v3308 = vld [vmem:[%s8 + $0x1f8] sm:$0xff]
    %v3309 = vld [vmem:[%s11] sm:$0xff]
    %v3310 = vld [vmem:[%s11 + $0x8] sm:$0xff]
    %v3311 = vld [vmem:[%s11 + $0x10] sm:$0xff]
    %v3312 = vld [vmem:[%s11 + $0x18] sm:$0xff]
    %v3313 = vld [vmem:[%s11 + $0x20] sm:$0xff]
    %v3314 = vld [vmem:[%s11 + $0x28] sm:$0xff]
    %v3315 = vld [vmem:[%s11 + $0x30] sm:$0xff]
    %v3316 = vld [vmem:[%s11 + $0x38] sm:$0xff]
    %v3317 = vld [vmem:[%s11 + $0x40] sm:$0xff]
    %v3318 = vld [vmem:[%s11 + $0x48] sm:$0xff]
    %v3319 = vld [vmem:[%s11 + $0x50] sm:$0xff]
    %v3320 = vld [vmem:[%s11 + $0x58] sm:$0xff]
    %v3321 = vld [vmem:[%s11 + $0x60] sm:$0xff]
    %v3322 = vld [vmem:[%s11 + $0x68] sm:$0xff]
    %v3323 = vld [vmem:[%s11 + $0x70] sm:$0xff]
    %v3324 = vld [vmem:[%s11 + $0x78] sm:$0xff]
    %v3325 = vld [vmem:[%s11 + $0x80] sm:$0xff]
    %v3326 = vld [vmem:[%s11 + $0x88] sm:$0xff]
    %v3327 = vld [vmem:[%s11 + $0x90] sm:$0xff]
    %v3328 = vld [vmem:[%s11 + $0x98] sm:$0xff]
    %v3329 = vld [vmem:[%s11 + $0xa0] sm:$0xff]
    %v3330 = vld [vmem:[%s11 + $0xa8] sm:$0xff]
    %v3331 = vld [vmem:[%s11 + $0xb0] sm:$0xff]
    %v3332 = vld [vmem:[%s11 + $0xb8] sm:$0xff]
    %v3333 = vld [vmem:[%s11 + $0xc0] sm:$0xff]
    %v3334 = vld [vmem:[%s11 + $0xc8] sm:$0xff]
    %v3335 = vld [vmem:[%s11 + $0xd0] sm:$0xff]
    %v3336 = vld [vmem:[%s11 + $0xd8] sm:$0xff]
    %v3337 = vld [vmem:[%s11 + $0xe0] sm:$0xff]
    %v3338 = vld [vmem:[%s11 + $0xe8] sm:$0xff]
    %v3339 = vld [vmem:[%s11 + $0xf0] sm:$0xff]
    %v3340 = vld [vmem:[%s11 + $0xf8] sm:$0xff]
    %v3341 = vld [vmem:[%s11 + $0x100] sm:$0xff]
    %v3342 = vld [vmem:[%s11 + $0x108] sm:$0xff]
    %v3343 = vld [vmem:[%s11 + $0x110] sm:$0xff]
    %v3344 = vld [vmem:[%s11 + $0x118] sm:$0xff]
    %v3345 = vld [vmem:[%s11 + $0x120] sm:$0xff]
    %v3346 = vld [vmem:[%s11 + $0x128] sm:$0xff]
    %v3347 = vld [vmem:[%s11 + $0x130] sm:$0xff]
    %v3348 = vld [vmem:[%s11 + $0x138] sm:$0xff]
    %v3349 = vld [vmem:[%s11 + $0x140] sm:$0xff]
    %v3350 = vld [vmem:[%s11 + $0x148] sm:$0xff]
    %v3351 = vld [vmem:[%s11 + $0x150] sm:$0xff]
    %v3352 = vld [vmem:[%s11 + $0x158] sm:$0xff]
    %v3353 = vld [vmem:[%s11 + $0x160] sm:$0xff]
    %v3354 = vld [vmem:[%s11 + $0x168] sm:$0xff]
    %v3355 = vld [vmem:[%s11 + $0x170] sm:$0xff]
    %v3356 = vld [vmem:[%s11 + $0x178] sm:$0xff]
    %v3357 = vld [vmem:[%s11 + $0x180] sm:$0xff]
    %v3358 = vld [vmem:[%s11 + $0x188] sm:$0xff]
    %v3359 = vld [vmem:[%s11 + $0x190] sm:$0xff]
    %v3360 = vld [vmem:[%s11 + $0x198] sm:$0xff]
    %v3361 = vld [vmem:[%s11 + $0x1a0] sm:$0xff]
    %v3362 = vld [vmem:[%s11 + $0x1a8] sm:$0xff]
    %v3363 = vld [vmem:[%s11 + $0x1b0] sm:$0xff]
    %v3364 = vld [vmem:[%s11 + $0x1b8] sm:$0xff]
    %v3365 = vld [vmem:[%s11 + $0x1c0] sm:$0xff]
    %v3366 = vld [vmem:[%s11 + $0x1c8] sm:$0xff]
    %v3367 = vld [vmem:[%s11 + $0x1d0] sm:$0xff]
    %v3368 = vld [vmem:[%s11 + $0x1d8] sm:$0xff]
    %v3369 = vld [vmem:[%s11 + $0x1e0] sm:$0xff]
    %v3370 = vld [vmem:[%s11 + $0x1e8] sm:$0xff]
    %v3371 = vld [vmem:[%s11 + $0x1f0] sm:$0xff]
    %v3372 = vld [vmem:[%s11 + $0x1f8] sm:$0xff]
    %3373 = vmatpush.msra.mxu0 %v3324
    %3374 = vmatpush.msra.mxu0 %v3323
    %3375 = vmatpush.msra.mxu0 %v3322
    %3376 = vmatpush.msra.mxu0 %v3321
    %3377 = vmatpush.msra.mxu0 %v3320
    %3378 = vmatpush.msra.mxu0 %v3319
    %3379 = vmatpush.msra.mxu0 %v3318
    %3380 = vmatpush.msra.mxu0 %v3317
    %3381 = vmatpush.msra.mxu0 %v3316
    %3382 = vmatpush.msra.mxu0 %v3315
    %3383 = vmatpush.msra.mxu0 %v3314
    %3384 = vmatpush.msra.mxu0 %v3313
    %3385 = vmatpush.msra.mxu0 %v3312
    %3386 = vmatpush.msra.mxu0 %v3311
    %3387 = vmatpush.msra.mxu0 %v3310
    %3388 = vmatpush.msra.mxu0 %v3309
    %3389 = vmatmul.f32.gmra.mxu0 %v3241
    %v3390 = vpop.f32.mrf.mxu0
    %v3391 = vadd.f32 0.0, %v3390
    %3392 = vdwg.mxu0
    %3393 = vmatpush.msra.mxu0 %v3340
    %3394 = vmatpush.msra.mxu0 %v3339
    %3395 = vmatpush.msra.mxu0 %v3338
    %3396 = vmatpush.msra.mxu0 %v3337
    %3397 = vmatpush.msra.mxu0 %v3336
    %3398 = vmatpush.msra.mxu0 %v3335
    %3399 = vmatpush.msra.mxu0 %v3334
    %3400 = vmatpush.msra.mxu0 %v3333
    %3401 = vmatpush.msra.mxu0 %v3332
    %3402 = vmatpush.msra.mxu0 %v3331
    %3403 = vmatpush.msra.mxu0 %v3330
    %3404 = vmatpush.msra.mxu0 %v3329
    %3405 = vmatpush.msra.mxu0 %v3328
    %3406 = vmatpush.msra.mxu0 %v3327
    %3407 = vmatpush.msra.mxu0 %v3326
    %3408 = vmatpush.msra.mxu0 %v3325
    %3409 = vmatmul.f32.gmra.mxu0 %v3242
    %v3410 = vpop.f32.mrf.mxu0
    %v3411 = vadd.f32 %v3391, %v3410
    %3412 = vdwg.mxu0
    %3413 = vmatpush.msra.mxu0 %v3356
    %3414 = vmatpush.msra.mxu0 %v3355
    %3415 = vmatpush.msra.mxu0 %v3354
    %3416 = vmatpush.msra.mxu0 %v3353
    %3417 = vmatpush.msra.mxu0 %v3352
    %3418 = vmatpush.msra.mxu0 %v3351
    %3419 = vmatpush.msra.mxu0 %v3350
    %3420 = vmatpush.msra.mxu0 %v3349
    %3421 = vmatpush.msra.mxu0 %v3348
    %3422 = vmatpush.msra.mxu0 %v3347
    %3423 = vmatpush.msra.mxu0 %v3346
    %3424 = vmatpush.msra.mxu0 %v3345
    %3425 = vmatpush.msra.mxu0 %v3344
    %3426 = vmatpush.msra.mxu0 %v3343
    %3427 = vmatpush.msra.mxu0 %v3342
    %3428 = vmatpush.msra.mxu0 %v3341
    %3429 = vmatmul.f32.gmra.mxu0 %v3243
    %v3430 = vpop.f32.mrf.mxu0
    %v3431 = vadd.f32 %v3411, %v3430
    %3432 = vdwg.mxu0
    %3433 = vmatpush.msra.mxu0 %v3372
    %3434 = vmatpush.msra.mxu0 %v3371
    %3435 = vmatpush.msra.mxu0 %v3370
    %3436 = vmatpush.msra.mxu0 %v3369
    %3437 = vmatpush.msra.mxu0 %v3368
    %3438 = vmatpush.msra.mxu0 %v3367
    %3439 = vmatpush.msra.mxu0 %v3366
    %3440 = vmatpush.msra.mxu0 %v3365
    %3441 = vmatpush.msra.mxu0 %v3364
    %3442 = vmatpush.msra.mxu0 %v3363
    %3443 = vmatpush.msra.mxu0 %v3362
    %3444 = vmatpush.msra.mxu0 %v3361
    %3445 = vmatpush.msra.mxu0 %v3360
    %3446 = vmatpush.msra.mxu0 %v3359
    %3447 = vmatpush.msra.mxu0 %v3358
    %3448 = vmatpush.msra.mxu0 %v3357
    %3449 = vmatmul.f32.gmra.mxu0 %v3244
    %v3450 = vpop.f32.mrf.mxu0
    %v3451 = vadd.f32 %v3431, %v3450
    %3452 = vdwg.mxu0
    %v3453 = vld [vmem:[%s12] sm:$0xff]
    %v3454 = vld [vmem:[%s12 + $0x8] sm:$0x1]
    %v3456 = vsel %vm3126, %v3451, 0
    %v3459 = vsel %vm3130, %v3454, 0
    %3461 = vmatpush.msra.mxu0 0.0
    %3462 = vmatpush.msra.mxu0 0.0
    %3463 = vmatpush.msra.mxu0 0.0
    %3464 = vmatpush.msra.mxu0 0.0
    %3465 = vmatpush.msra.mxu0 0.0
    %3466 = vmatpush.msra.mxu0 0.0
    %3467 = vmatpush.msra.mxu0 0.0
    %3468 = vmatpush.msra.mxu0 0.0
    %3469 = vmatpush.msra.mxu0 0.0
    %3470 = vmatpush.msra.mxu0 0.0
    %3471 = vmatpush.msra.mxu0 0.0
    %3472 = vmatpush.msra.mxu0 0.0
    %3473 = vmatpush.msra.mxu0 0.0
    %3474 = vmatpush.msra.mxu0 0.0
    %3475 = vmatpush.msra.mxu0 %v3459
    %3476 = vmatpush.msra.mxu0 %v3453
    %3477 = vmatmul.f32.gmra.mxu0 %v3456
    %v3478 = vpop.f32.mrf.mxu0
    %v3479 = vadd.f32 0.0, %v3478
    %3480 = vdwg.mxu0
    %3481 = vmatpush.msra.mxu0 %v3260
    %3482 = vmatpush.msra.mxu0 %v3259
    %3483 = vmatpush.msra.mxu0 %v3258
    %3484 = vmatpush.msra.mxu0 %v3257
    %3485 = vmatpush.msra.mxu0 %v3256
    %3486 = vmatpush.msra.mxu0 %v3255
    %3487 = vmatpush.msra.mxu0 %v3254
    %3488 = vmatpush.msra.mxu0 %v3253
    %3489 = vmatpush.msra.mxu0 %v3252
    %3490 = vmatpush.msra.mxu0 %v3251
    %3491 = vmatpush.msra.mxu0 %v3250
    %3492 = vmatpush.msra.mxu0 %v3249
    %3493 = vmatpush.msra.mxu0 %v3248
    %3494 = vmatpush.msra.mxu0 %v3247
    %3495 = vmatpush.msra.mxu0 %v3246
    %3496 = vmatpush.msra.mxu0 %v3245
    %3497 = vmatmul.f32.gmra.mxu0 %v3241
    %v3498 = vpop.f32.mrf.mxu0
    %v3499 = vadd.f32 %v3479, %v3498
    %3500 = vdwg.mxu0
    %3501 = vmatpush.msra.mxu0 %v3276
    %3502 = vmatpush.msra.mxu0 %v3275
    %3503 = vmatpush.msra.mxu0 %v3274
    %3504 = vmatpush.msra.mxu0 %v3273
    %3505 = vmatpush.msra.mxu0 %v3272
    %3506 = vmatpush.msra.mxu0 %v3271
    %3507 = vmatpush.msra.mxu0 %v3270
    %3508 = vmatpush.msra.mxu0 %v3269
    %3509 = vmatpush.msra.mxu0 %v3268
    %3510 = vmatpush.msra.mxu0 %v3267
    %3511 = vmatpush.msra.mxu0 %v3266
    %3512 = vmatpush.msra.mxu0 %v3265
    %3513 = vmatpush.msra.mxu0 %v3264
    %3514 = vmatpush.msra.mxu0 %v3263
    %3515 = vmatpush.msra.mxu0 %v3262
    %3516 = vmatpush.msra.mxu0 %v3261
    %3517 = vmatmul.f32.gmra.mxu0 %v3242
    %v3518 = vpop.f32.mrf.mxu0
    %v3519 = vadd.f32 %v3499, %v3518
    %3520 = vdwg.mxu0
    %3521 = vmatpush.msra.mxu0 %v3292
    %3522 = vmatpush.msra.mxu0 %v3291
    %3523 = vmatpush.msra.mxu0 %v3290
    %3524 = vmatpush.msra.mxu0 %v3289
    %3525 = vmatpush.msra.mxu0 %v3288
    %3526 = vmatpush.msra.mxu0 %v3287
    %3527 = vmatpush.msra.mxu0 %v3286
    %3528 = vmatpush.msra.mxu0 %v3285
    %3529 = vmatpush.msra.mxu0 %v3284
    %3530 = vmatpush.msra.mxu0 %v3283
    %3531 = vmatpush.msra.mxu0 %v3282
    %3532 = vmatpush.msra.mxu0 %v3281
    %3533 = vmatpush.msra.mxu0 %v3280
    %3534 = vmatpush.msra.mxu0 %v3279
    %3535 = vmatpush.msra.mxu0 %v3278
    %3536 = vmatpush.msra.mxu0 %v3277
    %3537 = vmatmul.f32.gmra.mxu0 %v3243
    %v3538 = vpop.f32.mrf.mxu0
    %v3539 = vadd.f32 %v3519, %v3538
    %3540 = vdwg.mxu0
    %3541 = vmatpush.msra.mxu0 %v3308
    %3542 = vmatpush.msra.mxu0 %v3307
    %3543 = vmatpush.msra.mxu0 %v3306
    %3544 = vmatpush.msra.mxu0 %v3305
    %3545 = vmatpush.msra.mxu0 %v3304
    %3546 = vmatpush.msra.mxu0 %v3303
    %3547 = vmatpush.msra.mxu0 %v3302
    %3548 = vmatpush.msra.mxu0 %v3301
    %3549 = vmatpush.msra.mxu0 %v3300
    %3550 = vmatpush.msra.mxu0 %v3299
    %3551 = vmatpush.msra.mxu0 %v3298
    %3552 = vmatpush.msra.mxu0 %v3297
    %3553 = vmatpush.msra.mxu0 %v3296
    %3554 = vmatpush.msra.mxu0 %v3295
    %3555 = vmatpush.msra.mxu0 %v3294
    %3556 = vmatpush.msra.mxu0 %v3293
    %3557 = vmatmul.f32.gmra.mxu0 %v3244
    %v3558 = vpop.f32.mrf.mxu0
    %v3559 = vadd.f32 %v3539, %v3558
    %3560 = vdwg.mxu0
    %v3561 = vld [vmem:[%s14] sm:$0x1]
    %v3563 = vperm.slane %v3561, 0
    %v3565 = vadd.f32 %v3559, %v3563
    %s3566 = sld [smem:[#allocation2]]
    %v3567 = vstv %s3566
    %v3568 = vmul.f32 %v3565, %v3567
    %v3569 = vadd.f32 %v3568, 0.0
    %s3570 = scalar_lea.vmem %s10, 64
    %v3571 = vld [vmem:[%s3570] sm:$0xff]
    %v3572 = vld [vmem:[%s3570 + $0x8] sm:$0xff]
    %v3573 = vld [vmem:[%s3570 + $0x10] sm:$0xff]
    %v3574 = vld [vmem:[%s3570 + $0x18] sm:$0xff]
    %v3575 = vld [vmem:[%s3570 + $0x20] sm:$0x1]
    %v3576 = vld [vmem:[%s3570 + $0x28] sm:$0x1]
    %v3577 = vld [vmem:[%s3570 + $0x30] sm:$0x1]
    %v3578 = vld [vmem:[%s3570 + $0x38] sm:$0x1]
    %3579 = vrot.lane.b32.xlu0 %v3116, 119
    %v3580 = vpop.permute.xlu0 %3579
    %v3581 = vsel %vm3126, %v3580, 0
    %v3584 = vsel %vm3130, %v3575, 0
    %v3587 = vsel %vm3130, %v3576, 0
    %v3590 = vsel %vm3130, %v3577, 0
    %v3593 = vsel %vm3130, %v3578, 0
    %3595 = vmatpush.msra.mxu0 0.0
    %3596 = vmatpush.msra.mxu0 0.0
    %3597 = vmatpush.msra.mxu0 0.0
    %3598 = vmatpush.msra.mxu0 0.0
    %3599 = vmatpush.msra.mxu0 0.0
    %3600 = vmatpush.msra.mxu0 0.0
    %3601 = vmatpush.msra.mxu0 0.0
    %3602 = vmatpush.msra.mxu0 0.0
    %3603 = vmatpush.msra.mxu0 0.0
    %3604 = vmatpush.msra.mxu0 0.0
    %3605 = vmatpush.msra.mxu0 0.0
    %3606 = vmatpush.msra.mxu0 0.0
    %3607 = vmatpush.msra.mxu0 0.0
    %3608 = vmatpush.msra.mxu0 0.0
    %3609 = vmatpush.msra.mxu0 %v3584
    %3610 = vmatpush.msra.mxu0 %v3571
    %3611 = vmatmul.f32.gmra.mxu0 %v3581
    %v3612 = vpop.f32.mrf.mxu0
    %v3613 = vadd.f32 0.0, %v3612
    %3614 = vdwg.mxu0
    %3615 = vmatpush.msra.mxu0 0.0
    %3616 = vmatpush.msra.mxu0 0.0
    %3617 = vmatpush.msra.mxu0 0.0
    %3618 = vmatpush.msra.mxu0 0.0
    %3619 = vmatpush.msra.mxu0 0.0
    %3620 = vmatpush.msra.mxu0 0.0
    %3621 = vmatpush.msra.mxu0 0.0
    %3622 = vmatpush.msra.mxu0 0.0
    %3623 = vmatpush.msra.mxu0 0.0
    %3624 = vmatpush.msra.mxu0 0.0
    %3625 = vmatpush.msra.mxu0 0.0
    %3626 = vmatpush.msra.mxu0 0.0
    %3627 = vmatpush.msra.mxu0 0.0
    %3628 = vmatpush.msra.mxu0 0.0
    %3629 = vmatpush.msra.mxu0 %v3587
    %3630 = vmatpush.msra.mxu0 %v3572
    %3631 = vmatmul.f32.gmra.mxu0 %v3581
    %v3632 = vpop.f32.mrf.mxu0
    %v3633 = vadd.f32 0.0, %v3632
    %3634 = vdwg.mxu0
    %3635 = vmatpush.msra.mxu0 0.0
    %3636 = vmatpush.msra.mxu0 0.0
    %3637 = vmatpush.msra.mxu0 0.0
    %3638 = vmatpush.msra.mxu0 0.0
    %3639 = vmatpush.msra.mxu0 0.0
    %3640 = vmatpush.msra.mxu0 0.0
    %3641 = vmatpush.msra.mxu0 0.0
    %3642 = vmatpush.msra.mxu0 0.0
    %3643 = vmatpush.msra.mxu0 0.0
    %3644 = vmatpush.msra.mxu0 0.0
    %3645 = vmatpush.msra.mxu0 0.0
    %3646 = vmatpush.msra.mxu0 0.0
    %3647 = vmatpush.msra.mxu0 0.0
    %3648 = vmatpush.msra.mxu0 0.0
    %3649 = vmatpush.msra.mxu0 %v3590
    %3650 = vmatpush.msra.mxu0 %v3573
    %3651 = vmatmul.f32.gmra.mxu0 %v3581
    %v3652 = vpop.f32.mrf.mxu0
    %v3653 = vadd.f32 0.0, %v3652
    %3654 = vdwg.mxu0
    %3655 = vmatpush.msra.mxu0 0.0
    %3656 = vmatpush.msra.mxu0 0.0
    %3657 = vmatpush.msra.mxu0 0.0
    %3658 = vmatpush.msra.mxu0 0.0
    %3659 = vmatpush.msra.mxu0 0.0
    %3660 = vmatpush.msra.mxu0 0.0
    %3661 = vmatpush.msra.mxu0 0.0
    %3662 = vmatpush.msra.mxu0 0.0
    %3663 = vmatpush.msra.mxu0 0.0
    %3664 = vmatpush.msra.mxu0 0.0
    %3665 = vmatpush.msra.mxu0 0.0
    %3666 = vmatpush.msra.mxu0 0.0
    %3667 = vmatpush.msra.mxu0 0.0
    %3668 = vmatpush.msra.mxu0 0.0
    %3669 = vmatpush.msra.mxu0 %v3593
    %3670 = vmatpush.msra.mxu0 %v3574
    %3671 = vmatmul.f32.gmra.mxu0 %v3581
    %v3672 = vpop.f32.mrf.mxu0
    %v3673 = vadd.f32 0.0, %v3672
    %3674 = vdwg.mxu0
    %v3675 = vadd.f32 %v3028, %v3613
    %v3676 = vadd.f32 %v3048, %v3633
    %v3677 = vadd.f32 %v3068, %v3653
    %v3678 = vadd.f32 %v3088, %v3673
    %s3679 = scalar_lea.vmem %s13, 4
    %v3680 = vld [vmem:[%s3679] sm:$0xf]
    %v3682 = vperm.slane %v3680, 0
    %v3683 = vperm.slane %v3680, 1
    %v3684 = vperm.slane %v3680, 2
    %v3685 = vperm.slane %v3680, 3
    %v3690 = vadd.f32 %v3675, %v3682
    %v3691 = vadd.f32 %v3676, %v3683
    %v3692 = vadd.f32 %v3677, %v3684
    %v3693 = vadd.f32 %v3678, %v3685
    %v3694 = vmax.f32 %v3690, 0.0
    %v3695 = vmax.f32 %v3691, 0.0
    %v3696 = vmax.f32 %v3692, 0.0
    %v3697 = vmax.f32 %v3693, 0.0
    %s3698 = scalar_lea.vmem %s11, 512
    %v3699 = vld [vmem:[%s3698] sm:$0xff]
    %v3700 = vld [vmem:[%s3698 + $0x8] sm:$0xff]
    %v3701 = vld [vmem:[%s3698 + $0x10] sm:$0xff]
    %v3702 = vld [vmem:[%s3698 + $0x18] sm:$0xff]
    %v3703 = vld [vmem:[%s3698 + $0x20] sm:$0xff]
    %v3704 = vld [vmem:[%s3698 + $0x28] sm:$0xff]
    %v3705 = vld [vmem:[%s3698 + $0x30] sm:$0xff]
    %v3706 = vld [vmem:[%s3698 + $0x38] sm:$0xff]
    %v3707 = vld [vmem:[%s3698 + $0x40] sm:$0xff]
    %v3708 = vld [vmem:[%s3698 + $0x48] sm:$0xff]
    %v3709 = vld [vmem:[%s3698 + $0x50] sm:$0xff]
    %v3710 = vld [vmem:[%s3698 + $0x58] sm:$0xff]
    %v3711 = vld [vmem:[%s3698 + $0x60] sm:$0xff]
    %v3712 = vld [vmem:[%s3698 + $0x68] sm:$0xff]
    %v3713 = vld [vmem:[%s3698 + $0x70] sm:$0xff]
    %v3714 = vld [vmem:[%s3698 + $0x78] sm:$0xff]
    %v3715 = vld [vmem:[%s3698 + $0x80] sm:$0xff]
    %v3716 = vld [vmem:[%s3698 + $0x88] sm:$0xff]
    %v3717 = vld [vmem:[%s3698 + $0x90] sm:$0xff]
    %v3718 = vld [vmem:[%s3698 + $0x98] sm:$0xff]
    %v3719 = vld [vmem:[%s3698 + $0xa0] sm:$0xff]
    %v3720 = vld [vmem:[%s3698 + $0xa8] sm:$0xff]
    %v3721 = vld [vmem:[%s3698 + $0xb0] sm:$0xff]
    %v3722 = vld [vmem:[%s3698 + $0xb8] sm:$0xff]
    %v3723 = vld [vmem:[%s3698 + $0xc0] sm:$0xff]
    %v3724 = vld [vmem:[%s3698 + $0xc8] sm:$0xff]
    %v3725 = vld [vmem:[%s3698 + $0xd0] sm:$0xff]
    %v3726 = vld [vmem:[%s3698 + $0xd8] sm:$0xff]
    %v3727 = vld [vmem:[%s3698 + $0xe0] sm:$0xff]
    %v3728 = vld [vmem:[%s3698 + $0xe8] sm:$0xff]
    %v3729 = vld [vmem:[%s3698 + $0xf0] sm:$0xff]
    %v3730 = vld [vmem:[%s3698 + $0xf8] sm:$0xff]
    %v3731 = vld [vmem:[%s3698 + $0x100] sm:$0xff]
    %v3732 = vld [vmem:[%s3698 + $0x108] sm:$0xff]
    %v3733 = vld [vmem:[%s3698 + $0x110] sm:$0xff]
    %v3734 = vld [vmem:[%s3698 + $0x118] sm:$0xff]
    %v3735 = vld [vmem:[%s3698 + $0x120] sm:$0xff]
    %v3736 = vld [vmem:[%s3698 + $0x128] sm:$0xff]
    %v3737 = vld [vmem:[%s3698 + $0x130] sm:$0xff]
    %v3738 = vld [vmem:[%s3698 + $0x138] sm:$0xff]
    %v3739 = vld [vmem:[%s3698 + $0x140] sm:$0xff]
    %v3740 = vld [vmem:[%s3698 + $0x148] sm:$0xff]
    %v3741 = vld [vmem:[%s3698 + $0x150] sm:$0xff]
    %v3742 = vld [vmem:[%s3698 + $0x158] sm:$0xff]
    %v3743 = vld [vmem:[%s3698 + $0x160] sm:$0xff]
    %v3744 = vld [vmem:[%s3698 + $0x168] sm:$0xff]
    %v3745 = vld [vmem:[%s3698 + $0x170] sm:$0xff]
    %v3746 = vld [vmem:[%s3698 + $0x178] sm:$0xff]
    %v3747 = vld [vmem:[%s3698 + $0x180] sm:$0xff]
    %v3748 = vld [vmem:[%s3698 + $0x188] sm:$0xff]
    %v3749 = vld [vmem:[%s3698 + $0x190] sm:$0xff]
    %v3750 = vld [vmem:[%s3698 + $0x198] sm:$0xff]
    %v3751 = vld [vmem:[%s3698 + $0x1a0] sm:$0xff]
    %v3752 = vld [vmem:[%s3698 + $0x1a8] sm:$0xff]
    %v3753 = vld [vmem:[%s3698 + $0x1b0] sm:$0xff]
    %v3754 = vld [vmem:[%s3698 + $0x1b8] sm:$0xff]
    %v3755 = vld [vmem:[%s3698 + $0x1c0] sm:$0xff]
    %v3756 = vld [vmem:[%s3698 + $0x1c8] sm:$0xff]
    %v3757 = vld [vmem:[%s3698 + $0x1d0] sm:$0xff]
    %v3758 = vld [vmem:[%s3698 + $0x1d8] sm:$0xff]
    %v3759 = vld [vmem:[%s3698 + $0x1e0] sm:$0xff]
    %v3760 = vld [vmem:[%s3698 + $0x1e8] sm:$0xff]
    %v3761 = vld [vmem:[%s3698 + $0x1f0] sm:$0xff]
    %v3762 = vld [vmem:[%s3698 + $0x1f8] sm:$0xff]
    %3763 = vmatpush.msra.mxu0 %v3714
    %3764 = vmatpush.msra.mxu0 %v3713
    %3765 = vmatpush.msra.mxu0 %v3712
    %3766 = vmatpush.msra.mxu0 %v3711
    %3767 = vmatpush.msra.mxu0 %v3710
    %3768 = vmatpush.msra.mxu0 %v3709
    %3769 = vmatpush.msra.mxu0 %v3708
    %3770 = vmatpush.msra.mxu0 %v3707
    %3771 = vmatpush.msra.mxu0 %v3706
    %3772 = vmatpush.msra.mxu0 %v3705
    %3773 = vmatpush.msra.mxu0 %v3704
    %3774 = vmatpush.msra.mxu0 %v3703
    %3775 = vmatpush.msra.mxu0 %v3702
    %3776 = vmatpush.msra.mxu0 %v3701
    %3777 = vmatpush.msra.mxu0 %v3700
    %3778 = vmatpush.msra.mxu0 %v3699
    %3779 = vmatmul.f32.gmra.mxu0 %v3694
    %v3780 = vpop.f32.mrf.mxu0
    %v3781 = vadd.f32 0.0, %v3780
    %3782 = vdwg.mxu0
    %3783 = vmatpush.msra.mxu0 %v3730
    %3784 = vmatpush.msra.mxu0 %v3729
    %3785 = vmatpush.msra.mxu0 %v3728
    %3786 = vmatpush.msra.mxu0 %v3727
    %3787 = vmatpush.msra.mxu0 %v3726
    %3788 = vmatpush.msra.mxu0 %v3725
    %3789 = vmatpush.msra.mxu0 %v3724
    %3790 = vmatpush.msra.mxu0 %v3723
    %3791 = vmatpush.msra.mxu0 %v3722
    %3792 = vmatpush.msra.mxu0 %v3721
    %3793 = vmatpush.msra.mxu0 %v3720
    %3794 = vmatpush.msra.mxu0 %v3719
    %3795 = vmatpush.msra.mxu0 %v3718
    %3796 = vmatpush.msra.mxu0 %v3717
    %3797 = vmatpush.msra.mxu0 %v3716
    %3798 = vmatpush.msra.mxu0 %v3715
    %3799 = vmatmul.f32.gmra.mxu0 %v3695
    %v3800 = vpop.f32.mrf.mxu0
    %v3801 = vadd.f32 %v3781, %v3800
    %3802 = vdwg.mxu0
    %3803 = vmatpush.msra.mxu0 %v3746
    %3804 = vmatpush.msra.mxu0 %v3745
    %3805 = vmatpush.msra.mxu0 %v3744
    %3806 = vmatpush.msra.mxu0 %v3743
    %3807 = vmatpush.msra.mxu0 %v3742
    %3808 = vmatpush.msra.mxu0 %v3741
    %3809 = vmatpush.msra.mxu0 %v3740
    %3810 = vmatpush.msra.mxu0 %v3739
    %3811 = vmatpush.msra.mxu0 %v3738
    %3812 = vmatpush.msra.mxu0 %v3737
    %3813 = vmatpush.msra.mxu0 %v3736
    %3814 = vmatpush.msra.mxu0 %v3735
    %3815 = vmatpush.msra.mxu0 %v3734
    %3816 = vmatpush.msra.mxu0 %v3733
    %3817 = vmatpush.msra.mxu0 %v3732
    %3818 = vmatpush.msra.mxu0 %v3731
    %3819 = vmatmul.f32.gmra.mxu0 %v3696
    %v3820 = vpop.f32.mrf.mxu0
    %v3821 = vadd.f32 %v3801, %v3820
    %3822 = vdwg.mxu0
    %3823 = vmatpush.msra.mxu0 %v3762
    %3824 = vmatpush.msra.mxu0 %v3761
    %3825 = vmatpush.msra.mxu0 %v3760
    %3826 = vmatpush.msra.mxu0 %v3759
    %3827 = vmatpush.msra.mxu0 %v3758
    %3828 = vmatpush.msra.mxu0 %v3757
    %3829 = vmatpush.msra.mxu0 %v3756
    %3830 = vmatpush.msra.mxu0 %v3755
    %3831 = vmatpush.msra.mxu0 %v3754
    %3832 = vmatpush.msra.mxu0 %v3753
    %3833 = vmatpush.msra.mxu0 %v3752
    %3834 = vmatpush.msra.mxu0 %v3751
    %3835 = vmatpush.msra.mxu0 %v3750
    %3836 = vmatpush.msra.mxu0 %v3749
    %3837 = vmatpush.msra.mxu0 %v3748
    %3838 = vmatpush.msra.mxu0 %v3747
    %3839 = vmatmul.f32.gmra.mxu0 %v3697
    %v3840 = vpop.f32.mrf.mxu0
    %v3841 = vadd.f32 %v3821, %v3840
    %3842 = vdwg.mxu0
    %s3843 = scalar_lea.vmem %s12, 16
    %v3844 = vld [vmem:[%s3843] sm:$0xff]
    %v3845 = vld [vmem:[%s3843 + $0x8] sm:$0x1]
    %v3847 = vsel %vm3126, %v3841, 0
    %v3850 = vsel %vm3130, %v3845, 0
    %3852 = vmatpush.msra.mxu0 0.0
    %3853 = vmatpush.msra.mxu0 0.0
    %3854 = vmatpush.msra.mxu0 0.0
    %3855 = vmatpush.msra.mxu0 0.0
    %3856 = vmatpush.msra.mxu0 0.0
    %3857 = vmatpush.msra.mxu0 0.0
    %3858 = vmatpush.msra.mxu0 0.0
    %3859 = vmatpush.msra.mxu0 0.0
    %3860 = vmatpush.msra.mxu0 0.0
    %3861 = vmatpush.msra.mxu0 0.0
    %3862 = vmatpush.msra.mxu0 0.0
    %3863 = vmatpush.msra.mxu0 0.0
    %3864 = vmatpush.msra.mxu0 0.0
    %3865 = vmatpush.msra.mxu0 0.0
    %3866 = vmatpush.msra.mxu0 %v3850
    %3867 = vmatpush.msra.mxu0 %v3844
    %3868 = vmatmul.f32.gmra.mxu0 %v3847
    %v3869 = vpop.f32.mrf.mxu0
    %v3870 = vadd.f32 0.0, %v3869
    %3871 = vdwg.mxu0
    %3872 = vmatpush.msra.mxu0 %v3260
    %3873 = vmatpush.msra.mxu0 %v3259
    %3874 = vmatpush.msra.mxu0 %v3258
    %3875 = vmatpush.msra.mxu0 %v3257
    %3876 = vmatpush.msra.mxu0 %v3256
    %3877 = vmatpush.msra.mxu0 %v3255
    %3878 = vmatpush.msra.mxu0 %v3254
    %3879 = vmatpush.msra.mxu0 %v3253
    %3880 = vmatpush.msra.mxu0 %v3252
    %3881 = vmatpush.msra.mxu0 %v3251
    %3882 = vmatpush.msra.mxu0 %v3250
    %3883 = vmatpush.msra.mxu0 %v3249
    %3884 = vmatpush.msra.mxu0 %v3248
    %3885 = vmatpush.msra.mxu0 %v3247
    %3886 = vmatpush.msra.mxu0 %v3246
    %3887 = vmatpush.msra.mxu0 %v3245
    %3888 = vmatmul.f32.gmra.mxu0 %v3694
    %v3889 = vpop.f32.mrf.mxu0
    %v3890 = vadd.f32 %v3870, %v3889
    %3891 = vdwg.mxu0
    %3892 = vmatpush.msra.mxu0 %v3276
    %3893 = vmatpush.msra.mxu0 %v3275
    %3894 = vmatpush.msra.mxu0 %v3274
    %3895 = vmatpush.msra.mxu0 %v3273
    %3896 = vmatpush.msra.mxu0 %v3272
    %3897 = vmatpush.msra.mxu0 %v3271
    %3898 = vmatpush.msra.mxu0 %v3270
    %3899 = vmatpush.msra.mxu0 %v3269
    %3900 = vmatpush.msra.mxu0 %v3268
    %3901 = vmatpush.msra.mxu0 %v3267
    %3902 = vmatpush.msra.mxu0 %v3266
    %3903 = vmatpush.msra.mxu0 %v3265
    %3904 = vmatpush.msra.mxu0 %v3264
    %3905 = vmatpush.msra.mxu0 %v3263
    %3906 = vmatpush.msra.mxu0 %v3262
    %3907 = vmatpush.msra.mxu0 %v3261
    %3908 = vmatmul.f32.gmra.mxu0 %v3695
    %v3909 = vpop.f32.mrf.mxu0
    %v3910 = vadd.f32 %v3890, %v3909
    %3911 = vdwg.mxu0
    %3912 = vmatpush.msra.mxu0 %v3292
    %3913 = vmatpush.msra.mxu0 %v3291
    %3914 = vmatpush.msra.mxu0 %v3290
    %3915 = vmatpush.msra.mxu0 %v3289
    %3916 = vmatpush.msra.mxu0 %v3288
    %3917 = vmatpush.msra.mxu0 %v3287
    %3918 = vmatpush.msra.mxu0 %v3286
    %3919 = vmatpush.msra.mxu0 %v3285
    %3920 = vmatpush.msra.mxu0 %v3284
    %3921 = vmatpush.msra.mxu0 %v3283
    %3922 = vmatpush.msra.mxu0 %v3282
    %3923 = vmatpush.msra.mxu0 %v3281
    %3924 = vmatpush.msra.mxu0 %v3280
    %3925 = vmatpush.msra.mxu0 %v3279
    %3926 = vmatpush.msra.mxu0 %v3278
    %3927 = vmatpush.msra.mxu0 %v3277
    %3928 = vmatmul.f32.gmra.mxu0 %v3696
    %v3929 = vpop.f32.mrf.mxu0
    %v3930 = vadd.f32 %v3910, %v3929
    %3931 = vdwg.mxu0
    %3932 = vmatpush.msra.mxu0 %v3308
    %3933 = vmatpush.msra.mxu0 %v3307
    %3934 = vmatpush.msra.mxu0 %v3306
    %3935 = vmatpush.msra.mxu0 %v3305
    %3936 = vmatpush.msra.mxu0 %v3304
    %3937 = vmatpush.msra.mxu0 %v3303
    %3938 = vmatpush.msra.mxu0 %v3302
    %3939 = vmatpush.msra.mxu0 %v3301
    %3940 = vmatpush.msra.mxu0 %v3300
    %3941 = vmatpush.msra.mxu0 %v3299
    %3942 = vmatpush.msra.mxu0 %v3298
    %3943 = vmatpush.msra.mxu0 %v3297
    %3944 = vmatpush.msra.mxu0 %v3296
    %3945 = vmatpush.msra.mxu0 %v3295
    %3946 = vmatpush.msra.mxu0 %v3294
    %3947 = vmatpush.msra.mxu0 %v3293
    %3948 = vmatmul.f32.gmra.mxu0 %v3697
    %v3949 = vpop.f32.mrf.mxu0
    %v3950 = vadd.f32 %v3930, %v3949
    %3951 = vdwg.mxu0
    %s3952 = scalar_lea.vmem %s14, 1
    %v3953 = vld [vmem:[%s3952] sm:$0x1]
    %v3955 = vperm.slane %v3953, 0
    %v3957 = vadd.f32 %v3950, %v3955
    %s3958 = sld [smem:[#allocation2 + $0x1]]
    %v3959 = vstv %s3958
    %v3960 = vmul.f32 %v3957, %v3959
    %v3961 = vadd.f32 %v3569, %v3960
    %s3962 = scalar_lea.vmem %s10, 128
    %v3963 = vld [vmem:[%s3962] sm:$0xff]
    %v3964 = vld [vmem:[%s3962 + $0x8] sm:$0xff]
    %v3965 = vld [vmem:[%s3962 + $0x10] sm:$0xff]
    %v3966 = vld [vmem:[%s3962 + $0x18] sm:$0xff]
    %v3967 = vld [vmem:[%s3962 + $0x20] sm:$0x1]
    %v3968 = vld [vmem:[%s3962 + $0x28] sm:$0x1]
    %v3969 = vld [vmem:[%s3962 + $0x30] sm:$0x1]
    %v3970 = vld [vmem:[%s3962 + $0x38] sm:$0x1]
    %3971 = vrot.lane.b32.xlu0 %v3116, 110
    %v3972 = vpop.permute.xlu0 %3971
    %v3973 = vsel %vm3126, %v3972, 0
    %v3976 = vsel %vm3130, %v3967, 0
    %v3979 = vsel %vm3130, %v3968, 0
    %v3982 = vsel %vm3130, %v3969, 0
    %v3985 = vsel %vm3130, %v3970, 0
    %3987 = vmatpush.msra.mxu0 0.0
    %3988 = vmatpush.msra.mxu0 0.0
    %3989 = vmatpush.msra.mxu0 0.0
    %3990 = vmatpush.msra.mxu0 0.0
    %3991 = vmatpush.msra.mxu0 0.0
    %3992 = vmatpush.msra.mxu0 0.0
    %3993 = vmatpush.msra.mxu0 0.0
    %3994 = vmatpush.msra.mxu0 0.0
    %3995 = vmatpush.msra.mxu0 0.0
    %3996 = vmatpush.msra.mxu0 0.0
    %3997 = vmatpush.msra.mxu0 0.0
    %3998 = vmatpush.msra.mxu0 0.0
    %3999 = vmatpush.msra.mxu0 0.0
    %4000 = vmatpush.msra.mxu0 0.0
    %4001 = vmatpush.msra.mxu0 %v3976
    %4002 = vmatpush.msra.mxu0 %v3963
    %4003 = vmatmul.f32.gmra.mxu0 %v3973
    %v4004 = vpop.f32.mrf.mxu0
    %v4005 = vadd.f32 0.0, %v4004
    %4006 = vdwg.mxu0
    %4007 = vmatpush.msra.mxu0 0.0
    %4008 = vmatpush.msra.mxu0 0.0
    %4009 = vmatpush.msra.mxu0 0.0
    %4010 = vmatpush.msra.mxu0 0.0
    %4011 = vmatpush.msra.mxu0 0.0
    %4012 = vmatpush.msra.mxu0 0.0
    %4013 = vmatpush.msra.mxu0 0.0
    %4014 = vmatpush.msra.mxu0 0.0
    %4015 = vmatpush.msra.mxu0 0.0
    %4016 = vmatpush.msra.mxu0 0.0
    %4017 = vmatpush.msra.mxu0 0.0
    %4018 = vmatpush.msra.mxu0 0.0
    %4019 = vmatpush.msra.mxu0 0.0
    %4020 = vmatpush.msra.mxu0 0.0
    %4021 = vmatpush.msra.mxu0 %v3979
    %4022 = vmatpush.msra.mxu0 %v3964
    %4023 = vmatmul.f32.gmra.mxu0 %v3973
    %v4024 = vpop.f32.mrf.mxu0
    %v4025 = vadd.f32 0.0, %v4024
    %4026 = vdwg.mxu0
    %4027 = vmatpush.msra.mxu0 0.0
    %4028 = vmatpush.msra.mxu0 0.0
    %4029 = vmatpush.msra.mxu0 0.0
    %4030 = vmatpush.msra.mxu0 0.0
    %4031 = vmatpush.msra.mxu0 0.0
    %4032 = vmatpush.msra.mxu0 0.0
    %4033 = vmatpush.msra.mxu0 0.0
    %4034 = vmatpush.msra.mxu0 0.0
    %4035 = vmatpush.msra.mxu0 0.0
    %4036 = vmatpush.msra.mxu0 0.0
    %4037 = vmatpush.msra.mxu0 0.0
    %4038 = vmatpush.msra.mxu0 0.0
    %4039 = vmatpush.msra.mxu0 0.0
    %4040 = vmatpush.msra.mxu0 0.0
    %4041 = vmatpush.msra.mxu0 %v3982
    %4042 = vmatpush.msra.mxu0 %v3965
    %4043 = vmatmul.f32.gmra.mxu0 %v3973
    %v4044 = vpop.f32.mrf.mxu0
    %v4045 = vadd.f32 0.0, %v4044
    %4046 = vdwg.mxu0
    %4047 = vmatpush.msra.mxu0 0.0
    %4048 = vmatpush.msra.mxu0 0.0
    %4049 = vmatpush.msra.mxu0 0.0
    %4050 = vmatpush.msra.mxu0 0.0
    %4051 = vmatpush.msra.mxu0 0.0
    %4052 = vmatpush.msra.mxu0 0.0
    %4053 = vmatpush.msra.mxu0 0.0
    %4054 = vmatpush.msra.mxu0 0.0
    %4055 = vmatpush.msra.mxu0 0.0
    %4056 = vmatpush.msra.mxu0 0.0
    %4057 = vmatpush.msra.mxu0 0.0
    %4058 = vmatpush.msra.mxu0 0.0
    %4059 = vmatpush.msra.mxu0 0.0
    %4060 = vmatpush.msra.mxu0 0.0
    %4061 = vmatpush.msra.mxu0 %v3985
    %4062 = vmatpush.msra.mxu0 %v3966
    %4063 = vmatmul.f32.gmra.mxu0 %v3973
    %v4064 = vpop.f32.mrf.mxu0
    %v4065 = vadd.f32 0.0, %v4064
    %4066 = vdwg.mxu0
    %v4067 = vadd.f32 %v3028, %v4005
    %v4068 = vadd.f32 %v3048, %v4025
    %v4069 = vadd.f32 %v3068, %v4045
    %v4070 = vadd.f32 %v3088, %v4065
    %s4071 = scalar_lea.vmem %s13, 8
    %v4072 = vld [vmem:[%s4071] sm:$0xf]
    %v4074 = vperm.slane %v4072, 0
    %v4075 = vperm.slane %v4072, 1
    %v4076 = vperm.slane %v4072, 2
    %v4077 = vperm.slane %v4072, 3
    %v4082 = vadd.f32 %v4067, %v4074
    %v4083 = vadd.f32 %v4068, %v4075
    %v4084 = vadd.f32 %v4069, %v4076
    %v4085 = vadd.f32 %v4070, %v4077
    %v4086 = vmax.f32 %v4082, 0.0
    %v4087 = vmax.f32 %v4083, 0.0
    %v4088 = vmax.f32 %v4084, 0.0
    %v4089 = vmax.f32 %v4085, 0.0
    %s4090 = scalar_lea.vmem %s11, 1024
    %v4091 = vld [vmem:[%s4090] sm:$0xff]
    %v4092 = vld [vmem:[%s4090 + $0x8] sm:$0xff]
    %v4093 = vld [vmem:[%s4090 + $0x10] sm:$0xff]
    %v4094 = vld [vmem:[%s4090 + $0x18] sm:$0xff]
    %v4095 = vld [vmem:[%s4090 + $0x20] sm:$0xff]
    %v4096 = vld [vmem:[%s4090 + $0x28] sm:$0xff]
    %v4097 = vld [vmem:[%s4090 + $0x30] sm:$0xff]
    %v4098 = vld [vmem:[%s4090 + $0x38] sm:$0xff]
    %v4099 = vld [vmem:[%s4090 + $0x40] sm:$0xff]
    %v4100 = vld [vmem:[%s4090 + $0x48] sm:$0xff]
    %v4101 = vld [vmem:[%s4090 + $0x50] sm:$0xff]
    %v4102 = vld [vmem:[%s4090 + $0x58] sm:$0xff]
    %v4103 = vld [vmem:[%s4090 + $0x60] sm:$0xff]
    %v4104 = vld [vmem:[%s4090 + $0x68] sm:$0xff]
    %v4105 = vld [vmem:[%s4090 + $0x70] sm:$0xff]
    %v4106 = vld [vmem:[%s4090 + $0x78] sm:$0xff]
    %v4107 = vld [vmem:[%s4090 + $0x80] sm:$0xff]
    %v4108 = vld [vmem:[%s4090 + $0x88] sm:$0xff]
    %v4109 = vld [vmem:[%s4090 + $0x90] sm:$0xff]
    %v4110 = vld [vmem:[%s4090 + $0x98] sm:$0xff]
    %v4111 = vld [vmem:[%s4090 + $0xa0] sm:$0xff]
    %v4112 = vld [vmem:[%s4090 + $0xa8] sm:$0xff]
    %v4113 = vld [vmem:[%s4090 + $0xb0] sm:$0xff]
    %v4114 = vld [vmem:[%s4090 + $0xb8] sm:$0xff]
    %v4115 = vld [vmem:[%s4090 + $0xc0] sm:$0xff]
    %v4116 = vld [vmem:[%s4090 + $0xc8] sm:$0xff]
    %v4117 = vld [vmem:[%s4090 + $0xd0] sm:$0xff]
    %v4118 = vld [vmem:[%s4090 + $0xd8] sm:$0xff]
    %v4119 = vld [vmem:[%s4090 + $0xe0] sm:$0xff]
    %v4120 = vld [vmem:[%s4090 + $0xe8] sm:$0xff]
    %v4121 = vld [vmem:[%s4090 + $0xf0] sm:$0xff]
    %v4122 = vld [vmem:[%s4090 + $0xf8] sm:$0xff]
    %v4123 = vld [vmem:[%s4090 + $0x100] sm:$0xff]
    %v4124 = vld [vmem:[%s4090 + $0x108] sm:$0xff]
    %v4125 = vld [vmem:[%s4090 + $0x110] sm:$0xff]
    %v4126 = vld [vmem:[%s4090 + $0x118] sm:$0xff]
    %v4127 = vld [vmem:[%s4090 + $0x120] sm:$0xff]
    %v4128 = vld [vmem:[%s4090 + $0x128] sm:$0xff]
    %v4129 = vld [vmem:[%s4090 + $0x130] sm:$0xff]
    %v4130 = vld [vmem:[%s4090 + $0x138] sm:$0xff]
    %v4131 = vld [vmem:[%s4090 + $0x140] sm:$0xff]
    %v4132 = vld [vmem:[%s4090 + $0x148] sm:$0xff]
    %v4133 = vld [vmem:[%s4090 + $0x150] sm:$0xff]
    %v4134 = vld [vmem:[%s4090 + $0x158] sm:$0xff]
    %v4135 = vld [vmem:[%s4090 + $0x160] sm:$0xff]
    %v4136 = vld [vmem:[%s4090 + $0x168] sm:$0xff]
    %v4137 = vld [vmem:[%s4090 + $0x170] sm:$0xff]
    %v4138 = vld [vmem:[%s4090 + $0x178] sm:$0xff]
    %v4139 = vld [vmem:[%s4090 + $0x180] sm:$0xff]
    %v4140 = vld [vmem:[%s4090 + $0x188] sm:$0xff]
    %v4141 = vld [vmem:[%s4090 + $0x190] sm:$0xff]
    %v4142 = vld [vmem:[%s4090 + $0x198] sm:$0xff]
    %v4143 = vld [vmem:[%s4090 + $0x1a0] sm:$0xff]
    %v4144 = vld [vmem:[%s4090 + $0x1a8] sm:$0xff]
    %v4145 = vld [vmem:[%s4090 + $0x1b0] sm:$0xff]
    %v4146 = vld [vmem:[%s4090 + $0x1b8] sm:$0xff]
    %v4147 = vld [vmem:[%s4090 + $0x1c0] sm:$0xff]
    %v4148 = vld [vmem:[%s4090 + $0x1c8] sm:$0xff]
    %v4149 = vld [vmem:[%s4090 + $0x1d0] sm:$0xff]
    %v4150 = vld [vmem:[%s4090 + $0x1d8] sm:$0xff]
    %v4151 = vld [vmem:[%s4090 + $0x1e0] sm:$0xff]
    %v4152 = vld [vmem:[%s4090 + $0x1e8] sm:$0xff]
    %v4153 = vld [vmem:[%s4090 + $0x1f0] sm:$0xff]
    %v4154 = vld [vmem:[%s4090 + $0x1f8] sm:$0xff]
    %4155 = vmatpush.msra.mxu0 %v4106
    %4156 = vmatpush.msra.mxu0 %v4105
    %4157 = vmatpush.msra.mxu0 %v4104
    %4158 = vmatpush.msra.mxu0 %v4103
    %4159 = vmatpush.msra.mxu0 %v4102
    %4160 = vmatpush.msra.mxu0 %v4101
    %4161 = vmatpush.msra.mxu0 %v4100
    %4162 = vmatpush.msra.mxu0 %v4099
    %4163 = vmatpush.msra.mxu0 %v4098
    %4164 = vmatpush.msra.mxu0 %v4097
    %4165 = vmatpush.msra.mxu0 %v4096
    %4166 = vmatpush.msra.mxu0 %v4095
    %4167 = vmatpush.msra.mxu0 %v4094
    %4168 = vmatpush.msra.mxu0 %v4093
    %4169 = vmatpush.msra.mxu0 %v4092
    %4170 = vmatpush.msra.mxu0 %v4091
    %4171 = vmatmul.f32.gmra.mxu0 %v4086
    %v4172 = vpop.f32.mrf.mxu0
    %v4173 = vadd.f32 0.0, %v4172
    %4174 = vdwg.mxu0
    %4175 = vmatpush.msra.mxu0 %v4122
    %4176 = vmatpush.msra.mxu0 %v4121
    %4177 = vmatpush.msra.mxu0 %v4120
    %4178 = vmatpush.msra.mxu0 %v4119
    %4179 = vmatpush.msra.mxu0 %v4118
    %4180 = vmatpush.msra.mxu0 %v4117
    %4181 = vmatpush.msra.mxu0 %v4116
    %4182 = vmatpush.msra.mxu0 %v4115
    %4183 = vmatpush.msra.mxu0 %v4114
    %4184 = vmatpush.msra.mxu0 %v4113
    %4185 = vmatpush.msra.mxu0 %v4112
    %4186 = vmatpush.msra.mxu0 %v4111
    %4187 = vmatpush.msra.mxu0 %v4110
    %4188 = vmatpush.msra.mxu0 %v4109
    %4189 = vmatpush.msra.mxu0 %v4108
    %4190 = vmatpush.msra.mxu0 %v4107
    %4191 = vmatmul.f32.gmra.mxu0 %v4087
    %v4192 = vpop.f32.mrf.mxu0
    %v4193 = vadd.f32 %v4173, %v4192
    %4194 = vdwg.mxu0
    %4195 = vmatpush.msra.mxu0 %v4138
    %4196 = vmatpush.msra.mxu0 %v4137
    %4197 = vmatpush.msra.mxu0 %v4136
    %4198 = vmatpush.msra.mxu0 %v4135
    %4199 = vmatpush.msra.mxu0 %v4134
    %4200 = vmatpush.msra.mxu0 %v4133
    %4201 = vmatpush.msra.mxu0 %v4132
    %4202 = vmatpush.msra.mxu0 %v4131
    %4203 = vmatpush.msra.mxu0 %v4130
    %4204 = vmatpush.msra.mxu0 %v4129
    %4205 = vmatpush.msra.mxu0 %v4128
    %4206 = vmatpush.msra.mxu0 %v4127
    %4207 = vmatpush.msra.mxu0 %v4126
    %4208 = vmatpush.msra.mxu0 %v4125
    %4209 = vmatpush.msra.mxu0 %v4124
    %4210 = vmatpush.msra.mxu0 %v4123
    %4211 = vmatmul.f32.gmra.mxu0 %v4088
    %v4212 = vpop.f32.mrf.mxu0
    %v4213 = vadd.f32 %v4193, %v4212
    %4214 = vdwg.mxu0
    %4215 = vmatpush.msra.mxu0 %v4154
    %4216 = vmatpush.msra.mxu0 %v4153
    %4217 = vmatpush.msra.mxu0 %v4152
    %4218 = vmatpush.msra.mxu0 %v4151
    %4219 = vmatpush.msra.mxu0 %v4150
    %4220 = vmatpush.msra.mxu0 %v4149
    %4221 = vmatpush.msra.mxu0 %v4148
    %4222 = vmatpush.msra.mxu0 %v4147
    %4223 = vmatpush.msra.mxu0 %v4146
    %4224 = vmatpush.msra.mxu0 %v4145
    %4225 = vmatpush.msra.mxu0 %v4144
    %4226 = vmatpush.msra.mxu0 %v4143
    %4227 = vmatpush.msra.mxu0 %v4142
    %4228 = vmatpush.msra.mxu0 %v4141
    %4229 = vmatpush.msra.mxu0 %v4140
    %4230 = vmatpush.msra.mxu0 %v4139
    %4231 = vmatmul.f32.gmra.mxu0 %v4089
    %v4232 = vpop.f32.mrf.mxu0
    %v4233 = vadd.f32 %v4213, %v4232
    %4234 = vdwg.mxu0
    %s4235 = scalar_lea.vmem %s12, 32
    %v4236 = vld [vmem:[%s4235] sm:$0xff]
    %v4237 = vld [vmem:[%s4235 + $0x8] sm:$0x1]
    %v4239 = vsel %vm3126, %v4233, 0
    %v4242 = vsel %vm3130, %v4237, 0
    %4244 = vmatpush.msra.mxu0 0.0
    %4245 = vmatpush.msra.mxu0 0.0
    %4246 = vmatpush.msra.mxu0 0.0
    %4247 = vmatpush.msra.mxu0 0.0
    %4248 = vmatpush.msra.mxu0 0.0
    %4249 = vmatpush.msra.mxu0 0.0
    %4250 = vmatpush.msra.mxu0 0.0
    %4251 = vmatpush.msra.mxu0 0.0
    %4252 = vmatpush.msra.mxu0 0.0
    %4253 = vmatpush.msra.mxu0 0.0
    %4254 = vmatpush.msra.mxu0 0.0
    %4255 = vmatpush.msra.mxu0 0.0
    %4256 = vmatpush.msra.mxu0 0.0
    %4257 = vmatpush.msra.mxu0 0.0
    %4258 = vmatpush.msra.mxu0 %v4242
    %4259 = vmatpush.msra.mxu0 %v4236
    %4260 = vmatmul.f32.gmra.mxu0 %v4239
    %v4261 = vpop.f32.mrf.mxu0
    %v4262 = vadd.f32 0.0, %v4261
    %4263 = vdwg.mxu0
    %4264 = vmatpush.msra.mxu0 %v3260
    %4265 = vmatpush.msra.mxu0 %v3259
    %4266 = vmatpush.msra.mxu0 %v3258
    %4267 = vmatpush.msra.mxu0 %v3257
    %4268 = vmatpush.msra.mxu0 %v3256
    %4269 = vmatpush.msra.mxu0 %v3255
    %4270 = vmatpush.msra.mxu0 %v3254
    %4271 = vmatpush.msra.mxu0 %v3253
    %4272 = vmatpush.msra.mxu0 %v3252
    %4273 = vmatpush.msra.mxu0 %v3251
    %4274 = vmatpush.msra.mxu0 %v3250
    %4275 = vmatpush.msra.mxu0 %v3249
    %4276 = vmatpush.msra.mxu0 %v3248
    %4277 = vmatpush.msra.mxu0 %v3247
    %4278 = vmatpush.msra.mxu0 %v3246
    %4279 = vmatpush.msra.mxu0 %v3245
    %4280 = vmatmul.f32.gmra.mxu0 %v4086
    %v4281 = vpop.f32.mrf.mxu0
    %v4282 = vadd.f32 %v4262, %v4281
    %4283 = vdwg.mxu0
    %4284 = vmatpush.msra.mxu0 %v3276
    %4285 = vmatpush.msra.mxu0 %v3275
    %4286 = vmatpush.msra.mxu0 %v3274
    %4287 = vmatpush.msra.mxu0 %v3273
    %4288 = vmatpush.msra.mxu0 %v3272
    %4289 = vmatpush.msra.mxu0 %v3271
    %4290 = vmatpush.msra.mxu0 %v3270
    %4291 = vmatpush.msra.mxu0 %v3269
    %4292 = vmatpush.msra.mxu0 %v3268
    %4293 = vmatpush.msra.mxu0 %v3267
    %4294 = vmatpush.msra.mxu0 %v3266
    %4295 = vmatpush.msra.mxu0 %v3265
    %4296 = vmatpush.msra.mxu0 %v3264
    %4297 = vmatpush.msra.mxu0 %v3263
    %4298 = vmatpush.msra.mxu0 %v3262
    %4299 = vmatpush.msra.mxu0 %v3261
    %4300 = vmatmul.f32.gmra.mxu0 %v4087
    %v4301 = vpop.f32.mrf.mxu0
    %v4302 = vadd.f32 %v4282, %v4301
    %4303 = vdwg.mxu0
    %4304 = vmatpush.msra.mxu0 %v3292
    %4305 = vmatpush.msra.mxu0 %v3291
    %4306 = vmatpush.msra.mxu0 %v3290
    %4307 = vmatpush.msra.mxu0 %v3289
    %4308 = vmatpush.msra.mxu0 %v3288
    %4309 = vmatpush.msra.mxu0 %v3287
    %4310 = vmatpush.msra.mxu0 %v3286
    %4311 = vmatpush.msra.mxu0 %v3285
    %4312 = vmatpush.msra.mxu0 %v3284
    %4313 = vmatpush.msra.mxu0 %v3283
    %4314 = vmatpush.msra.mxu0 %v3282
    %4315 = vmatpush.msra.mxu0 %v3281
    %4316 = vmatpush.msra.mxu0 %v3280
    %4317 = vmatpush.msra.mxu0 %v3279
    %4318 = vmatpush.msra.mxu0 %v3278
    %4319 = vmatpush.msra.mxu0 %v3277
    %4320 = vmatmul.f32.gmra.mxu0 %v4088
    %v4321 = vpop.f32.mrf.mxu0
    %v4322 = vadd.f32 %v4302, %v4321
    %4323 = vdwg.mxu0
    %4324 = vmatpush.msra.mxu0 %v3308
    %4325 = vmatpush.msra.mxu0 %v3307
    %4326 = vmatpush.msra.mxu0 %v3306
    %4327 = vmatpush.msra.mxu0 %v3305
    %4328 = vmatpush.msra.mxu0 %v3304
    %4329 = vmatpush.msra.mxu0 %v3303
    %4330 = vmatpush.msra.mxu0 %v3302
    %4331 = vmatpush.msra.mxu0 %v3301
    %4332 = vmatpush.msra.mxu0 %v3300
    %4333 = vmatpush.msra.mxu0 %v3299
    %4334 = vmatpush.msra.mxu0 %v3298
    %4335 = vmatpush.msra.mxu0 %v3297
    %4336 = vmatpush.msra.mxu0 %v3296
    %4337 = vmatpush.msra.mxu0 %v3295
    %4338 = vmatpush.msra.mxu0 %v3294
    %4339 = vmatpush.msra.mxu0 %v3293
    %4340 = vmatmul.f32.gmra.mxu0 %v4089
    %v4341 = vpop.f32.mrf.mxu0
    %v4342 = vadd.f32 %v4322, %v4341
    %4343 = vdwg.mxu0
    %s4344 = scalar_lea.vmem %s14, 2
    %v4345 = vld [vmem:[%s4344] sm:$0x1]
    %v4347 = vperm.slane %v4345, 0
    %v4349 = vadd.f32 %v4342, %v4347
    %s4350 = sld [smem:[#allocation2 + $0x2]]
    %v4351 = vstv %s4350
    %v4352 = vmul.f32 %v4349, %v4351
    %v4353 = vadd.f32 %v3961, %v4352
    %vm4354 = vcmask 48128
    %4355 = vst.msk [vmem:[#allocation5] sm:$0xff] %vm4354, %v4353
    // Predicated region
    $region70: #{forward.1} parent=1 // pred_check
      _
    $region71: #{forward.1} parent=1 // pred_check_branch
      %4357 = sbr.rel (0) target = $region73
    $region72: #{forward.1} parent=1 // pred_region
      %4359 = vsyncadd [#allocation3], 0
      %s4361 = sshll.u32 [#allocation5], 4
      %s4362 = int_to_ptr.vmem [resolvable:$true] %s4361
      %s4363 = sshll.u32 %s16, 4
      %s4364 = int_to_ptr.hbm [resolvable:$true] %s4363
      %4366 = dma.vmem_to_hbm [thread:$0]  %s4362, 128, %s4364, [#allocation3]
    $region73: #{forward.1} parent=1 // pred_fallthru
      _
    // Predicated region
    $region74: #{forward.1} parent=1 // pred_check
      _
    $region75: #{forward.1} parent=1 // pred_check_branch
      %4368 = sbr.rel (0) target = $region77
    $region76: #{forward.1} parent=1 // pred_region
      %4370 = dma.done [#allocation3], 128
    $region77: #{forward.1} parent=1 // pred_fallthru
      _
    %4371 = vsyncpa [#allocation3], 1
    %4372 = vsyncpa [#allocation4], 1

</llo_original>
